<compile_context>
chip_gen: v7x
topology: tpu7x:2x2x1
jax: 0.10.0
libtpu: 0.0.40
codegen_flags: <defaults>
</compile_context>

<pallas_src>
import jax
import jax.numpy as jnp
from jax import lax
from jax.experimental import pallas as pl
from jax.experimental.pallas import tpu as pltpu

# ----------------------------------------------------------------------------
# Model hyper-parameters (small, consistent with the config the module reads).
# ----------------------------------------------------------------------------
B = 2            # batch
L_DESC = 16      # description sequence length
L_WORK = 8       # work-history sequence length
WORK_NUM = 3     # work_history_num
N_SKILLS = 8     # skills per sample
VEC_SIZE = 32    # data.vec_size (embedding dim E)
HIDDEN = 32      # model.hidden_size (H)
OUT_DIM = 4      # data.out_dim
WORD_NUM = 100
SKILL_VOCAB = 20  # len(skill2id)

_VMEM = pl.BlockSpec(memory_space=pltpu.MemorySpace.VMEM)


# ----------------------------------------------------------------------------
# Fused Pallas kernel: both LSTM encoders + SkillsEncoder + final Linear.
# ----------------------------------------------------------------------------
def cv_pay_fused_kernel(desc_ref, work_ref, sk_ref,
                        d_wih_ref, d_whh_ref, d_b_ref,
                        w_wih_ref, w_whh_ref, w_b_ref,
                        wska_ref, wsctx_ref, fc_w_ref, fc_b_ref,
                        y_ref,
                        gxd_ref, gxw_ref, dh_ref):
    """desc_ref: (B, Ld, E)   work_ref: (B*Wn, Lw, E)   sk_ref: (B, Ns, E)
    *_wih: (E, 4H)  *_whh: (H, 4H)  *_b: (1, 4H) (= b_ih + b_hh)
    wska_ref: (E, 2H) = [W | work_skill[:E]]   wsctx_ref: (H, H) = work_skill[E:]
    fc_w_ref: (3H+E, O)   fc_b_ref: (1, O)     y_ref: (B, O)
    gxd_ref: (Ld, B, 4H) scratch, gxw_ref: (Lw, B*Wn, 4H) scratch,
    dh_ref: (Ld, B, H) scratch (desc hidden-state sequence, time-major).
    """
    f32 = jnp.float32
    Bk, Ld, E = desc_ref.shape
    BW, Lw, _ = work_ref.shape
    _, Ns, _ = sk_ref.shape
    H = d_whh_ref.shape[0]
    G = 4 * H
    Wn = BW // Bk

    # ---- full-width gate activation constants (PyTorch gate order i,f,g,o).
    # One sigmoid over all 4H lanes; g-gate lanes use tanh(x) = 2*sigmoid(2x)-1.
    lane = lax.broadcasted_iota(jnp.int32, (1, G), 1)
    is_g = jnp.logical_and(lane >= 2 * H, lane < 3 * H)
    g_scale = jnp.where(is_g, 2.0, 1.0).astype(f32)
    g_shift = jnp.where(is_g, -1.0, 0.0).astype(f32)

    # ---- hoisted input projections: x @ W_ih + (b_ih + b_hh) for every step,
    # stored time-major so the recurrence reads one (batch, 4H) slab per step.
    gd = jnp.dot(desc_ref[...].reshape(Bk * Ld, E), d_wih_ref[...],
                 preferred_element_type=f32) + d_b_ref[...]        # (B*Ld, 4H)
    for b in range(Bk):
        gxd_ref[:, b, :] = gd[b * Ld:(b + 1) * Ld, :]
    gw = jnp.dot(work_ref[...].reshape(BW * Lw, E), w_wih_ref[...],
                 preferred_element_type=f32) + w_b_ref[...]        # (BW*Lw, 4H)
    for r in range(BW):
        gxw_ref[:, r, :] = gw[r * Lw:(r + 1) * Lw, :]

    # ---- shared LSTM recurrence with running max carry.
    def lstm(gx_ref, whh, T, nb, hseq_ref=None):
        def step(t, carry):
            h, c, hmax = carry
            gates = gx_ref[t] + jnp.dot(h, whh, preferred_element_type=f32)
            acts = jax.nn.sigmoid(gates * g_scale) * g_scale + g_shift
            i_g = acts[:, 0:H]
            f_g = acts[:, H:2 * H]
            g_g = acts[:, 2 * H:3 * H]
            o_g = acts[:, 3 * H:4 * H]
            c_new = f_g * c + i_g * g_g
            h_new = o_g * jnp.tanh(c_new)
            if hseq_ref is not None:
                hseq_ref[t] = h_new
            return h_new, c_new, jnp.maximum(hmax, h_new)

        init = (jnp.zeros((nb, H), f32),
                jnp.zeros((nb, H), f32),
                jnp.full((nb, H), -jnp.inf, f32))
        _, _, hmax = lax.fori_loop(0, T, step, init, unroll=True)
        return hmax

    desc_max = lstm(gxd_ref, d_whh_ref[...], Ld, Bk, hseq_ref=dh_ref)  # (B, H)
    work_max = lstm(gxw_ref, w_whh_ref[...], Lw, BW)                   # (BW, H)

    # ---- SkillsEncoder + final Linear.
    # fused LHS-sharing matmul for the whole batch at once:
    #   skills @ [W | work_skill[:E]]  ->  (B*Ns, 2H)
    pr_all = jnp.dot(sk_ref[...].reshape(Bk * Ns, E), wska_ref[...],
                     preferred_element_type=f32)                       # (B*Ns, 2H)
    ws_ctx = wsctx_ref[...]                                            # (H, H)
    dh = dh_ref[...]                                                   # (Ld, B, H)

    feats = []
    for b in range(Bk):
        sk_b = sk_ref[b]                                    # (Ns, E)
        d_b = dh[:, b, :]                                   # (Ld, H)
        work_b = work_max[b * Wn:(b + 1) * Wn, :]           # (Wn, H)

        pr = pr_all[b * Ns:(b + 1) * Ns, :]                 # (Ns, 2H)
        proj_b = pr[:, 0:H]                                 # skills @ W
        rel_sk = pr[:, H:2 * H]                             # skills part of rel

        # attention of each skill over description tokens
        att = lax.dot_general(proj_b, d_b, (((1,), (1,)), ((), ())),
                              preferred_element_type=f32)   # (Ns, Ld)
        att = jax.nn.softmax(att, axis=1)
        ctx_b = jnp.dot(att, d_b, preferred_element_type=f32)  # (Ns, H)

        # cat([skills, ctx]) @ work_skill  (split matmul, skills part fused above)
        rel_b = rel_sk + jnp.dot(ctx_b, ws_ctx, preferred_element_type=f32)

        rel_ma = lax.dot_general(work_b, rel_b, (((1,), (1,)), ((), ())),
                                 preferred_element_type=f32)  # (Wn, Ns)
        r_skill = jax.nn.softmax(jnp.max(rel_ma, axis=0, keepdims=True),
                                 axis=1)                      # (1, Ns)
        r_work = jax.nn.softmax(jnp.max(rel_ma, axis=1, keepdims=True),
                                axis=0)                       # (Wn, 1)

        sk_out = jnp.dot(r_skill, sk_b, preferred_element_type=f32)    # (1, E)
        ctx_out = jnp.dot(r_skill, ctx_b, preferred_element_type=f32)  # (1, H)
        wk_out = jnp.sum(r_work * work_b, axis=0, keepdims=True)       # (1, H)

        feats.append(jnp.concatenate(
            [desc_max[b:b + 1, :], sk_out, ctx_out, wk_out], axis=1))  # (1, 3H+E)

    feature = jnp.concatenate(feats, axis=0)                           # (B, 3H+E)
    y_ref[...] = (jnp.dot(feature, fc_w_ref[...], preferred_element_type=f32)
                  + fc_b_ref[...])


def run_cv_pay_fused(desc_emb, work_emb, sk_emb, params):
    Bk, Ld, E = desc_emb.shape
    BW, Lw, _ = work_emb.shape
    H = params['desc_whh'].shape[0]
    out_dim = params['fc_b'].shape[1]

    # Pre-fused SkillsEncoder weights (removes an in-kernel concat/copy):
    #   wska = [W | work_skill[:E]]  (E, 2H),   ws_ctx = work_skill[E:]  (H, H)
    wska = jnp.concatenate([params['W'], params['work_skill'][:E, :]], axis=1)
    ws_ctx = params['work_skill'][E:, :]

    return pl.pallas_call(
        cv_pay_fused_kernel,
        out_shape=jax.ShapeDtypeStruct((Bk, out_dim), jnp.float32),
        in_specs=[_VMEM] * 13,
        out_specs=_VMEM,
        scratch_shapes=[
            pltpu.VMEM((Ld, Bk, 4 * H), jnp.float32),  # desc x-gates (time-major)
            pltpu.VMEM((Lw, BW, 4 * H), jnp.float32),  # work x-gates (time-major)
            pltpu.VMEM((Ld, Bk, H), jnp.float32),      # desc hidden sequence
        ],
    )(desc_emb, work_emb, sk_emb,
      params['desc_wih'], params['desc_whh'], params['desc_b'],
      params['work_wih'], params['work_whh'], params['work_b'],
      wska, ws_ctx, params['fc_w'], params['fc_b'])


# ----------------------------------------------------------------------------
# Full forward (embedding gathers / loss are plain-JAX glue)
# ----------------------------------------------------------------------------
@jax.jit
def cv_pay_forward(params, description, skills_ids, work_hist, label):
    Bk = description.shape[0]
    Wn = work_hist.shape[1]

    # Embedding lookups (tiny XLA gathers; everything downstream is one kernel)
    desc_emb = jnp.take(params['word_emb'], description, axis=0)      # (B, Ld, E)
    work_tok = work_hist.reshape(Bk * Wn, work_hist.shape[2])
    work_emb = jnp.take(params['word_emb'], work_tok, axis=0)         # (B*Wn, Lw, E)
    sk_emb = jnp.take(params['skill_emb'], skills_ids, axis=0)        # (B, Ns, E)

    # Fused Pallas forward: LSTMs + SkillsEncoder + fc
    y = run_cv_pay_fused(desc_emb, work_emb, sk_emb, params)

    # criterion (cross-entropy) + accuracy, plain JAX glue
    # TODO(synk): original uses externally supplied `criterion` / calc_accuracy;
    # standard softmax cross-entropy and top-1 accuracy used here.
    logp = jax.nn.log_softmax(y, axis=1)
    loss = -jnp.mean(logp[jnp.arange(Bk), label])
    pred = jnp.argmax(y, axis=1)
    accu = jnp.mean((pred == label).astype(jnp.float32))
    return {'loss': loss, 'accuracy': accu, 'result': pred, 'x': y}


# ----------------------------------------------------------------------------
# Deterministic parameter init
# ----------------------------------------------------------------------------
def xavier_normal(key, shape):
    fan_in, fan_out = shape
    std = (2.0 / (fan_in + fan_out)) ** 0.5
    return std * jax.random.normal(key, shape, jnp.float32)


def init_lstm(key, e, h):
    k1, k2, k3, k4 = jax.random.split(key, 4)
    bound = 1.0 / (h ** 0.5)
    wih = jax.random.uniform(k1, (e, 4 * h), jnp.float32, -bound, bound)
    whh = jax.random.uniform(k2, (h, 4 * h), jnp.float32, -bound, bound)
    b = (jax.random.uniform(k3, (1, 4 * h), jnp.float32, -bound, bound)
         + jax.random.uniform(k4, (1, 4 * h), jnp.float32, -bound, bound))
    return wih, whh, b


def init_params(key):
    keys = jax.random.split(key, 8)
    feature_size = 3 * HIDDEN + VEC_SIZE
    fc_bound = 1.0 / (feature_size ** 0.5)
    desc_wih, desc_whh, desc_b = init_lstm(keys[2], VEC_SIZE, HIDDEN)
    work_wih, work_whh, work_b = init_lstm(keys[3], VEC_SIZE, HIDDEN)
    return {
        'word_emb': jax.random.normal(keys[0], (WORD_NUM, VEC_SIZE), jnp.float32),
        'skill_emb': jax.random.normal(keys[1], (SKILL_VOCAB + 1, VEC_SIZE), jnp.float32),
        'desc_wih': desc_wih, 'desc_whh': desc_whh, 'desc_b': desc_b,
        'work_wih': work_wih, 'work_whh': work_whh, 'work_b': work_b,
        'W': xavier_normal(keys[4], (VEC_SIZE, HIDDEN)),
        'work_skill': xavier_normal(keys[5], (HIDDEN + VEC_SIZE, HIDDEN)),
        'fc_w': jax.random.uniform(keys[6], (feature_size, OUT_DIM),
                                   jnp.float32, -fc_bound, fc_bound),
        'fc_b': jax.random.uniform(keys[7], (1, OUT_DIM),
                                   jnp.float32, -fc_bound, fc_bound),
    }


if __name__ == "__main__":
    root = jax.random.PRNGKey(0)
    kp, kd, ks, kw, kl = jax.random.split(root, 5)

    params = init_params(kp)
    description = jax.random.randint(kd, (B, L_DESC), 0, WORD_NUM, jnp.int32)
    skills_ids = jax.random.randint(ks, (B, N_SKILLS), 0, SKILL_VOCAB + 1, jnp.int32)
    work_hist = jax.random.randint(kw, (B, WORK_NUM, L_WORK), 0, WORD_NUM, jnp.int32)
    label = jax.random.randint(kl, (B,), 0, OUT_DIM, jnp.int32)

    out = cv_pay_forward(params, description, skills_ids, work_hist, label)
    jax.block_until_ready(out['x'])
    assert out['x'].shape == (B, OUT_DIM)
    print("KERNEL_OK")
</pallas_src>

<mosaic_0001>
module attributes {stable_mosaic.version = 11 : i64} {
  func.func @cv_pay_fused_kernel(%arg0: memref<2x16x32xf32, #tpu.memory_space<vmem>>, %arg1: memref<6x8x32xf32, #tpu.memory_space<vmem>>, %arg2: memref<2x8x32xf32, #tpu.memory_space<vmem>>, %arg3: memref<32x128xf32, #tpu.memory_space<vmem>>, %arg4: memref<32x128xf32, #tpu.memory_space<vmem>>, %arg5: memref<1x128xf32, #tpu.memory_space<vmem>>, %arg6: memref<32x128xf32, #tpu.memory_space<vmem>>, %arg7: memref<32x128xf32, #tpu.memory_space<vmem>>, %arg8: memref<1x128xf32, #tpu.memory_space<vmem>>, %arg9: memref<32x64xf32, #tpu.memory_space<vmem>>, %arg10: memref<32x32xf32, #tpu.memory_space<vmem>>, %arg11: memref<128x4xf32, #tpu.memory_space<vmem>>, %arg12: memref<1x4xf32, #tpu.memory_space<vmem>>, %arg13: memref<2x4xf32, #tpu.memory_space<vmem>>, %arg14: memref<16x2x128xf32, #tpu.memory_space<vmem>>, %arg15: memref<8x6x128xf32, #tpu.memory_space<vmem>>, %arg16: memref<16x2x32xf32, #tpu.memory_space<vmem>>) attributes {dimension_semantics = [], scalar_prefetch = 0 : i64, scratch_operands = 3 : i64, tpu.core_type = #tpu.core_type<tc>} {
    %0 = tpu.iota {dimensions = array<i32: 1>} : vector<1x128xi32>
    %c64_i32 = arith.constant 64 : i32
    %1 = vector.broadcast %c64_i32 : i32 to vector<1x128xi32>
    %2 = arith.cmpi sge, %0, %1 : vector<1x128xi32>
    %c96_i32 = arith.constant 96 : i32
    %3 = vector.broadcast %c96_i32 : i32 to vector<1x128xi32>
    %4 = arith.cmpi slt, %0, %3 : vector<1x128xi32>
    %5 = arith.andi %2, %4 : vector<1x128xi1>
    %cst = arith.constant 2.000000e+00 : f32
    %cst_0 = arith.constant 1.000000e+00 : f32
    %6 = vector.broadcast %cst : f32 to vector<1x128xf32>
    %7 = vector.broadcast %cst_0 : f32 to vector<1x128xf32>
    %8 = arith.select %5, %6, %7 : vector<1x128xi1>, vector<1x128xf32>
    %cst_1 = arith.constant -1.000000e+00 : f32
    %cst_2 = arith.constant 0.000000e+00 : f32
    %9 = vector.broadcast %cst_1 : f32 to vector<1x128xf32>
    %10 = vector.broadcast %cst_2 : f32 to vector<1x128xf32>
    %11 = arith.select %5, %9, %10 : vector<1x128xi1>, vector<1x128xf32>
    %c0 = arith.constant 0 : index
    %c0_3 = arith.constant 0 : index
    %c0_4 = arith.constant 0 : index
    %12 = vector.load %arg0[%c0, %c0_3, %c0_4] : memref<2x16x32xf32, #tpu.memory_space<vmem>>, vector<2x16x32xf32>
    %13 = vector.shape_cast %12 : vector<2x16x32xf32> to vector<32x32xf32>
    %c0_5 = arith.constant 0 : index
    %c0_6 = arith.constant 0 : index
    %14 = vector.load %arg3[%c0_5, %c0_6] : memref<32x128xf32, #tpu.memory_space<vmem>>, vector<32x128xf32>
    %cst_7 = arith.constant dense<0.000000e+00> : vector<32x128xf32>
    %15 = tpu.matmul %13, %14, %cst_7 {dimension_numbers = #tpu.dot_dimension_numbers<[1], [0], [0], [1], [0, 0, 1, 1], [], []>} : vector<32x32xf32>, vector<32x128xf32>, vector<32x128xf32> -> vector<32x128xf32>
    %c0_8 = arith.constant 0 : index
    %c0_9 = arith.constant 0 : index
    %16 = vector.load %arg5[%c0_8, %c0_9] : memref<1x128xf32, #tpu.memory_space<vmem>>, vector<1x128xf32>
    %17 = vector.broadcast %16 : vector<1x128xf32> to vector<32x128xf32>
    %18 = arith.addf %15, %17 : vector<32x128xf32>
    %19 = vector.extract_strided_slice %18 {offsets = [0, 0], sizes = [16, 128], strides = [1, 1]} : vector<32x128xf32> to vector<16x128xf32>
    %c0_10 = arith.constant 0 : index
    %c0_11 = arith.constant 0 : index
    %c0_12 = arith.constant 0 : index
    %20 = vector.load %arg14[%c0_10, %c0_11, %c0_12] : memref<16x2x128xf32, #tpu.memory_space<vmem>>, vector<16x1x128xf32>
    %21 = vector.shape_cast %20 : vector<16x1x128xf32> to vector<16x128xf32>
    %22 = vector.shape_cast %19 : vector<16x128xf32> to vector<16x1x128xf32>
    tpu.vector_store %arg14[%c0_10, %c0_11, %c0_12], %22 {strides = array<i32>} : memref<16x2x128xf32, #tpu.memory_space<vmem>>, vector<16x1x128xf32>,
    %23 = vector.extract_strided_slice %18 {offsets = [16, 0], sizes = [16, 128], strides = [1, 1]} : vector<32x128xf32> to vector<16x128xf32>
    %c0_13 = arith.constant 0 : index
    %c1 = arith.constant 1 : index
    %c0_14 = arith.constant 0 : index
    %24 = vector.load %arg14[%c0_13, %c1, %c0_14] : memref<16x2x128xf32, #tpu.memory_space<vmem>>, vector<16x1x128xf32>
    %25 = vector.shape_cast %24 : vector<16x1x128xf32> to vector<16x128xf32>
    %26 = vector.shape_cast %23 : vector<16x128xf32> to vector<16x1x128xf32>
    tpu.vector_store %arg14[%c0_13, %c1, %c0_14], %26 {strides = array<i32>} : memref<16x2x128xf32, #tpu.memory_space<vmem>>, vector<16x1x128xf32>,
    %c0_15 = arith.constant 0 : index
    %c0_16 = arith.constant 0 : index
    %c0_17 = arith.constant 0 : index
    %27 = vector.load %arg1[%c0_15, %c0_16, %c0_17] : memref<6x8x32xf32, #tpu.memory_space<vmem>>, vector<6x8x32xf32>
    %28 = vector.shape_cast %27 : vector<6x8x32xf32> to vector<48x32xf32>
    %c0_18 = arith.constant 0 : index
    %c0_19 = arith.constant 0 : index
    %29 = vector.load %arg6[%c0_18, %c0_19] : memref<32x128xf32, #tpu.memory_space<vmem>>, vector<32x128xf32>
    %cst_20 = arith.constant dense<0.000000e+00> : vector<48x128xf32>
    %30 = tpu.matmul %28, %29, %cst_20 {dimension_numbers = #tpu.dot_dimension_numbers<[1], [0], [0], [1], [0, 0, 1, 1], [], []>} : vector<48x32xf32>, vector<32x128xf32>, vector<48x128xf32> -> vector<48x128xf32>
    %c0_21 = arith.constant 0 : index
    %c0_22 = arith.constant 0 : index
    %31 = vector.load %arg8[%c0_21, %c0_22] : memref<1x128xf32, #tpu.memory_space<vmem>>, vector<1x128xf32>
    %32 = vector.broadcast %31 : vector<1x128xf32> to vector<48x128xf32>
    %33 = arith.addf %30, %32 : vector<48x128xf32>
    %34 = vector.extract_strided_slice %33 {offsets = [0, 0], sizes = [8, 128], strides = [1, 1]} : vector<48x128xf32> to vector<8x128xf32>
    %c0_23 = arith.constant 0 : index
    %c0_24 = arith.constant 0 : index
    %c0_25 = arith.constant 0 : index
    %35 = vector.load %arg15[%c0_23, %c0_24, %c0_25] : memref<8x6x128xf32, #tpu.memory_space<vmem>>, vector<8x1x128xf32>
    %36 = vector.shape_cast %35 : vector<8x1x128xf32> to vector<8x128xf32>
    %37 = vector.shape_cast %34 : vector<8x128xf32> to vector<8x1x128xf32>
    tpu.vector_store %arg15[%c0_23, %c0_24, %c0_25], %37 {strides = array<i32>} : memref<8x6x128xf32, #tpu.memory_space<vmem>>, vector<8x1x128xf32>,
    %38 = vector.extract_strided_slice %33 {offsets = [8, 0], sizes = [8, 128], strides = [1, 1]} : vector<48x128xf32> to vector<8x128xf32>
    %c0_26 = arith.constant 0 : index
    %c1_27 = arith.constant 1 : index
    %c0_28 = arith.constant 0 : index
    %39 = vector.load %arg15[%c0_26, %c1_27, %c0_28] : memref<8x6x128xf32, #tpu.memory_space<vmem>>, vector<8x1x128xf32>
    %40 = vector.shape_cast %39 : vector<8x1x128xf32> to vector<8x128xf32>
    %41 = vector.shape_cast %38 : vector<8x128xf32> to vector<8x1x128xf32>
    tpu.vector_store %arg15[%c0_26, %c1_27, %c0_28], %41 {strides = array<i32>} : memref<8x6x128xf32, #tpu.memory_space<vmem>>, vector<8x1x128xf32>,
    %42 = vector.extract_strided_slice %33 {offsets = [16, 0], sizes = [8, 128], strides = [1, 1]} : vector<48x128xf32> to vector<8x128xf32>
    %c0_29 = arith.constant 0 : index
    %c2 = arith.constant 2 : index
    %c0_30 = arith.constant 0 : index
    %43 = vector.load %arg15[%c0_29, %c2, %c0_30] : memref<8x6x128xf32, #tpu.memory_space<vmem>>, vector<8x1x128xf32>
    %44 = vector.shape_cast %43 : vector<8x1x128xf32> to vector<8x128xf32>
    %45 = vector.shape_cast %42 : vector<8x128xf32> to vector<8x1x128xf32>
    tpu.vector_store %arg15[%c0_29, %c2, %c0_30], %45 {strides = array<i32>} : memref<8x6x128xf32, #tpu.memory_space<vmem>>, vector<8x1x128xf32>,
    %46 = vector.extract_strided_slice %33 {offsets = [24, 0], sizes = [8, 128], strides = [1, 1]} : vector<48x128xf32> to vector<8x128xf32>
    %c0_31 = arith.constant 0 : index
    %c3 = arith.constant 3 : index
    %c0_32 = arith.constant 0 : index
    %47 = vector.load %arg15[%c0_31, %c3, %c0_32] : memref<8x6x128xf32, #tpu.memory_space<vmem>>, vector<8x1x128xf32>
    %48 = vector.shape_cast %47 : vector<8x1x128xf32> to vector<8x128xf32>
    %49 = vector.shape_cast %46 : vector<8x128xf32> to vector<8x1x128xf32>
    tpu.vector_store %arg15[%c0_31, %c3, %c0_32], %49 {strides = array<i32>} : memref<8x6x128xf32, #tpu.memory_space<vmem>>, vector<8x1x128xf32>,
    %50 = vector.extract_strided_slice %33 {offsets = [32, 0], sizes = [8, 128], strides = [1, 1]} : vector<48x128xf32> to vector<8x128xf32>
    %c0_33 = arith.constant 0 : index
    %c4 = arith.constant 4 : index
    %c0_34 = arith.constant 0 : index
    %51 = vector.load %arg15[%c0_33, %c4, %c0_34] : memref<8x6x128xf32, #tpu.memory_space<vmem>>, vector<8x1x128xf32>
    %52 = vector.shape_cast %51 : vector<8x1x128xf32> to vector<8x128xf32>
    %53 = vector.shape_cast %50 : vector<8x128xf32> to vector<8x1x128xf32>
    tpu.vector_store %arg15[%c0_33, %c4, %c0_34], %53 {strides = array<i32>} : memref<8x6x128xf32, #tpu.memory_space<vmem>>, vector<8x1x128xf32>,
    %54 = vector.extract_strided_slice %33 {offsets = [40, 0], sizes = [8, 128], strides = [1, 1]} : vector<48x128xf32> to vector<8x128xf32>
    %c0_35 = arith.constant 0 : index
    %c5 = arith.constant 5 : index
    %c0_36 = arith.constant 0 : index
    %55 = vector.load %arg15[%c0_35, %c5, %c0_36] : memref<8x6x128xf32, #tpu.memory_space<vmem>>, vector<8x1x128xf32>
    %56 = vector.shape_cast %55 : vector<8x1x128xf32> to vector<8x128xf32>
    %57 = vector.shape_cast %54 : vector<8x128xf32> to vector<8x1x128xf32>
    tpu.vector_store %arg15[%c0_35, %c5, %c0_36], %57 {strides = array<i32>} : memref<8x6x128xf32, #tpu.memory_space<vmem>>, vector<8x1x128xf32>,
    %c0_37 = arith.constant 0 : index
    %c0_38 = arith.constant 0 : index
    %58 = vector.load %arg4[%c0_37, %c0_38] : memref<32x128xf32, #tpu.memory_space<vmem>>, vector<32x128xf32>
    %cst_39 = arith.constant 0.000000e+00 : f32
    %59 = vector.broadcast %cst_39 : f32 to vector<2x32xf32>
    %cst_40 = arith.constant 0.000000e+00 : f32
    %60 = vector.broadcast %cst_40 : f32 to vector<2x32xf32>
    %cst_41 = arith.constant 0xFF800000 : f32
    %61 = vector.broadcast %cst_41 : f32 to vector<2x32xf32>
    %c0_i32 = arith.constant 0 : i32
    %62 = arith.index_cast %c0_i32 : i32 to index
    %c0_42 = arith.constant 0 : index
    %c0_43 = arith.constant 0 : index
    %63 = vector.load %arg14[%62, %c0_42, %c0_43] : memref<16x2x128xf32, #tpu.memory_space<vmem>>, vector<1x2x128xf32>
    %64 = vector.shape_cast %63 : vector<1x2x128xf32> to vector<2x128xf32>
    %cst_44 = arith.constant dense<0.000000e+00> : vector<2x128xf32>
    %65 = tpu.matmul %59, %58, %cst_44 {dimension_numbers = #tpu.dot_dimension_numbers<[1], [0], [0], [1], [0, 0, 1, 1], [], []>} : vector<2x32xf32>, vector<32x128xf32>, vector<2x128xf32> -> vector<2x128xf32>
    %66 = arith.addf %64, %65 : vector<2x128xf32>
    %67 = vector.broadcast %8 : vector<1x128xf32> to vector<2x128xf32>
    %68 = arith.mulf %66, %67 : vector<2x128xf32>
    %69 = arith.negf %68 : vector<2x128xf32>
    %70 = math.exp %69 : vector<2x128xf32>
    %cst_45 = arith.constant 1.000000e+00 : f32
    %71 = vector.broadcast %cst_45 : f32 to vector<2x128xf32>
    %72 = arith.addf %71, %70 : vector<2x128xf32>
    %73 = arith.divf %71, %72 : vector<2x128xf32>
    %74 = vector.broadcast %8 : vector<1x128xf32> to vector<2x128xf32>
    %75 = arith.mulf %73, %74 : vector<2x128xf32>
    %76 = vector.broadcast %11 : vector<1x128xf32> to vector<2x128xf32>
    %77 = arith.addf %75, %76 : vector<2x128xf32>
    %78 = vector.extract_strided_slice %77 {offsets = [0, 0], sizes = [2, 32], strides = [1, 1]} : vector<2x128xf32> to vector<2x32xf32>
    %79 = vector.extract_strided_slice %77 {offsets = [0, 32], sizes = [2, 32], strides = [1, 1]} : vector<2x128xf32> to vector<2x32xf32>
    %80 = vector.extract_strided_slice %77 {offsets = [0, 64], sizes = [2, 32], strides = [1, 1]} : vector<2x128xf32> to vector<2x32xf32>
    %81 = vector.extract_strided_slice %77 {offsets = [0, 96], sizes = [2, 32], strides = [1, 1]} : vector<2x128xf32> to vector<2x32xf32>
    %82 = arith.mulf %79, %60 : vector<2x32xf32>
    %83 = arith.mulf %78, %80 : vector<2x32xf32>
    %84 = arith.addf %82, %83 : vector<2x32xf32>
    %85 = math.tanh %84 : vector<2x32xf32>
    %86 = arith.mulf %81, %85 : vector<2x32xf32>
    %87 = arith.index_cast %c0_i32 : i32 to index
    %c0_46 = arith.constant 0 : index
    %c0_47 = arith.constant 0 : index
    %88 = vector.load %arg16[%87, %c0_46, %c0_47] : memref<16x2x32xf32, #tpu.memory_space<vmem>>, vector<1x2x32xf32>
    %89 = vector.shape_cast %88 : vector<1x2x32xf32> to vector<2x32xf32>
    %90 = vector.shape_cast %86 : vector<2x32xf32> to vector<1x2x32xf32>
    tpu.vector_store %arg16[%87, %c0_46, %c0_47], %90 {strides = array<i32>} : memref<16x2x32xf32, #tpu.memory_space<vmem>>, vector<1x2x32xf32>,
    %91 = arith.maximumf %61, %86 : vector<2x32xf32>
    %c1_i32 = arith.constant 1 : i32
    %92 = arith.index_cast %c1_i32 : i32 to index
    %c0_48 = arith.constant 0 : index
    %c0_49 = arith.constant 0 : index
    %93 = vector.load %arg14[%92, %c0_48, %c0_49] : memref<16x2x128xf32, #tpu.memory_space<vmem>>, vector<1x2x128xf32>
    %94 = vector.shape_cast %93 : vector<1x2x128xf32> to vector<2x128xf32>
    %cst_50 = arith.constant dense<0.000000e+00> : vector<2x128xf32>
    %95 = tpu.matmul %86, %58, %cst_50 {dimension_numbers = #tpu.dot_dimension_numbers<[1], [0], [0], [1], [0, 0, 1, 1], [], []>} : vector<2x32xf32>, vector<32x128xf32>, vector<2x128xf32> -> vector<2x128xf32>
    %96 = arith.addf %94, %95 : vector<2x128xf32>
    %97 = vector.broadcast %8 : vector<1x128xf32> to vector<2x128xf32>
    %98 = arith.mulf %96, %97 : vector<2x128xf32>
    %99 = arith.negf %98 : vector<2x128xf32>
    %100 = math.exp %99 : vector<2x128xf32>
    %cst_51 = arith.constant 1.000000e+00 : f32
    %101 = vector.broadcast %cst_51 : f32 to vector<2x128xf32>
    %102 = arith.addf %101, %100 : vector<2x128xf32>
    %103 = arith.divf %101, %102 : vector<2x128xf32>
    %104 = vector.broadcast %8 : vector<1x128xf32> to vector<2x128xf32>
    %105 = arith.mulf %103, %104 : vector<2x128xf32>
    %106 = vector.broadcast %11 : vector<1x128xf32> to vector<2x128xf32>
    %107 = arith.addf %105, %106 : vector<2x128xf32>
    %108 = vector.extract_strided_slice %107 {offsets = [0, 0], sizes = [2, 32], strides = [1, 1]} : vector<2x128xf32> to vector<2x32xf32>
    %109 = vector.extract_strided_slice %107 {offsets = [0, 32], sizes = [2, 32], strides = [1, 1]} : vector<2x128xf32> to vector<2x32xf32>
    %110 = vector.extract_strided_slice %107 {offsets = [0, 64], sizes = [2, 32], strides = [1, 1]} : vector<2x128xf32> to vector<2x32xf32>
    %111 = vector.extract_strided_slice %107 {offsets = [0, 96], sizes = [2, 32], strides = [1, 1]} : vector<2x128xf32> to vector<2x32xf32>
    %112 = arith.mulf %109, %84 : vector<2x32xf32>
    %113 = arith.mulf %108, %110 : vector<2x32xf32>
    %114 = arith.addf %112, %113 : vector<2x32xf32>
    %115 = math.tanh %114 : vector<2x32xf32>
    %116 = arith.mulf %111, %115 : vector<2x32xf32>
    %117 = arith.index_cast %c1_i32 : i32 to index
    %c0_52 = arith.constant 0 : index
    %c0_53 = arith.constant 0 : index
    %118 = vector.load %arg16[%117, %c0_52, %c0_53] : memref<16x2x32xf32, #tpu.memory_space<vmem>>, vector<1x2x32xf32>
    %119 = vector.shape_cast %118 : vector<1x2x32xf32> to vector<2x32xf32>
    %120 = vector.shape_cast %116 : vector<2x32xf32> to vector<1x2x32xf32>
    tpu.vector_store %arg16[%117, %c0_52, %c0_53], %120 {strides = array<i32>} : memref<16x2x32xf32, #tpu.memory_space<vmem>>, vector<1x2x32xf32>,
    %121 = arith.maximumf %91, %116 : vector<2x32xf32>
    %c2_i32 = arith.constant 2 : i32
    %122 = arith.index_cast %c2_i32 : i32 to index
    %c0_54 = arith.constant 0 : index
    %c0_55 = arith.constant 0 : index
    %123 = vector.load %arg14[%122, %c0_54, %c0_55] : memref<16x2x128xf32, #tpu.memory_space<vmem>>, vector<1x2x128xf32>
    %124 = vector.shape_cast %123 : vector<1x2x128xf32> to vector<2x128xf32>
    %cst_56 = arith.constant dense<0.000000e+00> : vector<2x128xf32>
    %125 = tpu.matmul %116, %58, %cst_56 {dimension_numbers = #tpu.dot_dimension_numbers<[1], [0], [0], [1], [0, 0, 1, 1], [], []>} : vector<2x32xf32>, vector<32x128xf32>, vector<2x128xf32> -> vector<2x128xf32>
    %126 = arith.addf %124, %125 : vector<2x128xf32>
    %127 = vector.broadcast %8 : vector<1x128xf32> to vector<2x128xf32>
    %128 = arith.mulf %126, %127 : vector<2x128xf32>
    %129 = arith.negf %128 : vector<2x128xf32>
    %130 = math.exp %129 : vector<2x128xf32>
    %cst_57 = arith.constant 1.000000e+00 : f32
    %131 = vector.broadcast %cst_57 : f32 to vector<2x128xf32>
    %132 = arith.addf %131, %130 : vector<2x128xf32>
    %133 = arith.divf %131, %132 : vector<2x128xf32>
    %134 = vector.broadcast %8 : vector<1x128xf32> to vector<2x128xf32>
    %135 = arith.mulf %133, %134 : vector<2x128xf32>
    %136 = vector.broadcast %11 : vector<1x128xf32> to vector<2x128xf32>
    %137 = arith.addf %135, %136 : vector<2x128xf32>
    %138 = vector.extract_strided_slice %137 {offsets = [0, 0], sizes = [2, 32], strides = [1, 1]} : vector<2x128xf32> to vector<2x32xf32>
    %139 = vector.extract_strided_slice %137 {offsets = [0, 32], sizes = [2, 32], strides = [1, 1]} : vector<2x128xf32> to vector<2x32xf32>
    %140 = vector.extract_strided_slice %137 {offsets = [0, 64], sizes = [2, 32], strides = [1, 1]} : vector<2x128xf32> to vector<2x32xf32>
    %141 = vector.extract_strided_slice %137 {offsets = [0, 96], sizes = [2, 32], strides = [1, 1]} : vector<2x128xf32> to vector<2x32xf32>
    %142 = arith.mulf %139, %114 : vector<2x32xf32>
    %143 = arith.mulf %138, %140 : vector<2x32xf32>
    %144 = arith.addf %142, %143 : vector<2x32xf32>
    %145 = math.tanh %144 : vector<2x32xf32>
    %146 = arith.mulf %141, %145 : vector<2x32xf32>
    %147 = arith.index_cast %c2_i32 : i32 to index
    %c0_58 = arith.constant 0 : index
    %c0_59 = arith.constant 0 : index
    %148 = vector.load %arg16[%147, %c0_58, %c0_59] : memref<16x2x32xf32, #tpu.memory_space<vmem>>, vector<1x2x32xf32>
    %149 = vector.shape_cast %148 : vector<1x2x32xf32> to vector<2x32xf32>
    %150 = vector.shape_cast %146 : vector<2x32xf32> to vector<1x2x32xf32>
    tpu.vector_store %arg16[%147, %c0_58, %c0_59], %150 {strides = array<i32>} : memref<16x2x32xf32, #tpu.memory_space<vmem>>, vector<1x2x32xf32>,
    %151 = arith.maximumf %121, %146 : vector<2x32xf32>
    %c3_i32 = arith.constant 3 : i32
    %152 = arith.index_cast %c3_i32 : i32 to index
    %c0_60 = arith.constant 0 : index
    %c0_61 = arith.constant 0 : index
    %153 = vector.load %arg14[%152, %c0_60, %c0_61] : memref<16x2x128xf32, #tpu.memory_space<vmem>>, vector<1x2x128xf32>
    %154 = vector.shape_cast %153 : vector<1x2x128xf32> to vector<2x128xf32>
    %cst_62 = arith.constant dense<0.000000e+00> : vector<2x128xf32>
    %155 = tpu.matmul %146, %58, %cst_62 {dimension_numbers = #tpu.dot_dimension_numbers<[1], [0], [0], [1], [0, 0, 1, 1], [], []>} : vector<2x32xf32>, vector<32x128xf32>, vector<2x128xf32> -> vector<2x128xf32>
    %156 = arith.addf %154, %155 : vector<2x128xf32>
    %157 = vector.broadcast %8 : vector<1x128xf32> to vector<2x128xf32>
    %158 = arith.mulf %156, %157 : vector<2x128xf32>
    %159 = arith.negf %158 : vector<2x128xf32>
    %160 = math.exp %159 : vector<2x128xf32>
    %cst_63 = arith.constant 1.000000e+00 : f32
    %161 = vector.broadcast %cst_63 : f32 to vector<2x128xf32>
    %162 = arith.addf %161, %160 : vector<2x128xf32>
    %163 = arith.divf %161, %162 : vector<2x128xf32>
    %164 = vector.broadcast %8 : vector<1x128xf32> to vector<2x128xf32>
    %165 = arith.mulf %163, %164 : vector<2x128xf32>
    %166 = vector.broadcast %11 : vector<1x128xf32> to vector<2x128xf32>
    %167 = arith.addf %165, %166 : vector<2x128xf32>
    %168 = vector.extract_strided_slice %167 {offsets = [0, 0], sizes = [2, 32], strides = [1, 1]} : vector<2x128xf32> to vector<2x32xf32>
    %169 = vector.extract_strided_slice %167 {offsets = [0, 32], sizes = [2, 32], strides = [1, 1]} : vector<2x128xf32> to vector<2x32xf32>
    %170 = vector.extract_strided_slice %167 {offsets = [0, 64], sizes = [2, 32], strides = [1, 1]} : vector<2x128xf32> to vector<2x32xf32>
    %171 = vector.extract_strided_slice %167 {offsets = [0, 96], sizes = [2, 32], strides = [1, 1]} : vector<2x128xf32> to vector<2x32xf32>
    %172 = arith.mulf %169, %144 : vector<2x32xf32>
    %173 = arith.mulf %168, %170 : vector<2x32xf32>
    %174 = arith.addf %172, %173 : vector<2x32xf32>
    %175 = math.tanh %174 : vector<2x32xf32>
    %176 = arith.mulf %171, %175 : vector<2x32xf32>
    %177 = arith.index_cast %c3_i32 : i32 to index
    %c0_64 = arith.constant 0 : index
    %c0_65 = arith.constant 0 : index
    %178 = vector.load %arg16[%177, %c0_64, %c0_65] : memref<16x2x32xf32, #tpu.memory_space<vmem>>, vector<1x2x32xf32>
    %179 = vector.shape_cast %178 : vector<1x2x32xf32> to vector<2x32xf32>
    %180 = vector.shape_cast %176 : vector<2x32xf32> to vector<1x2x32xf32>
    tpu.vector_store %arg16[%177, %c0_64, %c0_65], %180 {strides = array<i32>} : memref<16x2x32xf32, #tpu.memory_space<vmem>>, vector<1x2x32xf32>,
    %181 = arith.maximumf %151, %176 : vector<2x32xf32>
    %c4_i32 = arith.constant 4 : i32
    %182 = arith.index_cast %c4_i32 : i32 to index
    %c0_66 = arith.constant 0 : index
    %c0_67 = arith.constant 0 : index
    %183 = vector.load %arg14[%182, %c0_66, %c0_67] : memref<16x2x128xf32, #tpu.memory_space<vmem>>, vector<1x2x128xf32>
    %184 = vector.shape_cast %183 : vector<1x2x128xf32> to vector<2x128xf32>
    %cst_68 = arith.constant dense<0.000000e+00> : vector<2x128xf32>
    %185 = tpu.matmul %176, %58, %cst_68 {dimension_numbers = #tpu.dot_dimension_numbers<[1], [0], [0], [1], [0, 0, 1, 1], [], []>} : vector<2x32xf32>, vector<32x128xf32>, vector<2x128xf32> -> vector<2x128xf32>
    %186 = arith.addf %184, %185 : vector<2x128xf32>
    %187 = vector.broadcast %8 : vector<1x128xf32> to vector<2x128xf32>
    %188 = arith.mulf %186, %187 : vector<2x128xf32>
    %189 = arith.negf %188 : vector<2x128xf32>
    %190 = math.exp %189 : vector<2x128xf32>
    %cst_69 = arith.constant 1.000000e+00 : f32
    %191 = vector.broadcast %cst_69 : f32 to vector<2x128xf32>
    %192 = arith.addf %191, %190 : vector<2x128xf32>
    %193 = arith.divf %191, %192 : vector<2x128xf32>
    %194 = vector.broadcast %8 : vector<1x128xf32> to vector<2x128xf32>
    %195 = arith.mulf %193, %194 : vector<2x128xf32>
    %196 = vector.broadcast %11 : vector<1x128xf32> to vector<2x128xf32>
    %197 = arith.addf %195, %196 : vector<2x128xf32>
    %198 = vector.extract_strided_slice %197 {offsets = [0, 0], sizes = [2, 32], strides = [1, 1]} : vector<2x128xf32> to vector<2x32xf32>
    %199 = vector.extract_strided_slice %197 {offsets = [0, 32], sizes = [2, 32], strides = [1, 1]} : vector<2x128xf32> to vector<2x32xf32>
    %200 = vector.extract_strided_slice %197 {offsets = [0, 64], sizes = [2, 32], strides = [1, 1]} : vector<2x128xf32> to vector<2x32xf32>
    %201 = vector.extract_strided_slice %197 {offsets = [0, 96], sizes = [2, 32], strides = [1, 1]} : vector<2x128xf32> to vector<2x32xf32>
    %202 = arith.mulf %199, %174 : vector<2x32xf32>
    %203 = arith.mulf %198, %200 : vector<2x32xf32>
    %204 = arith.addf %202, %203 : vector<2x32xf32>
    %205 = math.tanh %204 : vector<2x32xf32>
    %206 = arith.mulf %201, %205 : vector<2x32xf32>
    %207 = arith.index_cast %c4_i32 : i32 to index
    %c0_70 = arith.constant 0 : index
    %c0_71 = arith.constant 0 : index
    %208 = vector.load %arg16[%207, %c0_70, %c0_71] : memref<16x2x32xf32, #tpu.memory_space<vmem>>, vector<1x2x32xf32>
    %209 = vector.shape_cast %208 : vector<1x2x32xf32> to vector<2x32xf32>
    %210 = vector.shape_cast %206 : vector<2x32xf32> to vector<1x2x32xf32>
    tpu.vector_store %arg16[%207, %c0_70, %c0_71], %210 {strides = array<i32>} : memref<16x2x32xf32, #tpu.memory_space<vmem>>, vector<1x2x32xf32>,
    %211 = arith.maximumf %181, %206 : vector<2x32xf32>
    %c5_i32 = arith.constant 5 : i32
    %212 = arith.index_cast %c5_i32 : i32 to index
    %c0_72 = arith.constant 0 : index
    %c0_73 = arith.constant 0 : index
    %213 = vector.load %arg14[%212, %c0_72, %c0_73] : memref<16x2x128xf32, #tpu.memory_space<vmem>>, vector<1x2x128xf32>
    %214 = vector.shape_cast %213 : vector<1x2x128xf32> to vector<2x128xf32>
    %cst_74 = arith.constant dense<0.000000e+00> : vector<2x128xf32>
    %215 = tpu.matmul %206, %58, %cst_74 {dimension_numbers = #tpu.dot_dimension_numbers<[1], [0], [0], [1], [0, 0, 1, 1], [], []>} : vector<2x32xf32>, vector<32x128xf32>, vector<2x128xf32> -> vector<2x128xf32>
    %216 = arith.addf %214, %215 : vector<2x128xf32>
    %217 = vector.broadcast %8 : vector<1x128xf32> to vector<2x128xf32>
    %218 = arith.mulf %216, %217 : vector<2x128xf32>
    %219 = arith.negf %218 : vector<2x128xf32>
    %220 = math.exp %219 : vector<2x128xf32>
    %cst_75 = arith.constant 1.000000e+00 : f32
    %221 = vector.broadcast %cst_75 : f32 to vector<2x128xf32>
    %222 = arith.addf %221, %220 : vector<2x128xf32>
    %223 = arith.divf %221, %222 : vector<2x128xf32>
    %224 = vector.broadcast %8 : vector<1x128xf32> to vector<2x128xf32>
    %225 = arith.mulf %223, %224 : vector<2x128xf32>
    %226 = vector.broadcast %11 : vector<1x128xf32> to vector<2x128xf32>
    %227 = arith.addf %225, %226 : vector<2x128xf32>
    %228 = vector.extract_strided_slice %227 {offsets = [0, 0], sizes = [2, 32], strides = [1, 1]} : vector<2x128xf32> to vector<2x32xf32>
    %229 = vector.extract_strided_slice %227 {offsets = [0, 32], sizes = [2, 32], strides = [1, 1]} : vector<2x128xf32> to vector<2x32xf32>
    %230 = vector.extract_strided_slice %227 {offsets = [0, 64], sizes = [2, 32], strides = [1, 1]} : vector<2x128xf32> to vector<2x32xf32>
    %231 = vector.extract_strided_slice %227 {offsets = [0, 96], sizes = [2, 32], strides = [1, 1]} : vector<2x128xf32> to vector<2x32xf32>
    %232 = arith.mulf %229, %204 : vector<2x32xf32>
    %233 = arith.mulf %228, %230 : vector<2x32xf32>
    %234 = arith.addf %232, %233 : vector<2x32xf32>
    %235 = math.tanh %234 : vector<2x32xf32>
    %236 = arith.mulf %231, %235 : vector<2x32xf32>
    %237 = arith.index_cast %c5_i32 : i32 to index
    %c0_76 = arith.constant 0 : index
    %c0_77 = arith.constant 0 : index
    %238 = vector.load %arg16[%237, %c0_76, %c0_77] : memref<16x2x32xf32, #tpu.memory_space<vmem>>, vector<1x2x32xf32>
    %239 = vector.shape_cast %238 : vector<1x2x32xf32> to vector<2x32xf32>
    %240 = vector.shape_cast %236 : vector<2x32xf32> to vector<1x2x32xf32>
    tpu.vector_store %arg16[%237, %c0_76, %c0_77], %240 {strides = array<i32>} : memref<16x2x32xf32, #tpu.memory_space<vmem>>, vector<1x2x32xf32>,
    %241 = arith.maximumf %211, %236 : vector<2x32xf32>
    %c6_i32 = arith.constant 6 : i32
    %242 = arith.index_cast %c6_i32 : i32 to index
    %c0_78 = arith.constant 0 : index
    %c0_79 = arith.constant 0 : index
    %243 = vector.load %arg14[%242, %c0_78, %c0_79] : memref<16x2x128xf32, #tpu.memory_space<vmem>>, vector<1x2x128xf32>
    %244 = vector.shape_cast %243 : vector<1x2x128xf32> to vector<2x128xf32>
    %cst_80 = arith.constant dense<0.000000e+00> : vector<2x128xf32>
    %245 = tpu.matmul %236, %58, %cst_80 {dimension_numbers = #tpu.dot_dimension_numbers<[1], [0], [0], [1], [0, 0, 1, 1], [], []>} : vector<2x32xf32>, vector<32x128xf32>, vector<2x128xf32> -> vector<2x128xf32>
    %246 = arith.addf %244, %245 : vector<2x128xf32>
    %247 = vector.broadcast %8 : vector<1x128xf32> to vector<2x128xf32>
    %248 = arith.mulf %246, %247 : vector<2x128xf32>
    %249 = arith.negf %248 : vector<2x128xf32>
    %250 = math.exp %249 : vector<2x128xf32>
    %cst_81 = arith.constant 1.000000e+00 : f32
    %251 = vector.broadcast %cst_81 : f32 to vector<2x128xf32>
    %252 = arith.addf %251, %250 : vector<2x128xf32>
    %253 = arith.divf %251, %252 : vector<2x128xf32>
    %254 = vector.broadcast %8 : vector<1x128xf32> to vector<2x128xf32>
    %255 = arith.mulf %253, %254 : vector<2x128xf32>
    %256 = vector.broadcast %11 : vector<1x128xf32> to vector<2x128xf32>
    %257 = arith.addf %255, %256 : vector<2x128xf32>
    %258 = vector.extract_strided_slice %257 {offsets = [0, 0], sizes = [2, 32], strides = [1, 1]} : vector<2x128xf32> to vector<2x32xf32>
    %259 = vector.extract_strided_slice %257 {offsets = [0, 32], sizes = [2, 32], strides = [1, 1]} : vector<2x128xf32> to vector<2x32xf32>
    %260 = vector.extract_strided_slice %257 {offsets = [0, 64], sizes = [2, 32], strides = [1, 1]} : vector<2x128xf32> to vector<2x32xf32>
    %261 = vector.extract_strided_slice %257 {offsets = [0, 96], sizes = [2, 32], strides = [1, 1]} : vector<2x128xf32> to vector<2x32xf32>
    %262 = arith.mulf %259, %234 : vector<2x32xf32>
    %263 = arith.mulf %258, %260 : vector<2x32xf32>
    %264 = arith.addf %262, %263 : vector<2x32xf32>
    %265 = math.tanh %264 : vector<2x32xf32>
    %266 = arith.mulf %261, %265 : vector<2x32xf32>
    %267 = arith.index_cast %c6_i32 : i32 to index
    %c0_82 = arith.constant 0 : index
    %c0_83 = arith.constant 0 : index
    %268 = vector.load %arg16[%267, %c0_82, %c0_83] : memref<16x2x32xf32, #tpu.memory_space<vmem>>, vector<1x2x32xf32>
    %269 = vector.shape_cast %268 : vector<1x2x32xf32> to vector<2x32xf32>
    %270 = vector.shape_cast %266 : vector<2x32xf32> to vector<1x2x32xf32>
    tpu.vector_store %arg16[%267, %c0_82, %c0_83], %270 {strides = array<i32>} : memref<16x2x32xf32, #tpu.memory_space<vmem>>, vector<1x2x32xf32>,
    %271 = arith.maximumf %241, %266 : vector<2x32xf32>
    %c7_i32 = arith.constant 7 : i32
    %272 = arith.index_cast %c7_i32 : i32 to index
    %c0_84 = arith.constant 0 : index
    %c0_85 = arith.constant 0 : index
    %273 = vector.load %arg14[%272, %c0_84, %c0_85] : memref<16x2x128xf32, #tpu.memory_space<vmem>>, vector<1x2x128xf32>
    %274 = vector.shape_cast %273 : vector<1x2x128xf32> to vector<2x128xf32>
    %cst_86 = arith.constant dense<0.000000e+00> : vector<2x128xf32>
    %275 = tpu.matmul %266, %58, %cst_86 {dimension_numbers = #tpu.dot_dimension_numbers<[1], [0], [0], [1], [0, 0, 1, 1], [], []>} : vector<2x32xf32>, vector<32x128xf32>, vector<2x128xf32> -> vector<2x128xf32>
    %276 = arith.addf %274, %275 : vector<2x128xf32>
    %277 = vector.broadcast %8 : vector<1x128xf32> to vector<2x128xf32>
    %278 = arith.mulf %276, %277 : vector<2x128xf32>
    %279 = arith.negf %278 : vector<2x128xf32>
    %280 = math.exp %279 : vector<2x128xf32>
    %cst_87 = arith.constant 1.000000e+00 : f32
    %281 = vector.broadcast %cst_87 : f32 to vector<2x128xf32>
    %282 = arith.addf %281, %280 : vector<2x128xf32>
    %283 = arith.divf %281, %282 : vector<2x128xf32>
    %284 = vector.broadcast %8 : vector<1x128xf32> to vector<2x128xf32>
    %285 = arith.mulf %283, %284 : vector<2x128xf32>
    %286 = vector.broadcast %11 : vector<1x128xf32> to vector<2x128xf32>
    %287 = arith.addf %285, %286 : vector<2x128xf32>
    %288 = vector.extract_strided_slice %287 {offsets = [0, 0], sizes = [2, 32], strides = [1, 1]} : vector<2x128xf32> to vector<2x32xf32>
    %289 = vector.extract_strided_slice %287 {offsets = [0, 32], sizes = [2, 32], strides = [1, 1]} : vector<2x128xf32> to vector<2x32xf32>
    %290 = vector.extract_strided_slice %287 {offsets = [0, 64], sizes = [2, 32], strides = [1, 1]} : vector<2x128xf32> to vector<2x32xf32>
    %291 = vector.extract_strided_slice %287 {offsets = [0, 96], sizes = [2, 32], strides = [1, 1]} : vector<2x128xf32> to vector<2x32xf32>
    %292 = arith.mulf %289, %264 : vector<2x32xf32>
    %293 = arith.mulf %288, %290 : vector<2x32xf32>
    %294 = arith.addf %292, %293 : vector<2x32xf32>
    %295 = math.tanh %294 : vector<2x32xf32>
    %296 = arith.mulf %291, %295 : vector<2x32xf32>
    %297 = arith.index_cast %c7_i32 : i32 to index
    %c0_88 = arith.constant 0 : index
    %c0_89 = arith.constant 0 : index
    %298 = vector.load %arg16[%297, %c0_88, %c0_89] : memref<16x2x32xf32, #tpu.memory_space<vmem>>, vector<1x2x32xf32>
    %299 = vector.shape_cast %298 : vector<1x2x32xf32> to vector<2x32xf32>
    %300 = vector.shape_cast %296 : vector<2x32xf32> to vector<1x2x32xf32>
    tpu.vector_store %arg16[%297, %c0_88, %c0_89], %300 {strides = array<i32>} : memref<16x2x32xf32, #tpu.memory_space<vmem>>, vector<1x2x32xf32>,
    %301 = arith.maximumf %271, %296 : vector<2x32xf32>
    %c8_i32 = arith.constant 8 : i32
    %302 = arith.index_cast %c8_i32 : i32 to index
    %c0_90 = arith.constant 0 : index
    %c0_91 = arith.constant 0 : index
    %303 = vector.load %arg14[%302, %c0_90, %c0_91] : memref<16x2x128xf32, #tpu.memory_space<vmem>>, vector<1x2x128xf32>
    %304 = vector.shape_cast %303 : vector<1x2x128xf32> to vector<2x128xf32>
    %cst_92 = arith.constant dense<0.000000e+00> : vector<2x128xf32>
    %305 = tpu.matmul %296, %58, %cst_92 {dimension_numbers = #tpu.dot_dimension_numbers<[1], [0], [0], [1], [0, 0, 1, 1], [], []>} : vector<2x32xf32>, vector<32x128xf32>, vector<2x128xf32> -> vector<2x128xf32>
    %306 = arith.addf %304, %305 : vector<2x128xf32>
    %307 = vector.broadcast %8 : vector<1x128xf32> to vector<2x128xf32>
    %308 = arith.mulf %306, %307 : vector<2x128xf32>
    %309 = arith.negf %308 : vector<2x128xf32>
    %310 = math.exp %309 : vector<2x128xf32>
    %cst_93 = arith.constant 1.000000e+00 : f32
    %311 = vector.broadcast %cst_93 : f32 to vector<2x128xf32>
    %312 = arith.addf %311, %310 : vector<2x128xf32>
    %313 = arith.divf %311, %312 : vector<2x128xf32>
    %314 = vector.broadcast %8 : vector<1x128xf32> to vector<2x128xf32>
    %315 = arith.mulf %313, %314 : vector<2x128xf32>
    %316 = vector.broadcast %11 : vector<1x128xf32> to vector<2x128xf32>
    %317 = arith.addf %315, %316 : vector<2x128xf32>
    %318 = vector.extract_strided_slice %317 {offsets = [0, 0], sizes = [2, 32], strides = [1, 1]} : vector<2x128xf32> to vector<2x32xf32>
    %319 = vector.extract_strided_slice %317 {offsets = [0, 32], sizes = [2, 32], strides = [1, 1]} : vector<2x128xf32> to vector<2x32xf32>
    %320 = vector.extract_strided_slice %317 {offsets = [0, 64], sizes = [2, 32], strides = [1, 1]} : vector<2x128xf32> to vector<2x32xf32>
    %321 = vector.extract_strided_slice %317 {offsets = [0, 96], sizes = [2, 32], strides = [1, 1]} : vector<2x128xf32> to vector<2x32xf32>
    %322 = arith.mulf %319, %294 : vector<2x32xf32>
    %323 = arith.mulf %318, %320 : vector<2x32xf32>
    %324 = arith.addf %322, %323 : vector<2x32xf32>
    %325 = math.tanh %324 : vector<2x32xf32>
    %326 = arith.mulf %321, %325 : vector<2x32xf32>
    %327 = arith.index_cast %c8_i32 : i32 to index
    %c0_94 = arith.constant 0 : index
    %c0_95 = arith.constant 0 : index
    %328 = vector.load %arg16[%327, %c0_94, %c0_95] : memref<16x2x32xf32, #tpu.memory_space<vmem>>, vector<1x2x32xf32>
    %329 = vector.shape_cast %328 : vector<1x2x32xf32> to vector<2x32xf32>
    %330 = vector.shape_cast %326 : vector<2x32xf32> to vector<1x2x32xf32>
    tpu.vector_store %arg16[%327, %c0_94, %c0_95], %330 {strides = array<i32>} : memref<16x2x32xf32, #tpu.memory_space<vmem>>, vector<1x2x32xf32>,
    %331 = arith.maximumf %301, %326 : vector<2x32xf32>
    %c9_i32 = arith.constant 9 : i32
    %332 = arith.index_cast %c9_i32 : i32 to index
    %c0_96 = arith.constant 0 : index
    %c0_97 = arith.constant 0 : index
    %333 = vector.load %arg14[%332, %c0_96, %c0_97] : memref<16x2x128xf32, #tpu.memory_space<vmem>>, vector<1x2x128xf32>
    %334 = vector.shape_cast %333 : vector<1x2x128xf32> to vector<2x128xf32>
    %cst_98 = arith.constant dense<0.000000e+00> : vector<2x128xf32>
    %335 = tpu.matmul %326, %58, %cst_98 {dimension_numbers = #tpu.dot_dimension_numbers<[1], [0], [0], [1], [0, 0, 1, 1], [], []>} : vector<2x32xf32>, vector<32x128xf32>, vector<2x128xf32> -> vector<2x128xf32>
    %336 = arith.addf %334, %335 : vector<2x128xf32>
    %337 = vector.broadcast %8 : vector<1x128xf32> to vector<2x128xf32>
    %338 = arith.mulf %336, %337 : vector<2x128xf32>
    %339 = arith.negf %338 : vector<2x128xf32>
    %340 = math.exp %339 : vector<2x128xf32>
    %cst_99 = arith.constant 1.000000e+00 : f32
    %341 = vector.broadcast %cst_99 : f32 to vector<2x128xf32>
    %342 = arith.addf %341, %340 : vector<2x128xf32>
    %343 = arith.divf %341, %342 : vector<2x128xf32>
    %344 = vector.broadcast %8 : vector<1x128xf32> to vector<2x128xf32>
    %345 = arith.mulf %343, %344 : vector<2x128xf32>
    %346 = vector.broadcast %11 : vector<1x128xf32> to vector<2x128xf32>
    %347 = arith.addf %345, %346 : vector<2x128xf32>
    %348 = vector.extract_strided_slice %347 {offsets = [0, 0], sizes = [2, 32], strides = [1, 1]} : vector<2x128xf32> to vector<2x32xf32>
    %349 = vector.extract_strided_slice %347 {offsets = [0, 32], sizes = [2, 32], strides = [1, 1]} : vector<2x128xf32> to vector<2x32xf32>
    %350 = vector.extract_strided_slice %347 {offsets = [0, 64], sizes = [2, 32], strides = [1, 1]} : vector<2x128xf32> to vector<2x32xf32>
    %351 = vector.extract_strided_slice %347 {offsets = [0, 96], sizes = [2, 32], strides = [1, 1]} : vector<2x128xf32> to vector<2x32xf32>
    %352 = arith.mulf %349, %324 : vector<2x32xf32>
    %353 = arith.mulf %348, %350 : vector<2x32xf32>
    %354 = arith.addf %352, %353 : vector<2x32xf32>
    %355 = math.tanh %354 : vector<2x32xf32>
    %356 = arith.mulf %351, %355 : vector<2x32xf32>
    %357 = arith.index_cast %c9_i32 : i32 to index
    %c0_100 = arith.constant 0 : index
    %c0_101 = arith.constant 0 : index
    %358 = vector.load %arg16[%357, %c0_100, %c0_101] : memref<16x2x32xf32, #tpu.memory_space<vmem>>, vector<1x2x32xf32>
    %359 = vector.shape_cast %358 : vector<1x2x32xf32> to vector<2x32xf32>
    %360 = vector.shape_cast %356 : vector<2x32xf32> to vector<1x2x32xf32>
    tpu.vector_store %arg16[%357, %c0_100, %c0_101], %360 {strides = array<i32>} : memref<16x2x32xf32, #tpu.memory_space<vmem>>, vector<1x2x32xf32>,
    %361 = arith.maximumf %331, %356 : vector<2x32xf32>
    %c10_i32 = arith.constant 10 : i32
    %362 = arith.index_cast %c10_i32 : i32 to index
    %c0_102 = arith.constant 0 : index
    %c0_103 = arith.constant 0 : index
    %363 = vector.load %arg14[%362, %c0_102, %c0_103] : memref<16x2x128xf32, #tpu.memory_space<vmem>>, vector<1x2x128xf32>
    %364 = vector.shape_cast %363 : vector<1x2x128xf32> to vector<2x128xf32>
    %cst_104 = arith.constant dense<0.000000e+00> : vector<2x128xf32>
    %365 = tpu.matmul %356, %58, %cst_104 {dimension_numbers = #tpu.dot_dimension_numbers<[1], [0], [0], [1], [0, 0, 1, 1], [], []>} : vector<2x32xf32>, vector<32x128xf32>, vector<2x128xf32> -> vector<2x128xf32>
    %366 = arith.addf %364, %365 : vector<2x128xf32>
    %367 = vector.broadcast %8 : vector<1x128xf32> to vector<2x128xf32>
    %368 = arith.mulf %366, %367 : vector<2x128xf32>
    %369 = arith.negf %368 : vector<2x128xf32>
    %370 = math.exp %369 : vector<2x128xf32>
    %cst_105 = arith.constant 1.000000e+00 : f32
    %371 = vector.broadcast %cst_105 : f32 to vector<2x128xf32>
    %372 = arith.addf %371, %370 : vector<2x128xf32>
    %373 = arith.divf %371, %372 : vector<2x128xf32>
    %374 = vector.broadcast %8 : vector<1x128xf32> to vector<2x128xf32>
    %375 = arith.mulf %373, %374 : vector<2x128xf32>
    %376 = vector.broadcast %11 : vector<1x128xf32> to vector<2x128xf32>
    %377 = arith.addf %375, %376 : vector<2x128xf32>
    %378 = vector.extract_strided_slice %377 {offsets = [0, 0], sizes = [2, 32], strides = [1, 1]} : vector<2x128xf32> to vector<2x32xf32>
    %379 = vector.extract_strided_slice %377 {offsets = [0, 32], sizes = [2, 32], strides = [1, 1]} : vector<2x128xf32> to vector<2x32xf32>
    %380 = vector.extract_strided_slice %377 {offsets = [0, 64], sizes = [2, 32], strides = [1, 1]} : vector<2x128xf32> to vector<2x32xf32>
    %381 = vector.extract_strided_slice %377 {offsets = [0, 96], sizes = [2, 32], strides = [1, 1]} : vector<2x128xf32> to vector<2x32xf32>
    %382 = arith.mulf %379, %354 : vector<2x32xf32>
    %383 = arith.mulf %378, %380 : vector<2x32xf32>
    %384 = arith.addf %382, %383 : vector<2x32xf32>
    %385 = math.tanh %384 : vector<2x32xf32>
    %386 = arith.mulf %381, %385 : vector<2x32xf32>
    %387 = arith.index_cast %c10_i32 : i32 to index
    %c0_106 = arith.constant 0 : index
    %c0_107 = arith.constant 0 : index
    %388 = vector.load %arg16[%387, %c0_106, %c0_107] : memref<16x2x32xf32, #tpu.memory_space<vmem>>, vector<1x2x32xf32>
    %389 = vector.shape_cast %388 : vector<1x2x32xf32> to vector<2x32xf32>
    %390 = vector.shape_cast %386 : vector<2x32xf32> to vector<1x2x32xf32>
    tpu.vector_store %arg16[%387, %c0_106, %c0_107], %390 {strides = array<i32>} : memref<16x2x32xf32, #tpu.memory_space<vmem>>, vector<1x2x32xf32>,
    %391 = arith.maximumf %361, %386 : vector<2x32xf32>
    %c11_i32 = arith.constant 11 : i32
    %392 = arith.index_cast %c11_i32 : i32 to index
    %c0_108 = arith.constant 0 : index
    %c0_109 = arith.constant 0 : index
    %393 = vector.load %arg14[%392, %c0_108, %c0_109] : memref<16x2x128xf32, #tpu.memory_space<vmem>>, vector<1x2x128xf32>
    %394 = vector.shape_cast %393 : vector<1x2x128xf32> to vector<2x128xf32>
    %cst_110 = arith.constant dense<0.000000e+00> : vector<2x128xf32>
    %395 = tpu.matmul %386, %58, %cst_110 {dimension_numbers = #tpu.dot_dimension_numbers<[1], [0], [0], [1], [0, 0, 1, 1], [], []>} : vector<2x32xf32>, vector<32x128xf32>, vector<2x128xf32> -> vector<2x128xf32>
    %396 = arith.addf %394, %395 : vector<2x128xf32>
    %397 = vector.broadcast %8 : vector<1x128xf32> to vector<2x128xf32>
    %398 = arith.mulf %396, %397 : vector<2x128xf32>
    %399 = arith.negf %398 : vector<2x128xf32>
    %400 = math.exp %399 : vector<2x128xf32>
    %cst_111 = arith.constant 1.000000e+00 : f32
    %401 = vector.broadcast %cst_111 : f32 to vector<2x128xf32>
    %402 = arith.addf %401, %400 : vector<2x128xf32>
    %403 = arith.divf %401, %402 : vector<2x128xf32>
    %404 = vector.broadcast %8 : vector<1x128xf32> to vector<2x128xf32>
    %405 = arith.mulf %403, %404 : vector<2x128xf32>
    %406 = vector.broadcast %11 : vector<1x128xf32> to vector<2x128xf32>
    %407 = arith.addf %405, %406 : vector<2x128xf32>
    %408 = vector.extract_strided_slice %407 {offsets = [0, 0], sizes = [2, 32], strides = [1, 1]} : vector<2x128xf32> to vector<2x32xf32>
    %409 = vector.extract_strided_slice %407 {offsets = [0, 32], sizes = [2, 32], strides = [1, 1]} : vector<2x128xf32> to vector<2x32xf32>
    %410 = vector.extract_strided_slice %407 {offsets = [0, 64], sizes = [2, 32], strides = [1, 1]} : vector<2x128xf32> to vector<2x32xf32>
    %411 = vector.extract_strided_slice %407 {offsets = [0, 96], sizes = [2, 32], strides = [1, 1]} : vector<2x128xf32> to vector<2x32xf32>
    %412 = arith.mulf %409, %384 : vector<2x32xf32>
    %413 = arith.mulf %408, %410 : vector<2x32xf32>
    %414 = arith.addf %412, %413 : vector<2x32xf32>
    %415 = math.tanh %414 : vector<2x32xf32>
    %416 = arith.mulf %411, %415 : vector<2x32xf32>
    %417 = arith.index_cast %c11_i32 : i32 to index
    %c0_112 = arith.constant 0 : index
    %c0_113 = arith.constant 0 : index
    %418 = vector.load %arg16[%417, %c0_112, %c0_113] : memref<16x2x32xf32, #tpu.memory_space<vmem>>, vector<1x2x32xf32>
    %419 = vector.shape_cast %418 : vector<1x2x32xf32> to vector<2x32xf32>
    %420 = vector.shape_cast %416 : vector<2x32xf32> to vector<1x2x32xf32>
    tpu.vector_store %arg16[%417, %c0_112, %c0_113], %420 {strides = array<i32>} : memref<16x2x32xf32, #tpu.memory_space<vmem>>, vector<1x2x32xf32>,
    %421 = arith.maximumf %391, %416 : vector<2x32xf32>
    %c12_i32 = arith.constant 12 : i32
    %422 = arith.index_cast %c12_i32 : i32 to index
    %c0_114 = arith.constant 0 : index
    %c0_115 = arith.constant 0 : index
    %423 = vector.load %arg14[%422, %c0_114, %c0_115] : memref<16x2x128xf32, #tpu.memory_space<vmem>>, vector<1x2x128xf32>
    %424 = vector.shape_cast %423 : vector<1x2x128xf32> to vector<2x128xf32>
    %cst_116 = arith.constant dense<0.000000e+00> : vector<2x128xf32>
    %425 = tpu.matmul %416, %58, %cst_116 {dimension_numbers = #tpu.dot_dimension_numbers<[1], [0], [0], [1], [0, 0, 1, 1], [], []>} : vector<2x32xf32>, vector<32x128xf32>, vector<2x128xf32> -> vector<2x128xf32>
    %426 = arith.addf %424, %425 : vector<2x128xf32>
    %427 = vector.broadcast %8 : vector<1x128xf32> to vector<2x128xf32>
    %428 = arith.mulf %426, %427 : vector<2x128xf32>
    %429 = arith.negf %428 : vector<2x128xf32>
    %430 = math.exp %429 : vector<2x128xf32>
    %cst_117 = arith.constant 1.000000e+00 : f32
    %431 = vector.broadcast %cst_117 : f32 to vector<2x128xf32>
    %432 = arith.addf %431, %430 : vector<2x128xf32>
    %433 = arith.divf %431, %432 : vector<2x128xf32>
    %434 = vector.broadcast %8 : vector<1x128xf32> to vector<2x128xf32>
    %435 = arith.mulf %433, %434 : vector<2x128xf32>
    %436 = vector.broadcast %11 : vector<1x128xf32> to vector<2x128xf32>
    %437 = arith.addf %435, %436 : vector<2x128xf32>
    %438 = vector.extract_strided_slice %437 {offsets = [0, 0], sizes = [2, 32], strides = [1, 1]} : vector<2x128xf32> to vector<2x32xf32>
    %439 = vector.extract_strided_slice %437 {offsets = [0, 32], sizes = [2, 32], strides = [1, 1]} : vector<2x128xf32> to vector<2x32xf32>
    %440 = vector.extract_strided_slice %437 {offsets = [0, 64], sizes = [2, 32], strides = [1, 1]} : vector<2x128xf32> to vector<2x32xf32>
    %441 = vector.extract_strided_slice %437 {offsets = [0, 96], sizes = [2, 32], strides = [1, 1]} : vector<2x128xf32> to vector<2x32xf32>
    %442 = arith.mulf %439, %414 : vector<2x32xf32>
    %443 = arith.mulf %438, %440 : vector<2x32xf32>
    %444 = arith.addf %442, %443 : vector<2x32xf32>
    %445 = math.tanh %444 : vector<2x32xf32>
    %446 = arith.mulf %441, %445 : vector<2x32xf32>
    %447 = arith.index_cast %c12_i32 : i32 to index
    %c0_118 = arith.constant 0 : index
    %c0_119 = arith.constant 0 : index
    %448 = vector.load %arg16[%447, %c0_118, %c0_119] : memref<16x2x32xf32, #tpu.memory_space<vmem>>, vector<1x2x32xf32>
    %449 = vector.shape_cast %448 : vector<1x2x32xf32> to vector<2x32xf32>
    %450 = vector.shape_cast %446 : vector<2x32xf32> to vector<1x2x32xf32>
    tpu.vector_store %arg16[%447, %c0_118, %c0_119], %450 {strides = array<i32>} : memref<16x2x32xf32, #tpu.memory_space<vmem>>, vector<1x2x32xf32>,
    %451 = arith.maximumf %421, %446 : vector<2x32xf32>
    %c13_i32 = arith.constant 13 : i32
    %452 = arith.index_cast %c13_i32 : i32 to index
    %c0_120 = arith.constant 0 : index
    %c0_121 = arith.constant 0 : index
    %453 = vector.load %arg14[%452, %c0_120, %c0_121] : memref<16x2x128xf32, #tpu.memory_space<vmem>>, vector<1x2x128xf32>
    %454 = vector.shape_cast %453 : vector<1x2x128xf32> to vector<2x128xf32>
    %cst_122 = arith.constant dense<0.000000e+00> : vector<2x128xf32>
    %455 = tpu.matmul %446, %58, %cst_122 {dimension_numbers = #tpu.dot_dimension_numbers<[1], [0], [0], [1], [0, 0, 1, 1], [], []>} : vector<2x32xf32>, vector<32x128xf32>, vector<2x128xf32> -> vector<2x128xf32>
    %456 = arith.addf %454, %455 : vector<2x128xf32>
    %457 = vector.broadcast %8 : vector<1x128xf32> to vector<2x128xf32>
    %458 = arith.mulf %456, %457 : vector<2x128xf32>
    %459 = arith.negf %458 : vector<2x128xf32>
    %460 = math.exp %459 : vector<2x128xf32>
    %cst_123 = arith.constant 1.000000e+00 : f32
    %461 = vector.broadcast %cst_123 : f32 to vector<2x128xf32>
    %462 = arith.addf %461, %460 : vector<2x128xf32>
    %463 = arith.divf %461, %462 : vector<2x128xf32>
    %464 = vector.broadcast %8 : vector<1x128xf32> to vector<2x128xf32>
    %465 = arith.mulf %463, %464 : vector<2x128xf32>
    %466 = vector.broadcast %11 : vector<1x128xf32> to vector<2x128xf32>
    %467 = arith.addf %465, %466 : vector<2x128xf32>
    %468 = vector.extract_strided_slice %467 {offsets = [0, 0], sizes = [2, 32], strides = [1, 1]} : vector<2x128xf32> to vector<2x32xf32>
    %469 = vector.extract_strided_slice %467 {offsets = [0, 32], sizes = [2, 32], strides = [1, 1]} : vector<2x128xf32> to vector<2x32xf32>
    %470 = vector.extract_strided_slice %467 {offsets = [0, 64], sizes = [2, 32], strides = [1, 1]} : vector<2x128xf32> to vector<2x32xf32>
    %471 = vector.extract_strided_slice %467 {offsets = [0, 96], sizes = [2, 32], strides = [1, 1]} : vector<2x128xf32> to vector<2x32xf32>
    %472 = arith.mulf %469, %444 : vector<2x32xf32>
    %473 = arith.mulf %468, %470 : vector<2x32xf32>
    %474 = arith.addf %472, %473 : vector<2x32xf32>
    %475 = math.tanh %474 : vector<2x32xf32>
    %476 = arith.mulf %471, %475 : vector<2x32xf32>
    %477 = arith.index_cast %c13_i32 : i32 to index
    %c0_124 = arith.constant 0 : index
    %c0_125 = arith.constant 0 : index
    %478 = vector.load %arg16[%477, %c0_124, %c0_125] : memref<16x2x32xf32, #tpu.memory_space<vmem>>, vector<1x2x32xf32>
    %479 = vector.shape_cast %478 : vector<1x2x32xf32> to vector<2x32xf32>
    %480 = vector.shape_cast %476 : vector<2x32xf32> to vector<1x2x32xf32>
    tpu.vector_store %arg16[%477, %c0_124, %c0_125], %480 {strides = array<i32>} : memref<16x2x32xf32, #tpu.memory_space<vmem>>, vector<1x2x32xf32>,
    %481 = arith.maximumf %451, %476 : vector<2x32xf32>
    %c14_i32 = arith.constant 14 : i32
    %482 = arith.index_cast %c14_i32 : i32 to index
    %c0_126 = arith.constant 0 : index
    %c0_127 = arith.constant 0 : index
    %483 = vector.load %arg14[%482, %c0_126, %c0_127] : memref<16x2x128xf32, #tpu.memory_space<vmem>>, vector<1x2x128xf32>
    %484 = vector.shape_cast %483 : vector<1x2x128xf32> to vector<2x128xf32>
    %cst_128 = arith.constant dense<0.000000e+00> : vector<2x128xf32>
    %485 = tpu.matmul %476, %58, %cst_128 {dimension_numbers = #tpu.dot_dimension_numbers<[1], [0], [0], [1], [0, 0, 1, 1], [], []>} : vector<2x32xf32>, vector<32x128xf32>, vector<2x128xf32> -> vector<2x128xf32>
    %486 = arith.addf %484, %485 : vector<2x128xf32>
    %487 = vector.broadcast %8 : vector<1x128xf32> to vector<2x128xf32>
    %488 = arith.mulf %486, %487 : vector<2x128xf32>
    %489 = arith.negf %488 : vector<2x128xf32>
    %490 = math.exp %489 : vector<2x128xf32>
    %cst_129 = arith.constant 1.000000e+00 : f32
    %491 = vector.broadcast %cst_129 : f32 to vector<2x128xf32>
    %492 = arith.addf %491, %490 : vector<2x128xf32>
    %493 = arith.divf %491, %492 : vector<2x128xf32>
    %494 = vector.broadcast %8 : vector<1x128xf32> to vector<2x128xf32>
    %495 = arith.mulf %493, %494 : vector<2x128xf32>
    %496 = vector.broadcast %11 : vector<1x128xf32> to vector<2x128xf32>
    %497 = arith.addf %495, %496 : vector<2x128xf32>
    %498 = vector.extract_strided_slice %497 {offsets = [0, 0], sizes = [2, 32], strides = [1, 1]} : vector<2x128xf32> to vector<2x32xf32>
    %499 = vector.extract_strided_slice %497 {offsets = [0, 32], sizes = [2, 32], strides = [1, 1]} : vector<2x128xf32> to vector<2x32xf32>
    %500 = vector.extract_strided_slice %497 {offsets = [0, 64], sizes = [2, 32], strides = [1, 1]} : vector<2x128xf32> to vector<2x32xf32>
    %501 = vector.extract_strided_slice %497 {offsets = [0, 96], sizes = [2, 32], strides = [1, 1]} : vector<2x128xf32> to vector<2x32xf32>
    %502 = arith.mulf %499, %474 : vector<2x32xf32>
    %503 = arith.mulf %498, %500 : vector<2x32xf32>
    %504 = arith.addf %502, %503 : vector<2x32xf32>
    %505 = math.tanh %504 : vector<2x32xf32>
    %506 = arith.mulf %501, %505 : vector<2x32xf32>
    %507 = arith.index_cast %c14_i32 : i32 to index
    %c0_130 = arith.constant 0 : index
    %c0_131 = arith.constant 0 : index
    %508 = vector.load %arg16[%507, %c0_130, %c0_131] : memref<16x2x32xf32, #tpu.memory_space<vmem>>, vector<1x2x32xf32>
    %509 = vector.shape_cast %508 : vector<1x2x32xf32> to vector<2x32xf32>
    %510 = vector.shape_cast %506 : vector<2x32xf32> to vector<1x2x32xf32>
    tpu.vector_store %arg16[%507, %c0_130, %c0_131], %510 {strides = array<i32>} : memref<16x2x32xf32, #tpu.memory_space<vmem>>, vector<1x2x32xf32>,
    %511 = arith.maximumf %481, %506 : vector<2x32xf32>
    %c15_i32 = arith.constant 15 : i32
    %512 = arith.index_cast %c15_i32 : i32 to index
    %c0_132 = arith.constant 0 : index
    %c0_133 = arith.constant 0 : index
    %513 = vector.load %arg14[%512, %c0_132, %c0_133] : memref<16x2x128xf32, #tpu.memory_space<vmem>>, vector<1x2x128xf32>
    %514 = vector.shape_cast %513 : vector<1x2x128xf32> to vector<2x128xf32>
    %cst_134 = arith.constant dense<0.000000e+00> : vector<2x128xf32>
    %515 = tpu.matmul %506, %58, %cst_134 {dimension_numbers = #tpu.dot_dimension_numbers<[1], [0], [0], [1], [0, 0, 1, 1], [], []>} : vector<2x32xf32>, vector<32x128xf32>, vector<2x128xf32> -> vector<2x128xf32>
    %516 = arith.addf %514, %515 : vector<2x128xf32>
    %517 = vector.broadcast %8 : vector<1x128xf32> to vector<2x128xf32>
    %518 = arith.mulf %516, %517 : vector<2x128xf32>
    %519 = arith.negf %518 : vector<2x128xf32>
    %520 = math.exp %519 : vector<2x128xf32>
    %cst_135 = arith.constant 1.000000e+00 : f32
    %521 = vector.broadcast %cst_135 : f32 to vector<2x128xf32>
    %522 = arith.addf %521, %520 : vector<2x128xf32>
    %523 = arith.divf %521, %522 : vector<2x128xf32>
    %524 = vector.broadcast %8 : vector<1x128xf32> to vector<2x128xf32>
    %525 = arith.mulf %523, %524 : vector<2x128xf32>
    %526 = vector.broadcast %11 : vector<1x128xf32> to vector<2x128xf32>
    %527 = arith.addf %525, %526 : vector<2x128xf32>
    %528 = vector.extract_strided_slice %527 {offsets = [0, 0], sizes = [2, 32], strides = [1, 1]} : vector<2x128xf32> to vector<2x32xf32>
    %529 = vector.extract_strided_slice %527 {offsets = [0, 32], sizes = [2, 32], strides = [1, 1]} : vector<2x128xf32> to vector<2x32xf32>
    %530 = vector.extract_strided_slice %527 {offsets = [0, 64], sizes = [2, 32], strides = [1, 1]} : vector<2x128xf32> to vector<2x32xf32>
    %531 = vector.extract_strided_slice %527 {offsets = [0, 96], sizes = [2, 32], strides = [1, 1]} : vector<2x128xf32> to vector<2x32xf32>
    %532 = arith.mulf %529, %504 : vector<2x32xf32>
    %533 = arith.mulf %528, %530 : vector<2x32xf32>
    %534 = arith.addf %532, %533 : vector<2x32xf32>
    %535 = math.tanh %534 : vector<2x32xf32>
    %536 = arith.mulf %531, %535 : vector<2x32xf32>
    %537 = arith.index_cast %c15_i32 : i32 to index
    %c0_136 = arith.constant 0 : index
    %c0_137 = arith.constant 0 : index
    %538 = vector.load %arg16[%537, %c0_136, %c0_137] : memref<16x2x32xf32, #tpu.memory_space<vmem>>, vector<1x2x32xf32>
    %539 = vector.shape_cast %538 : vector<1x2x32xf32> to vector<2x32xf32>
    %540 = vector.shape_cast %536 : vector<2x32xf32> to vector<1x2x32xf32>
    tpu.vector_store %arg16[%537, %c0_136, %c0_137], %540 {strides = array<i32>} : memref<16x2x32xf32, #tpu.memory_space<vmem>>, vector<1x2x32xf32>,
    %541 = arith.maximumf %511, %536 : vector<2x32xf32>
    %c16_i32 = arith.constant 16 : i32
    %c0_138 = arith.constant 0 : index
    %c0_139 = arith.constant 0 : index
    %542 = vector.load %arg7[%c0_138, %c0_139] : memref<32x128xf32, #tpu.memory_space<vmem>>, vector<32x128xf32>
    %cst_140 = arith.constant 0.000000e+00 : f32
    %543 = vector.broadcast %cst_140 : f32 to vector<6x32xf32>
    %cst_141 = arith.constant 0.000000e+00 : f32
    %544 = vector.broadcast %cst_141 : f32 to vector<6x32xf32>
    %cst_142 = arith.constant 0xFF800000 : f32
    %545 = vector.broadcast %cst_142 : f32 to vector<6x32xf32>
    %c0_i32_143 = arith.constant 0 : i32
    %546 = arith.index_cast %c0_i32_143 : i32 to index
    %c0_144 = arith.constant 0 : index
    %c0_145 = arith.constant 0 : index
    %547 = vector.load %arg15[%546, %c0_144, %c0_145] : memref<8x6x128xf32, #tpu.memory_space<vmem>>, vector<1x6x128xf32>
    %548 = vector.shape_cast %547 : vector<1x6x128xf32> to vector<6x128xf32>
    %cst_146 = arith.constant dense<0.000000e+00> : vector<6x128xf32>
    %549 = tpu.matmul %543, %542, %cst_146 {dimension_numbers = #tpu.dot_dimension_numbers<[1], [0], [0], [1], [0, 0, 1, 1], [], []>} : vector<6x32xf32>, vector<32x128xf32>, vector<6x128xf32> -> vector<6x128xf32>
    %550 = arith.addf %548, %549 : vector<6x128xf32>
    %551 = vector.broadcast %8 : vector<1x128xf32> to vector<6x128xf32>
    %552 = arith.mulf %550, %551 : vector<6x128xf32>
    %553 = arith.negf %552 : vector<6x128xf32>
    %554 = math.exp %553 : vector<6x128xf32>
    %cst_147 = arith.constant 1.000000e+00 : f32
    %555 = vector.broadcast %cst_147 : f32 to vector<6x128xf32>
    %556 = arith.addf %555, %554 : vector<6x128xf32>
    %557 = arith.divf %555, %556 : vector<6x128xf32>
    %558 = vector.broadcast %8 : vector<1x128xf32> to vector<6x128xf32>
    %559 = arith.mulf %557, %558 : vector<6x128xf32>
    %560 = vector.broadcast %11 : vector<1x128xf32> to vector<6x128xf32>
    %561 = arith.addf %559, %560 : vector<6x128xf32>
    %562 = vector.extract_strided_slice %561 {offsets = [0, 0], sizes = [6, 32], strides = [1, 1]} : vector<6x128xf32> to vector<6x32xf32>
    %563 = vector.extract_strided_slice %561 {offsets = [0, 32], sizes = [6, 32], strides = [1, 1]} : vector<6x128xf32> to vector<6x32xf32>
    %564 = vector.extract_strided_slice %561 {offsets = [0, 64], sizes = [6, 32], strides = [1, 1]} : vector<6x128xf32> to vector<6x32xf32>
    %565 = vector.extract_strided_slice %561 {offsets = [0, 96], sizes = [6, 32], strides = [1, 1]} : vector<6x128xf32> to vector<6x32xf32>
    %566 = arith.mulf %563, %544 : vector<6x32xf32>
    %567 = arith.mulf %562, %564 : vector<6x32xf32>
    %568 = arith.addf %566, %567 : vector<6x32xf32>
    %569 = math.tanh %568 : vector<6x32xf32>
    %570 = arith.mulf %565, %569 : vector<6x32xf32>
    %571 = arith.maximumf %545, %570 : vector<6x32xf32>
    %c1_i32_148 = arith.constant 1 : i32
    %572 = arith.index_cast %c1_i32_148 : i32 to index
    %c0_149 = arith.constant 0 : index
    %c0_150 = arith.constant 0 : index
    %573 = vector.load %arg15[%572, %c0_149, %c0_150] : memref<8x6x128xf32, #tpu.memory_space<vmem>>, vector<1x6x128xf32>
    %574 = vector.shape_cast %573 : vector<1x6x128xf32> to vector<6x128xf32>
    %cst_151 = arith.constant dense<0.000000e+00> : vector<6x128xf32>
    %575 = tpu.matmul %570, %542, %cst_151 {dimension_numbers = #tpu.dot_dimension_numbers<[1], [0], [0], [1], [0, 0, 1, 1], [], []>} : vector<6x32xf32>, vector<32x128xf32>, vector<6x128xf32> -> vector<6x128xf32>
    %576 = arith.addf %574, %575 : vector<6x128xf32>
    %577 = vector.broadcast %8 : vector<1x128xf32> to vector<6x128xf32>
    %578 = arith.mulf %576, %577 : vector<6x128xf32>
    %579 = arith.negf %578 : vector<6x128xf32>
    %580 = math.exp %579 : vector<6x128xf32>
    %cst_152 = arith.constant 1.000000e+00 : f32
    %581 = vector.broadcast %cst_152 : f32 to vector<6x128xf32>
    %582 = arith.addf %581, %580 : vector<6x128xf32>
    %583 = arith.divf %581, %582 : vector<6x128xf32>
    %584 = vector.broadcast %8 : vector<1x128xf32> to vector<6x128xf32>
    %585 = arith.mulf %583, %584 : vector<6x128xf32>
    %586 = vector.broadcast %11 : vector<1x128xf32> to vector<6x128xf32>
    %587 = arith.addf %585, %586 : vector<6x128xf32>
    %588 = vector.extract_strided_slice %587 {offsets = [0, 0], sizes = [6, 32], strides = [1, 1]} : vector<6x128xf32> to vector<6x32xf32>
    %589 = vector.extract_strided_slice %587 {offsets = [0, 32], sizes = [6, 32], strides = [1, 1]} : vector<6x128xf32> to vector<6x32xf32>
    %590 = vector.extract_strided_slice %587 {offsets = [0, 64], sizes = [6, 32], strides = [1, 1]} : vector<6x128xf32> to vector<6x32xf32>
    %591 = vector.extract_strided_slice %587 {offsets = [0, 96], sizes = [6, 32], strides = [1, 1]} : vector<6x128xf32> to vector<6x32xf32>
    %592 = arith.mulf %589, %568 : vector<6x32xf32>
    %593 = arith.mulf %588, %590 : vector<6x32xf32>
    %594 = arith.addf %592, %593 : vector<6x32xf32>
    %595 = math.tanh %594 : vector<6x32xf32>
    %596 = arith.mulf %591, %595 : vector<6x32xf32>
    %597 = arith.maximumf %571, %596 : vector<6x32xf32>
    %c2_i32_153 = arith.constant 2 : i32
    %598 = arith.index_cast %c2_i32_153 : i32 to index
    %c0_154 = arith.constant 0 : index
    %c0_155 = arith.constant 0 : index
    %599 = vector.load %arg15[%598, %c0_154, %c0_155] : memref<8x6x128xf32, #tpu.memory_space<vmem>>, vector<1x6x128xf32>
    %600 = vector.shape_cast %599 : vector<1x6x128xf32> to vector<6x128xf32>
    %cst_156 = arith.constant dense<0.000000e+00> : vector<6x128xf32>
    %601 = tpu.matmul %596, %542, %cst_156 {dimension_numbers = #tpu.dot_dimension_numbers<[1], [0], [0], [1], [0, 0, 1, 1], [], []>} : vector<6x32xf32>, vector<32x128xf32>, vector<6x128xf32> -> vector<6x128xf32>
    %602 = arith.addf %600, %601 : vector<6x128xf32>
    %603 = vector.broadcast %8 : vector<1x128xf32> to vector<6x128xf32>
    %604 = arith.mulf %602, %603 : vector<6x128xf32>
    %605 = arith.negf %604 : vector<6x128xf32>
    %606 = math.exp %605 : vector<6x128xf32>
    %cst_157 = arith.constant 1.000000e+00 : f32
    %607 = vector.broadcast %cst_157 : f32 to vector<6x128xf32>
    %608 = arith.addf %607, %606 : vector<6x128xf32>
    %609 = arith.divf %607, %608 : vector<6x128xf32>
    %610 = vector.broadcast %8 : vector<1x128xf32> to vector<6x128xf32>
    %611 = arith.mulf %609, %610 : vector<6x128xf32>
    %612 = vector.broadcast %11 : vector<1x128xf32> to vector<6x128xf32>
    %613 = arith.addf %611, %612 : vector<6x128xf32>
    %614 = vector.extract_strided_slice %613 {offsets = [0, 0], sizes = [6, 32], strides = [1, 1]} : vector<6x128xf32> to vector<6x32xf32>
    %615 = vector.extract_strided_slice %613 {offsets = [0, 32], sizes = [6, 32], strides = [1, 1]} : vector<6x128xf32> to vector<6x32xf32>
    %616 = vector.extract_strided_slice %613 {offsets = [0, 64], sizes = [6, 32], strides = [1, 1]} : vector<6x128xf32> to vector<6x32xf32>
    %617 = vector.extract_strided_slice %613 {offsets = [0, 96], sizes = [6, 32], strides = [1, 1]} : vector<6x128xf32> to vector<6x32xf32>
    %618 = arith.mulf %615, %594 : vector<6x32xf32>
    %619 = arith.mulf %614, %616 : vector<6x32xf32>
    %620 = arith.addf %618, %619 : vector<6x32xf32>
    %621 = math.tanh %620 : vector<6x32xf32>
    %622 = arith.mulf %617, %621 : vector<6x32xf32>
    %623 = arith.maximumf %597, %622 : vector<6x32xf32>
    %c3_i32_158 = arith.constant 3 : i32
    %624 = arith.index_cast %c3_i32_158 : i32 to index
    %c0_159 = arith.constant 0 : index
    %c0_160 = arith.constant 0 : index
    %625 = vector.load %arg15[%624, %c0_159, %c0_160] : memref<8x6x128xf32, #tpu.memory_space<vmem>>, vector<1x6x128xf32>
    %626 = vector.shape_cast %625 : vector<1x6x128xf32> to vector<6x128xf32>
    %cst_161 = arith.constant dense<0.000000e+00> : vector<6x128xf32>
    %627 = tpu.matmul %622, %542, %cst_161 {dimension_numbers = #tpu.dot_dimension_numbers<[1], [0], [0], [1], [0, 0, 1, 1], [], []>} : vector<6x32xf32>, vector<32x128xf32>, vector<6x128xf32> -> vector<6x128xf32>
    %628 = arith.addf %626, %627 : vector<6x128xf32>
    %629 = vector.broadcast %8 : vector<1x128xf32> to vector<6x128xf32>
    %630 = arith.mulf %628, %629 : vector<6x128xf32>
    %631 = arith.negf %630 : vector<6x128xf32>
    %632 = math.exp %631 : vector<6x128xf32>
    %cst_162 = arith.constant 1.000000e+00 : f32
    %633 = vector.broadcast %cst_162 : f32 to vector<6x128xf32>
    %634 = arith.addf %633, %632 : vector<6x128xf32>
    %635 = arith.divf %633, %634 : vector<6x128xf32>
    %636 = vector.broadcast %8 : vector<1x128xf32> to vector<6x128xf32>
    %637 = arith.mulf %635, %636 : vector<6x128xf32>
    %638 = vector.broadcast %11 : vector<1x128xf32> to vector<6x128xf32>
    %639 = arith.addf %637, %638 : vector<6x128xf32>
    %640 = vector.extract_strided_slice %639 {offsets = [0, 0], sizes = [6, 32], strides = [1, 1]} : vector<6x128xf32> to vector<6x32xf32>
    %641 = vector.extract_strided_slice %639 {offsets = [0, 32], sizes = [6, 32], strides = [1, 1]} : vector<6x128xf32> to vector<6x32xf32>
    %642 = vector.extract_strided_slice %639 {offsets = [0, 64], sizes = [6, 32], strides = [1, 1]} : vector<6x128xf32> to vector<6x32xf32>
    %643 = vector.extract_strided_slice %639 {offsets = [0, 96], sizes = [6, 32], strides = [1, 1]} : vector<6x128xf32> to vector<6x32xf32>
    %644 = arith.mulf %641, %620 : vector<6x32xf32>
    %645 = arith.mulf %640, %642 : vector<6x32xf32>
    %646 = arith.addf %644, %645 : vector<6x32xf32>
    %647 = math.tanh %646 : vector<6x32xf32>
    %648 = arith.mulf %643, %647 : vector<6x32xf32>
    %649 = arith.maximumf %623, %648 : vector<6x32xf32>
    %c4_i32_163 = arith.constant 4 : i32
    %650 = arith.index_cast %c4_i32_163 : i32 to index
    %c0_164 = arith.constant 0 : index
    %c0_165 = arith.constant 0 : index
    %651 = vector.load %arg15[%650, %c0_164, %c0_165] : memref<8x6x128xf32, #tpu.memory_space<vmem>>, vector<1x6x128xf32>
    %652 = vector.shape_cast %651 : vector<1x6x128xf32> to vector<6x128xf32>
    %cst_166 = arith.constant dense<0.000000e+00> : vector<6x128xf32>
    %653 = tpu.matmul %648, %542, %cst_166 {dimension_numbers = #tpu.dot_dimension_numbers<[1], [0], [0], [1], [0, 0, 1, 1], [], []>} : vector<6x32xf32>, vector<32x128xf32>, vector<6x128xf32> -> vector<6x128xf32>
    %654 = arith.addf %652, %653 : vector<6x128xf32>
    %655 = vector.broadcast %8 : vector<1x128xf32> to vector<6x128xf32>
    %656 = arith.mulf %654, %655 : vector<6x128xf32>
    %657 = arith.negf %656 : vector<6x128xf32>
    %658 = math.exp %657 : vector<6x128xf32>
    %cst_167 = arith.constant 1.000000e+00 : f32
    %659 = vector.broadcast %cst_167 : f32 to vector<6x128xf32>
    %660 = arith.addf %659, %658 : vector<6x128xf32>
    %661 = arith.divf %659, %660 : vector<6x128xf32>
    %662 = vector.broadcast %8 : vector<1x128xf32> to vector<6x128xf32>
    %663 = arith.mulf %661, %662 : vector<6x128xf32>
    %664 = vector.broadcast %11 : vector<1x128xf32> to vector<6x128xf32>
    %665 = arith.addf %663, %664 : vector<6x128xf32>
    %666 = vector.extract_strided_slice %665 {offsets = [0, 0], sizes = [6, 32], strides = [1, 1]} : vector<6x128xf32> to vector<6x32xf32>
    %667 = vector.extract_strided_slice %665 {offsets = [0, 32], sizes = [6, 32], strides = [1, 1]} : vector<6x128xf32> to vector<6x32xf32>
    %668 = vector.extract_strided_slice %665 {offsets = [0, 64], sizes = [6, 32], strides = [1, 1]} : vector<6x128xf32> to vector<6x32xf32>
    %669 = vector.extract_strided_slice %665 {offsets = [0, 96], sizes = [6, 32], strides = [1, 1]} : vector<6x128xf32> to vector<6x32xf32>
    %670 = arith.mulf %667, %646 : vector<6x32xf32>
    %671 = arith.mulf %666, %668 : vector<6x32xf32>
    %672 = arith.addf %670, %671 : vector<6x32xf32>
    %673 = math.tanh %672 : vector<6x32xf32>
    %674 = arith.mulf %669, %673 : vector<6x32xf32>
    %675 = arith.maximumf %649, %674 : vector<6x32xf32>
    %c5_i32_168 = arith.constant 5 : i32
    %676 = arith.index_cast %c5_i32_168 : i32 to index
    %c0_169 = arith.constant 0 : index
    %c0_170 = arith.constant 0 : index
    %677 = vector.load %arg15[%676, %c0_169, %c0_170] : memref<8x6x128xf32, #tpu.memory_space<vmem>>, vector<1x6x128xf32>
    %678 = vector.shape_cast %677 : vector<1x6x128xf32> to vector<6x128xf32>
    %cst_171 = arith.constant dense<0.000000e+00> : vector<6x128xf32>
    %679 = tpu.matmul %674, %542, %cst_171 {dimension_numbers = #tpu.dot_dimension_numbers<[1], [0], [0], [1], [0, 0, 1, 1], [], []>} : vector<6x32xf32>, vector<32x128xf32>, vector<6x128xf32> -> vector<6x128xf32>
    %680 = arith.addf %678, %679 : vector<6x128xf32>
    %681 = vector.broadcast %8 : vector<1x128xf32> to vector<6x128xf32>
    %682 = arith.mulf %680, %681 : vector<6x128xf32>
    %683 = arith.negf %682 : vector<6x128xf32>
    %684 = math.exp %683 : vector<6x128xf32>
    %cst_172 = arith.constant 1.000000e+00 : f32
    %685 = vector.broadcast %cst_172 : f32 to vector<6x128xf32>
    %686 = arith.addf %685, %684 : vector<6x128xf32>
    %687 = arith.divf %685, %686 : vector<6x128xf32>
    %688 = vector.broadcast %8 : vector<1x128xf32> to vector<6x128xf32>
    %689 = arith.mulf %687, %688 : vector<6x128xf32>
    %690 = vector.broadcast %11 : vector<1x128xf32> to vector<6x128xf32>
    %691 = arith.addf %689, %690 : vector<6x128xf32>
    %692 = vector.extract_strided_slice %691 {offsets = [0, 0], sizes = [6, 32], strides = [1, 1]} : vector<6x128xf32> to vector<6x32xf32>
    %693 = vector.extract_strided_slice %691 {offsets = [0, 32], sizes = [6, 32], strides = [1, 1]} : vector<6x128xf32> to vector<6x32xf32>
    %694 = vector.extract_strided_slice %691 {offsets = [0, 64], sizes = [6, 32], strides = [1, 1]} : vector<6x128xf32> to vector<6x32xf32>
    %695 = vector.extract_strided_slice %691 {offsets = [0, 96], sizes = [6, 32], strides = [1, 1]} : vector<6x128xf32> to vector<6x32xf32>
    %696 = arith.mulf %693, %672 : vector<6x32xf32>
    %697 = arith.mulf %692, %694 : vector<6x32xf32>
    %698 = arith.addf %696, %697 : vector<6x32xf32>
    %699 = math.tanh %698 : vector<6x32xf32>
    %700 = arith.mulf %695, %699 : vector<6x32xf32>
    %701 = arith.maximumf %675, %700 : vector<6x32xf32>
    %c6_i32_173 = arith.constant 6 : i32
    %702 = arith.index_cast %c6_i32_173 : i32 to index
    %c0_174 = arith.constant 0 : index
    %c0_175 = arith.constant 0 : index
    %703 = vector.load %arg15[%702, %c0_174, %c0_175] : memref<8x6x128xf32, #tpu.memory_space<vmem>>, vector<1x6x128xf32>
    %704 = vector.shape_cast %703 : vector<1x6x128xf32> to vector<6x128xf32>
    %cst_176 = arith.constant dense<0.000000e+00> : vector<6x128xf32>
    %705 = tpu.matmul %700, %542, %cst_176 {dimension_numbers = #tpu.dot_dimension_numbers<[1], [0], [0], [1], [0, 0, 1, 1], [], []>} : vector<6x32xf32>, vector<32x128xf32>, vector<6x128xf32> -> vector<6x128xf32>
    %706 = arith.addf %704, %705 : vector<6x128xf32>
    %707 = vector.broadcast %8 : vector<1x128xf32> to vector<6x128xf32>
    %708 = arith.mulf %706, %707 : vector<6x128xf32>
    %709 = arith.negf %708 : vector<6x128xf32>
    %710 = math.exp %709 : vector<6x128xf32>
    %cst_177 = arith.constant 1.000000e+00 : f32
    %711 = vector.broadcast %cst_177 : f32 to vector<6x128xf32>
    %712 = arith.addf %711, %710 : vector<6x128xf32>
    %713 = arith.divf %711, %712 : vector<6x128xf32>
    %714 = vector.broadcast %8 : vector<1x128xf32> to vector<6x128xf32>
    %715 = arith.mulf %713, %714 : vector<6x128xf32>
    %716 = vector.broadcast %11 : vector<1x128xf32> to vector<6x128xf32>
    %717 = arith.addf %715, %716 : vector<6x128xf32>
    %718 = vector.extract_strided_slice %717 {offsets = [0, 0], sizes = [6, 32], strides = [1, 1]} : vector<6x128xf32> to vector<6x32xf32>
    %719 = vector.extract_strided_slice %717 {offsets = [0, 32], sizes = [6, 32], strides = [1, 1]} : vector<6x128xf32> to vector<6x32xf32>
    %720 = vector.extract_strided_slice %717 {offsets = [0, 64], sizes = [6, 32], strides = [1, 1]} : vector<6x128xf32> to vector<6x32xf32>
    %721 = vector.extract_strided_slice %717 {offsets = [0, 96], sizes = [6, 32], strides = [1, 1]} : vector<6x128xf32> to vector<6x32xf32>
    %722 = arith.mulf %719, %698 : vector<6x32xf32>
    %723 = arith.mulf %718, %720 : vector<6x32xf32>
    %724 = arith.addf %722, %723 : vector<6x32xf32>
    %725 = math.tanh %724 : vector<6x32xf32>
    %726 = arith.mulf %721, %725 : vector<6x32xf32>
    %727 = arith.maximumf %701, %726 : vector<6x32xf32>
    %c7_i32_178 = arith.constant 7 : i32
    %728 = arith.index_cast %c7_i32_178 : i32 to index
    %c0_179 = arith.constant 0 : index
    %c0_180 = arith.constant 0 : index
    %729 = vector.load %arg15[%728, %c0_179, %c0_180] : memref<8x6x128xf32, #tpu.memory_space<vmem>>, vector<1x6x128xf32>
    %730 = vector.shape_cast %729 : vector<1x6x128xf32> to vector<6x128xf32>
    %cst_181 = arith.constant dense<0.000000e+00> : vector<6x128xf32>
    %731 = tpu.matmul %726, %542, %cst_181 {dimension_numbers = #tpu.dot_dimension_numbers<[1], [0], [0], [1], [0, 0, 1, 1], [], []>} : vector<6x32xf32>, vector<32x128xf32>, vector<6x128xf32> -> vector<6x128xf32>
    %732 = arith.addf %730, %731 : vector<6x128xf32>
    %733 = vector.broadcast %8 : vector<1x128xf32> to vector<6x128xf32>
    %734 = arith.mulf %732, %733 : vector<6x128xf32>
    %735 = arith.negf %734 : vector<6x128xf32>
    %736 = math.exp %735 : vector<6x128xf32>
    %cst_182 = arith.constant 1.000000e+00 : f32
    %737 = vector.broadcast %cst_182 : f32 to vector<6x128xf32>
    %738 = arith.addf %737, %736 : vector<6x128xf32>
    %739 = arith.divf %737, %738 : vector<6x128xf32>
    %740 = vector.broadcast %8 : vector<1x128xf32> to vector<6x128xf32>
    %741 = arith.mulf %739, %740 : vector<6x128xf32>
    %742 = vector.broadcast %11 : vector<1x128xf32> to vector<6x128xf32>
    %743 = arith.addf %741, %742 : vector<6x128xf32>
    %744 = vector.extract_strided_slice %743 {offsets = [0, 0], sizes = [6, 32], strides = [1, 1]} : vector<6x128xf32> to vector<6x32xf32>
    %745 = vector.extract_strided_slice %743 {offsets = [0, 32], sizes = [6, 32], strides = [1, 1]} : vector<6x128xf32> to vector<6x32xf32>
    %746 = vector.extract_strided_slice %743 {offsets = [0, 64], sizes = [6, 32], strides = [1, 1]} : vector<6x128xf32> to vector<6x32xf32>
    %747 = vector.extract_strided_slice %743 {offsets = [0, 96], sizes = [6, 32], strides = [1, 1]} : vector<6x128xf32> to vector<6x32xf32>
    %748 = arith.mulf %745, %724 : vector<6x32xf32>
    %749 = arith.mulf %744, %746 : vector<6x32xf32>
    %750 = arith.addf %748, %749 : vector<6x32xf32>
    %751 = math.tanh %750 : vector<6x32xf32>
    %752 = arith.mulf %747, %751 : vector<6x32xf32>
    %753 = arith.maximumf %727, %752 : vector<6x32xf32>
    %c8_i32_183 = arith.constant 8 : i32
    %c0_184 = arith.constant 0 : index
    %c0_185 = arith.constant 0 : index
    %c0_186 = arith.constant 0 : index
    %754 = vector.load %arg2[%c0_184, %c0_185, %c0_186] : memref<2x8x32xf32, #tpu.memory_space<vmem>>, vector<2x8x32xf32>
    %755 = vector.shape_cast %754 : vector<2x8x32xf32> to vector<16x32xf32>
    %c0_187 = arith.constant 0 : index
    %c0_188 = arith.constant 0 : index
    %756 = vector.load %arg9[%c0_187, %c0_188] : memref<32x64xf32, #tpu.memory_space<vmem>>, vector<32x64xf32>
    %cst_189 = arith.constant dense<0.000000e+00> : vector<16x64xf32>
    %757 = tpu.matmul %755, %756, %cst_189 {dimension_numbers = #tpu.dot_dimension_numbers<[1], [0], [0], [1], [0, 0, 1, 1], [], []>} : vector<16x32xf32>, vector<32x64xf32>, vector<16x64xf32> -> vector<16x64xf32>
    %c0_190 = arith.constant 0 : index
    %c0_191 = arith.constant 0 : index
    %758 = vector.load %arg10[%c0_190, %c0_191] : memref<32x32xf32, #tpu.memory_space<vmem>>, vector<32x32xf32>
    %c0_192 = arith.constant 0 : index
    %c0_193 = arith.constant 0 : index
    %c0_194 = arith.constant 0 : index
    %759 = vector.load %arg16[%c0_192, %c0_193, %c0_194] : memref<16x2x32xf32, #tpu.memory_space<vmem>>, vector<16x2x32xf32>
    %c0_195 = arith.constant 0 : index
    %c0_196 = arith.constant 0 : index
    %c0_197 = arith.constant 0 : index
    %760 = vector.load %arg2[%c0_195, %c0_196, %c0_197] : memref<2x8x32xf32, #tpu.memory_space<vmem>>, vector<1x8x32xf32>
    %761 = vector.shape_cast %760 : vector<1x8x32xf32> to vector<8x32xf32>
    %762 = vector.extract_strided_slice %759 {offsets = [0, 0, 0], sizes = [16, 1, 32], strides = [1, 1, 1]} : vector<16x2x32xf32> to vector<16x1x32xf32>
    %763 = vector.shape_cast %762 : vector<16x1x32xf32> to vector<16x32xf32>
    %764 = vector.extract_strided_slice %753 {offsets = [0, 0], sizes = [3, 32], strides = [1, 1]} : vector<6x32xf32> to vector<3x32xf32>
    %765 = vector.extract_strided_slice %757 {offsets = [0, 0], sizes = [8, 64], strides = [1, 1]} : vector<16x64xf32> to vector<8x64xf32>
    %766 = vector.extract_strided_slice %765 {offsets = [0, 0], sizes = [8, 32], strides = [1, 1]} : vector<8x64xf32> to vector<8x32xf32>
    %767 = vector.extract_strided_slice %765 {offsets = [0, 32], sizes = [8, 32], strides = [1, 1]} : vector<8x64xf32> to vector<8x32xf32>
    %cst_198 = arith.constant dense<0.000000e+00> : vector<8x16xf32>
    %768 = tpu.matmul %766, %763, %cst_198 {dimension_numbers = #tpu.dot_dimension_numbers<[1], [1], [0], [0], [0, 0, 1, 0], [], []>} : vector<8x32xf32>, vector<16x32xf32>, vector<8x16xf32> -> vector<8x16xf32>
    %cst_199 = arith.constant dense<0xFF800000> : vector<8xf32>
    %769 = vector.multi_reduction <maximumf>, %768, %cst_199 [1] : vector<8x16xf32> to vector<8xf32>
    %cst_200 = arith.constant 0xFF800000 : f32
    %770 = vector.broadcast %cst_200 : f32 to vector<8xf32>
    %771 = arith.maximumf %770, %769 : vector<8xf32>
    %772 = vector.shape_cast %771 : vector<8xf32> to vector<8x1xf32>
    %773 = vector.broadcast %772 : vector<8x1xf32> to vector<8x16xf32>
    %774 = arith.subf %768, %773 : vector<8x16xf32>
    %775 = math.exp %774 : vector<8x16xf32>
    %cst_201 = arith.constant dense<0.000000e+00> : vector<8xf32>
    %776 = vector.multi_reduction <add>, %775, %cst_201 [1] : vector<8x16xf32> to vector<8xf32>
    %777 = vector.shape_cast %776 : vector<8xf32> to vector<8x1xf32>
    %778 = vector.broadcast %777 : vector<8x1xf32> to vector<8x16xf32>
    %779 = arith.divf %775, %778 : vector<8x16xf32>
    %cst_202 = arith.constant dense<0.000000e+00> : vector<8x32xf32>
    %780 = tpu.matmul %779, %763, %cst_202 {dimension_numbers = #tpu.dot_dimension_numbers<[1], [0], [0], [1], [0, 0, 1, 1], [], []>} : vector<8x16xf32>, vector<16x32xf32>, vector<8x32xf32> -> vector<8x32xf32>
    %cst_203 = arith.constant dense<0.000000e+00> : vector<8x32xf32>
    %781 = tpu.matmul %780, %758, %cst_203 {dimension_numbers = #tpu.dot_dimension_numbers<[1], [0], [0], [1], [0, 0, 1, 1], [], []>} : vector<8x32xf32>, vector<32x32xf32>, vector<8x32xf32> -> vector<8x32xf32>
    %782 = arith.addf %767, %781 : vector<8x32xf32>
    %cst_204 = arith.constant dense<0.000000e+00> : vector<3x8xf32>
    %783 = tpu.matmul %764, %782, %cst_204 {dimension_numbers = #tpu.dot_dimension_numbers<[1], [1], [0], [0], [0, 0, 1, 0], [], []>} : vector<3x32xf32>, vector<8x32xf32>, vector<3x8xf32> -> vector<3x8xf32>
    %cst_205 = arith.constant dense<0xFF800000> : vector<8xf32>
    %784 = vector.multi_reduction <maximumf>, %783, %cst_205 [0] : vector<3x8xf32> to vector<8xf32>
    %785 = vector.shape_cast %784 : vector<8xf32> to vector<1x8xf32>
    %cst_206 = arith.constant dense<0xFF800000> : vector<1xf32>
    %786 = vector.multi_reduction <maximumf>, %785, %cst_206 [1] : vector<1x8xf32> to vector<1xf32>
    %cst_207 = arith.constant 0xFF800000 : f32
    %787 = vector.broadcast %cst_207 : f32 to vector<1xf32>
    %788 = arith.maximumf %787, %786 : vector<1xf32>
    %789 = vector.shape_cast %788 : vector<1xf32> to vector<1x1xf32>
    %790 = vector.broadcast %789 : vector<1x1xf32> to vector<1x8xf32>
    %791 = arith.subf %785, %790 : vector<1x8xf32>
    %792 = math.exp %791 : vector<1x8xf32>
    %cst_208 = arith.constant dense<0.000000e+00> : vector<1xf32>
    %793 = vector.multi_reduction <add>, %792, %cst_208 [1] : vector<1x8xf32> to vector<1xf32>
    %794 = vector.shape_cast %793 : vector<1xf32> to vector<1x1xf32>
    %795 = vector.broadcast %794 : vector<1x1xf32> to vector<1x8xf32>
    %796 = arith.divf %792, %795 : vector<1x8xf32>
    %cst_209 = arith.constant dense<0xFF800000> : vector<3xf32>
    %797 = vector.multi_reduction <maximumf>, %783, %cst_209 [1] : vector<3x8xf32> to vector<3xf32>
    %798 = vector.shape_cast %797 : vector<3xf32> to vector<3x1xf32>
    %cst_210 = arith.constant dense<0xFF800000> : vector<1xf32>
    %799 = vector.multi_reduction <maximumf>, %798, %cst_210 [0] : vector<3x1xf32> to vector<1xf32>
    %cst_211 = arith.constant 0xFF800000 : f32
    %800 = vector.broadcast %cst_211 : f32 to vector<1xf32>
    %801 = arith.maximumf %800, %799 : vector<1xf32>
    %802 = vector.shape_cast %801 : vector<1xf32> to vector<1x1xf32>
    %803 = vector.broadcast %802 : vector<1x1xf32> to vector<3x1xf32>
    %804 = arith.subf %798, %803 : vector<3x1xf32>
    %805 = math.exp %804 : vector<3x1xf32>
    %cst_212 = arith.constant dense<0.000000e+00> : vector<1xf32>
    %806 = vector.multi_reduction <add>, %805, %cst_212 [0] : vector<3x1xf32> to vector<1xf32>
    %807 = vector.shape_cast %806 : vector<1xf32> to vector<1x1xf32>
    %808 = vector.broadcast %807 : vector<1x1xf32> to vector<3x1xf32>
    %809 = arith.divf %805, %808 : vector<3x1xf32>
    %cst_213 = arith.constant dense<0.000000e+00> : vector<1x32xf32>
    %810 = tpu.matmul %796, %761, %cst_213 {dimension_numbers = #tpu.dot_dimension_numbers<[1], [0], [0], [1], [0, 0, 1, 1], [], []>} : vector<1x8xf32>, vector<8x32xf32>, vector<1x32xf32> -> vector<1x32xf32>
    %cst_214 = arith.constant dense<0.000000e+00> : vector<1x32xf32>
    %811 = tpu.matmul %796, %780, %cst_214 {dimension_numbers = #tpu.dot_dimension_numbers<[1], [0], [0], [1], [0, 0, 1, 1], [], []>} : vector<1x8xf32>, vector<8x32xf32>, vector<1x32xf32> -> vector<1x32xf32>
    %812 = vector.broadcast %809 : vector<3x1xf32> to vector<3x32xf32>
    %813 = arith.mulf %812, %764 : vector<3x32xf32>
    %cst_215 = arith.constant dense<0.000000e+00> : vector<32xf32>
    %814 = vector.multi_reduction <add>, %813, %cst_215 [0] : vector<3x32xf32> to vector<32xf32>
    %815 = vector.shape_cast %814 : vector<32xf32> to vector<1x32xf32>
    %816 = vector.extract_strided_slice %541 {offsets = [0, 0], sizes = [1, 32], strides = [1, 1]} : vector<2x32xf32> to vector<1x32xf32>
    %817 = tpu.concatenate %816, %810, %811, %815 in 1 : vector<1x32xf32>, vector<1x32xf32>, vector<1x32xf32>, vector<1x32xf32> -> vector<1x128xf32>
    %c1_216 = arith.constant 1 : index
    %c0_217 = arith.constant 0 : index
    %c0_218 = arith.constant 0 : index
    %818 = vector.load %arg2[%c1_216, %c0_217, %c0_218] : memref<2x8x32xf32, #tpu.memory_space<vmem>>, vector<1x8x32xf32>
    %819 = vector.shape_cast %818 : vector<1x8x32xf32> to vector<8x32xf32>
    %820 = vector.extract_strided_slice %759 {offsets = [0, 1, 0], sizes = [16, 1, 32], strides = [1, 1, 1]} : vector<16x2x32xf32> to vector<16x1x32xf32>
    %821 = vector.shape_cast %820 : vector<16x1x32xf32> to vector<16x32xf32>
    %822 = vector.extract_strided_slice %753 {offsets = [3, 0], sizes = [3, 32], strides = [1, 1]} : vector<6x32xf32> to vector<3x32xf32>
    %823 = vector.extract_strided_slice %757 {offsets = [8, 0], sizes = [8, 64], strides = [1, 1]} : vector<16x64xf32> to vector<8x64xf32>
    %824 = vector.extract_strided_slice %823 {offsets = [0, 0], sizes = [8, 32], strides = [1, 1]} : vector<8x64xf32> to vector<8x32xf32>
    %825 = vector.extract_strided_slice %823 {offsets = [0, 32], sizes = [8, 32], strides = [1, 1]} : vector<8x64xf32> to vector<8x32xf32>
    %cst_219 = arith.constant dense<0.000000e+00> : vector<8x16xf32>
    %826 = tpu.matmul %824, %821, %cst_219 {dimension_numbers = #tpu.dot_dimension_numbers<[1], [1], [0], [0], [0, 0, 1, 0], [], []>} : vector<8x32xf32>, vector<16x32xf32>, vector<8x16xf32> -> vector<8x16xf32>
    %cst_220 = arith.constant dense<0xFF800000> : vector<8xf32>
    %827 = vector.multi_reduction <maximumf>, %826, %cst_220 [1] : vector<8x16xf32> to vector<8xf32>
    %cst_221 = arith.constant 0xFF800000 : f32
    %828 = vector.broadcast %cst_221 : f32 to vector<8xf32>
    %829 = arith.maximumf %828, %827 : vector<8xf32>
    %830 = vector.shape_cast %829 : vector<8xf32> to vector<8x1xf32>
    %831 = vector.broadcast %830 : vector<8x1xf32> to vector<8x16xf32>
    %832 = arith.subf %826, %831 : vector<8x16xf32>
    %833 = math.exp %832 : vector<8x16xf32>
    %cst_222 = arith.constant dense<0.000000e+00> : vector<8xf32>
    %834 = vector.multi_reduction <add>, %833, %cst_222 [1] : vector<8x16xf32> to vector<8xf32>
    %835 = vector.shape_cast %834 : vector<8xf32> to vector<8x1xf32>
    %836 = vector.broadcast %835 : vector<8x1xf32> to vector<8x16xf32>
    %837 = arith.divf %833, %836 : vector<8x16xf32>
    %cst_223 = arith.constant dense<0.000000e+00> : vector<8x32xf32>
    %838 = tpu.matmul %837, %821, %cst_223 {dimension_numbers = #tpu.dot_dimension_numbers<[1], [0], [0], [1], [0, 0, 1, 1], [], []>} : vector<8x16xf32>, vector<16x32xf32>, vector<8x32xf32> -> vector<8x32xf32>
    %cst_224 = arith.constant dense<0.000000e+00> : vector<8x32xf32>
    %839 = tpu.matmul %838, %758, %cst_224 {dimension_numbers = #tpu.dot_dimension_numbers<[1], [0], [0], [1], [0, 0, 1, 1], [], []>} : vector<8x32xf32>, vector<32x32xf32>, vector<8x32xf32> -> vector<8x32xf32>
    %840 = arith.addf %825, %839 : vector<8x32xf32>
    %cst_225 = arith.constant dense<0.000000e+00> : vector<3x8xf32>
    %841 = tpu.matmul %822, %840, %cst_225 {dimension_numbers = #tpu.dot_dimension_numbers<[1], [1], [0], [0], [0, 0, 1, 0], [], []>} : vector<3x32xf32>, vector<8x32xf32>, vector<3x8xf32> -> vector<3x8xf32>
    %cst_226 = arith.constant dense<0xFF800000> : vector<8xf32>
    %842 = vector.multi_reduction <maximumf>, %841, %cst_226 [0] : vector<3x8xf32> to vector<8xf32>
    %843 = vector.shape_cast %842 : vector<8xf32> to vector<1x8xf32>
    %cst_227 = arith.constant dense<0xFF800000> : vector<1xf32>
    %844 = vector.multi_reduction <maximumf>, %843, %cst_227 [1] : vector<1x8xf32> to vector<1xf32>
    %cst_228 = arith.constant 0xFF800000 : f32
    %845 = vector.broadcast %cst_228 : f32 to vector<1xf32>
    %846 = arith.maximumf %845, %844 : vector<1xf32>
    %847 = vector.shape_cast %846 : vector<1xf32> to vector<1x1xf32>
    %848 = vector.broadcast %847 : vector<1x1xf32> to vector<1x8xf32>
    %849 = arith.subf %843, %848 : vector<1x8xf32>
    %850 = math.exp %849 : vector<1x8xf32>
    %cst_229 = arith.constant dense<0.000000e+00> : vector<1xf32>
    %851 = vector.multi_reduction <add>, %850, %cst_229 [1] : vector<1x8xf32> to vector<1xf32>
    %852 = vector.shape_cast %851 : vector<1xf32> to vector<1x1xf32>
    %853 = vector.broadcast %852 : vector<1x1xf32> to vector<1x8xf32>
    %854 = arith.divf %850, %853 : vector<1x8xf32>
    %cst_230 = arith.constant dense<0xFF800000> : vector<3xf32>
    %855 = vector.multi_reduction <maximumf>, %841, %cst_230 [1] : vector<3x8xf32> to vector<3xf32>
    %856 = vector.shape_cast %855 : vector<3xf32> to vector<3x1xf32>
    %cst_231 = arith.constant dense<0xFF800000> : vector<1xf32>
    %857 = vector.multi_reduction <maximumf>, %856, %cst_231 [0] : vector<3x1xf32> to vector<1xf32>
    %cst_232 = arith.constant 0xFF800000 : f32
    %858 = vector.broadcast %cst_232 : f32 to vector<1xf32>
    %859 = arith.maximumf %858, %857 : vector<1xf32>
    %860 = vector.shape_cast %859 : vector<1xf32> to vector<1x1xf32>
    %861 = vector.broadcast %860 : vector<1x1xf32> to vector<3x1xf32>
    %862 = arith.subf %856, %861 : vector<3x1xf32>
    %863 = math.exp %862 : vector<3x1xf32>
    %cst_233 = arith.constant dense<0.000000e+00> : vector<1xf32>
    %864 = vector.multi_reduction <add>, %863, %cst_233 [0] : vector<3x1xf32> to vector<1xf32>
    %865 = vector.shape_cast %864 : vector<1xf32> to vector<1x1xf32>
    %866 = vector.broadcast %865 : vector<1x1xf32> to vector<3x1xf32>
    %867 = arith.divf %863, %866 : vector<3x1xf32>
    %cst_234 = arith.constant dense<0.000000e+00> : vector<1x32xf32>
    %868 = tpu.matmul %854, %819, %cst_234 {dimension_numbers = #tpu.dot_dimension_numbers<[1], [0], [0], [1], [0, 0, 1, 1], [], []>} : vector<1x8xf32>, vector<8x32xf32>, vector<1x32xf32> -> vector<1x32xf32>
    %cst_235 = arith.constant dense<0.000000e+00> : vector<1x32xf32>
    %869 = tpu.matmul %854, %838, %cst_235 {dimension_numbers = #tpu.dot_dimension_numbers<[1], [0], [0], [1], [0, 0, 1, 1], [], []>} : vector<1x8xf32>, vector<8x32xf32>, vector<1x32xf32> -> vector<1x32xf32>
    %870 = vector.broadcast %867 : vector<3x1xf32> to vector<3x32xf32>
    %871 = arith.mulf %870, %822 : vector<3x32xf32>
    %cst_236 = arith.constant dense<0.000000e+00> : vector<32xf32>
    %872 = vector.multi_reduction <add>, %871, %cst_236 [0] : vector<3x32xf32> to vector<32xf32>
    %873 = vector.shape_cast %872 : vector<32xf32> to vector<1x32xf32>
    %874 = vector.extract_strided_slice %541 {offsets = [1, 0], sizes = [1, 32], strides = [1, 1]} : vector<2x32xf32> to vector<1x32xf32>
    %875 = tpu.concatenate %874, %868, %869, %873 in 1 : vector<1x32xf32>, vector<1x32xf32>, vector<1x32xf32>, vector<1x32xf32> -> vector<1x128xf32>
    %876 = tpu.concatenate %817, %875 in 0 : vector<1x128xf32>, vector<1x128xf32> -> vector<2x128xf32>
    %c0_237 = arith.constant 0 : index
    %c0_238 = arith.constant 0 : index
    %877 = vector.load %arg11[%c0_237, %c0_238] : memref<128x4xf32, #tpu.memory_space<vmem>>, vector<128x4xf32>
    %cst_239 = arith.constant dense<0.000000e+00> : vector<2x4xf32>
    %878 = tpu.matmul %876, %877, %cst_239 {dimension_numbers = #tpu.dot_dimension_numbers<[1], [0], [0], [1], [0, 0, 1, 1], [], []>} : vector<2x128xf32>, vector<128x4xf32>, vector<2x4xf32> -> vector<2x4xf32>
    %c0_240 = arith.constant 0 : index
    %c0_241 = arith.constant 0 : index
    %879 = vector.load %arg12[%c0_240, %c0_241] : memref<1x4xf32, #tpu.memory_space<vmem>>, vector<1x4xf32>
    %880 = vector.broadcast %879 : vector<1x4xf32> to vector<2x4xf32>
    %881 = arith.addf %878, %880 : vector<2x4xf32>
    %c0_242 = arith.constant 0 : index
    %c0_243 = arith.constant 0 : index
    %882 = vector.load %arg13[%c0_242, %c0_243] : memref<2x4xf32, #tpu.memory_space<vmem>>, vector<2x4xf32>
    tpu.vector_store %arg13[%c0_242, %c0_243], %881 {strides = array<i32>} : memref<2x4xf32, #tpu.memory_space<vmem>>, vector<2x4xf32>,
    return
  }
}

</mosaic_0001>

<llo_original>
// kernel: cv_pay_forward.1
$region0: #{cv_pay_forward.1}
  #allocation0 [shape = 'u32[]', space=smem, size = 0x4, offset = 0x4, fixed_abs, tag = 'smem constant byte address 0x4 - core index']
  #allocation1 [shape = 'u32[144,128]{1,0:T(1,128)}', space=vmem, size = 0x12000, scoped, tag = 'internal scratch']
  #allocation2 [shape = 'f32[16,2,128]{2,1,0:T(2,128)}', space=vmem, size = 0x4000, scoped, tag = 'scratch operand']
  #allocation3 [shape = 'f32[8,6,128]{2,1,0:T(8,128)}', space=vmem, size = 0x8000, scoped, tag = 'scratch operand']
  #allocation4 [shape = 'f32[16,2,32]{2,1,0:T(2,128)}', space=vmem, size = 0x4000, scoped, tag = 'scratch operand']
  %s0 = inlined_call_operand.vmem [shape: f32[2,16,32], index: 0, kind: input, shape index: {}]
  %s1 = inlined_call_operand.vmem [shape: f32[6,8,32], index: 1, kind: input, shape index: {}]
  %s2 = inlined_call_operand.vmem [shape: f32[2,8,32], index: 2, kind: input, shape index: {}]
  %s3 = inlined_call_operand.vmem [shape: f32[32,128], index: 3, kind: input, shape index: {}]
  %s4 = inlined_call_operand.vmem [shape: f32[32,128], index: 4, kind: input, shape index: {}]
  %s5 = inlined_call_operand.vmem [shape: f32[1,128], index: 5, kind: input, shape index: {}]
  %s6 = inlined_call_operand.vmem [shape: f32[32,128], index: 6, kind: input, shape index: {}]
  %s7 = inlined_call_operand.vmem [shape: f32[32,128], index: 7, kind: input, shape index: {}]
  %s8 = inlined_call_operand.vmem [shape: f32[1,128], index: 8, kind: input, shape index: {}]
  %s9 = inlined_call_operand.vmem [shape: f32[32,64], index: 9, kind: input, shape index: {}]
  %s10 = inlined_call_operand.vmem [shape: f32[32,32], index: 10, kind: input, shape index: {}]
  %s11 = inlined_call_operand.vmem [shape: f32[128,4], index: 11, kind: input, shape index: {}]
  %s12 = inlined_call_operand.vmem [shape: f32[1,4], index: 12, kind: input, shape index: {}]
  %s13 = inlined_call_operand.vmem [shape: f32[2,4], index: 13, kind: output, shape index: {}]
  %s14 = sld [smem:[#allocation0]]
  $region62: #{cv_pay_forward.1} parent=0
    _
  %s16 = ssub.s32 1, %s14
  %s17 = scalar_select 0, %s16, %s14
  // Predicated region
  $region2: #{cv_pay_forward.1} parent=0 // pred_check
    _
  $region3: #{cv_pay_forward.1} parent=0 // pred_check_branch
    %19 = sbr.rel (0) target = $region5
  $region4: #{cv_pay_forward.1} parent=0 // pred_region
    _
  $region5: #{cv_pay_forward.1} parent=0 // pred_fallthru
    _
  // Predicated region
  $region6: #{cv_pay_forward.1} parent=0 // pred_check
    _
  $region7: #{cv_pay_forward.1} parent=0 // pred_check_branch
    %21 = sbr.rel (0) target = $region9
  $region8: #{cv_pay_forward.1} parent=0 // pred_region
    _
  $region9: #{cv_pay_forward.1} parent=0 // pred_fallthru
    _
  // Predicated region
  $region10: #{cv_pay_forward.1} parent=0 // pred_check
    _
  $region11: #{cv_pay_forward.1} parent=0 // pred_check_branch
    %23 = sbr.rel (0) target = $region13
  $region12: #{cv_pay_forward.1} parent=0 // pred_region
    _
  $region13: #{cv_pay_forward.1} parent=0 // pred_fallthru
    _
  // Predicated region
  $region14: #{cv_pay_forward.1} parent=0 // pred_check
    _
  $region15: #{cv_pay_forward.1} parent=0 // pred_check_branch
    %25 = sbr.rel (0) target = $region17
  $region16: #{cv_pay_forward.1} parent=0 // pred_region
    _
  $region17: #{cv_pay_forward.1} parent=0 // pred_fallthru
    _
  // Predicated region
  $region18: #{cv_pay_forward.1} parent=0 // pred_check
    _
  $region19: #{cv_pay_forward.1} parent=0 // pred_check_branch
    %27 = sbr.rel (0) target = $region21
  $region20: #{cv_pay_forward.1} parent=0 // pred_region
    _
  $region21: #{cv_pay_forward.1} parent=0 // pred_fallthru
    _
  // Predicated region
  $region22: #{cv_pay_forward.1} parent=0 // pred_check
    _
  $region23: #{cv_pay_forward.1} parent=0 // pred_check_branch
    %29 = sbr.rel (0) target = $region25
  $region24: #{cv_pay_forward.1} parent=0 // pred_region
    _
  $region25: #{cv_pay_forward.1} parent=0 // pred_fallthru
    _
  // Predicated region
  $region26: #{cv_pay_forward.1} parent=0 // pred_check
    _
  $region27: #{cv_pay_forward.1} parent=0 // pred_check_branch
    %31 = sbr.rel (0) target = $region29
  $region28: #{cv_pay_forward.1} parent=0 // pred_region
    _
  $region29: #{cv_pay_forward.1} parent=0 // pred_fallthru
    _
  // Predicated region
  $region30: #{cv_pay_forward.1} parent=0 // pred_check
    _
  $region31: #{cv_pay_forward.1} parent=0 // pred_check_branch
    %33 = sbr.rel (0) target = $region33
  $region32: #{cv_pay_forward.1} parent=0 // pred_region
    _
  $region33: #{cv_pay_forward.1} parent=0 // pred_fallthru
    _
  // Predicated region
  $region34: #{cv_pay_forward.1} parent=0 // pred_check
    _
  $region35: #{cv_pay_forward.1} parent=0 // pred_check_branch
    %35 = sbr.rel (0) target = $region37
  $region36: #{cv_pay_forward.1} parent=0 // pred_region
    _
  $region37: #{cv_pay_forward.1} parent=0 // pred_fallthru
    _
  // Predicated region
  $region38: #{cv_pay_forward.1} parent=0 // pred_check
    _
  $region39: #{cv_pay_forward.1} parent=0 // pred_check_branch
    %37 = sbr.rel (0) target = $region41
  $region40: #{cv_pay_forward.1} parent=0 // pred_region
    _
  $region41: #{cv_pay_forward.1} parent=0 // pred_fallthru
    _
  // Predicated region
  $region42: #{cv_pay_forward.1} parent=0 // pred_check
    _
  $region43: #{cv_pay_forward.1} parent=0 // pred_check_branch
    %39 = sbr.rel (0) target = $region45
  $region44: #{cv_pay_forward.1} parent=0 // pred_region
    _
  $region45: #{cv_pay_forward.1} parent=0 // pred_fallthru
    _
  // Predicated region
  $region46: #{cv_pay_forward.1} parent=0 // pred_check
    _
  $region47: #{cv_pay_forward.1} parent=0 // pred_check_branch
    %41 = sbr.rel (0) target = $region49
  $region48: #{cv_pay_forward.1} parent=0 // pred_region
    _
  $region49: #{cv_pay_forward.1} parent=0 // pred_fallthru
    _
  // Predicated region
  $region50: #{cv_pay_forward.1} parent=0 // pred_check
    _
  $region51: #{cv_pay_forward.1} parent=0 // pred_check_branch
    %43 = sbr.rel (0) target = $region53
  $region52: #{cv_pay_forward.1} parent=0 // pred_region
    _
  $region53: #{cv_pay_forward.1} parent=0 // pred_fallthru
    _
  %v44 = vlaneseq
  %v45 = vand.u32 %v44, 127
  %vm46 = vcmp.ge.s32.totalorder %v45, 64
  %vm47 = vcmp.lt.s32.totalorder %v45, 96
  %vm48 = vmand %vm46, %vm47
  %v49 = vsel %vm48, 2.0, 1.0
  %v50 = vsel %vm48, -1.0, 0.0
  %v51 = vld [vmem:[%s0] sm:$0xff]
  %v52 = vld [vmem:[%s0 + $0x8] sm:$0xff]
  %v53 = vld [vmem:[%s0 + $0x10] sm:$0xff]
  %v54 = vld [vmem:[%s0 + $0x18] sm:$0xff]
  %v55 = vld [vmem:[%s3] sm:$0xff]
  %v56 = vld [vmem:[%s3 + $0x8] sm:$0xff]
  %v57 = vld [vmem:[%s3 + $0x10] sm:$0xff]
  %v58 = vld [vmem:[%s3 + $0x18] sm:$0xff]
  %v59 = vld [vmem:[%s5] sm:$0x1]
  %v61 = vlaneseq
  %v62 = vshrl.u32 %v61, 7
  %v63 = vsub.s32 0, %v62
  %v64 = vrot.slane %v59, %v63
  %vm66 = vcmask 261120
  %v68 = vsel %vm66, %v51, 0
  %v71 = vsel %vm66, %v52, 0
  %v74 = vsel %vm66, %v53, 0
  %v77 = vsel %vm66, %v54, 0
  %79 = vmatprep.subr.mxu0 0.0
  %80 = vmatpush1.msra.mxu0 %v55
  %81 = vmatprep.subr.mxu0 0.0
  %82 = vmatpush1.msra.mxu0 %v56
  %83 = vmatprep.subr.mxu0 0.0
  %84 = vmatpush1.msra.mxu0 %v57
  %85 = vmatprep.subr.mxu0 0.0
  %86 = vmatpush1.msra.mxu0 %v58
  %87 = vmatprep.subr.mxu0 0.0
  %88 = vmatpush1.msra.mxu0 0.0
  %89 = vmatprep.subr.mxu0 0.0
  %90 = vmatpush1.msra.mxu0 0.0
  %91 = vmatprep.subr.mxu0 0.0
  %92 = vmatpush1.msra.mxu0 0.0
  %93 = vmatprep.subr.mxu0 0.0
  %94 = vmatpush1.msra.mxu0 0.0
  %95 = vmatprep.subr.mxu0 0.0
  %96 = vmatpush1.msra.mxu0 0.0
  %97 = vmatprep.subr.mxu0 0.0
  %98 = vmatpush1.msra.mxu0 0.0
  %99 = vmatprep.subr.mxu0 0.0
  %100 = vmatpush1.msra.mxu0 0.0
  %101 = vmatprep.subr.mxu0 0.0
  %102 = vmatpush1.msra.mxu0 0.0
  %103 = vmatprep.subr.mxu0 0.0
  %104 = vmatpush1.msra.mxu0 0.0
  %105 = vmatprep.subr.mxu0 0.0
  %106 = vmatpush1.msra.mxu0 0.0
  %107 = vmatprep.subr.mxu0 0.0
  %108 = vmatpush1.msra.mxu0 0.0
  %109 = vmatprep.subr.mxu0 0.0
  %110 = vmatpush1.msra.mxu0 0.0
  %111 = vmatprep.subr.mxu0 0.0
  %112 = vmatpush1.msra.mxu0 0.0
  %113 = vmatprep.subr.mxu0 0.0
  %114 = vmatpush1.msra.mxu0 0.0
  %115 = vmatprep.subr.mxu0 0.0
  %116 = vmatpush1.msra.mxu0 0.0
  %117 = vmatprep.subr.mxu0 0.0
  %118 = vmatpush1.msra.mxu0 0.0
  %119 = vmatprep.subr.mxu0 0.0
  %120 = vmatpush1.msra.mxu0 0.0
  %121 = vmatprep.subr.mxu0 0.0
  %122 = vmatpush1.msra.mxu0 0.0
  %123 = vmatprep.subr.mxu0 0.0
  %124 = vmatpush1.msra.mxu0 0.0
  %125 = vmatprep.subr.mxu0 0.0
  %126 = vmatpush1.msra.mxu0 0.0
  %127 = vmatprep.subr.mxu0 0.0
  %128 = vmatpush1.msra.mxu0 0.0
  %129 = vmatprep.subr.mxu0 0.0
  %130 = vmatpush1.msra.mxu0 0.0
  %131 = vmatprep.subr.mxu0 0.0
  %132 = vmatpush1.msra.mxu0 0.0
  %133 = vmatprep.subr.mxu0 0.0
  %134 = vmatpush1.msra.mxu0 0.0
  %135 = vmatprep.subr.mxu0 0.0
  %136 = vmatpush1.msra.mxu0 0.0
  %137 = vmatprep.subr.mxu0 0.0
  %138 = vmatpush1.msra.mxu0 0.0
  %139 = vmatprep.subr.mxu0 0.0
  %140 = vmatpush1.msra.mxu0 0.0
  %141 = vmatprep.subr.mxu0 0.0
  %142 = vmatpush1.msra.mxu0 0.0
  %143 = vmatprep.mubr.f32.mxu0 0.0
  %144 = vmatmul.mubr.f32.gmra.mrb[0].mxu0 %v68
  %v145 = vpop.f32.mrb[0].mxu0
  %v146 = vadd.f32 %v64, %v145
  %v147 = vpop.f32.mrb[0].mxu0
  %148 = vmatprep.mubr.f32.mxu0 0.0
  %149 = vmatmul.mubr.f32.gmra.mrb[0].mxu0 %v71
  %v150 = vpop.f32.mrb[0].mxu0
  %v151 = vadd.f32 %v64, %v150
  %v152 = vpop.f32.mrb[0].mxu0
  %153 = vmatprep.mubr.f32.mxu0 0.0
  %154 = vmatmul.mubr.f32.gmra.mrb[0].mxu0 %v74
  %v155 = vpop.f32.mrb[0].mxu0
  %v156 = vadd.f32 %v64, %v155
  %v157 = vpop.f32.mrb[0].mxu0
  %158 = vmatprep.mubr.f32.mxu0 0.0
  %159 = vmatmul.mubr.f32.gmra.mrb[0].mxu0 %v77
  %v160 = vpop.f32.mrb[0].mxu0
  %v161 = vadd.f32 %v64, %v160
  %v162 = vpop.f32.mrb[0].mxu0
  %163 = vdwg.mxu0
  %v166 = vcombine.high %v146, %v146
  %v168 = vunpack.c.l.s4 1966171168
  %v169 = vunpack.c.0.s8 %v168
  %v170 = vlaneseq
  %v171 = vshrl.u32 %v170, 7
  %v172 = vsub.s32 %v169, %v171
  %v173 = vrot.slane %v146, %v172
  %v175 = vunpack.c.l.s4 1966171168
  %v176 = vunpack.c.0.s8 %v175
  %v177 = vlaneseq
  %v178 = vshrl.u32 %v177, 7
  %v179 = vsub.s32 %v176, %v178
  %v180 = vrot.slane %v166, %v179
  %v181 = vcombine.high %v173, %v173
  %v182 = vcombine.high %v180, %v180
  %v184 = vunpack.c.l.s4 1966171168
  %v185 = vunpack.c.0.s8 %v184
  %v186 = vlaneseq
  %v187 = vshrl.u32 %v186, 7
  %v188 = vsub.s32 %v185, %v187
  %v189 = vrot.slane %v173, %v188
  %v191 = vunpack.c.l.s4 1966171168
  %v192 = vunpack.c.0.s8 %v191
  %v193 = vlaneseq
  %v194 = vshrl.u32 %v193, 7
  %v195 = vsub.s32 %v192, %v194
  %v196 = vrot.slane %v180, %v195
  %v198 = vunpack.c.l.s4 1966171168
  %v199 = vunpack.c.0.s8 %v198
  %v200 = vlaneseq
  %v201 = vshrl.u32 %v200, 7
  %v202 = vsub.s32 %v199, %v201
  %v203 = vrot.slane %v181, %v202
  %v205 = vunpack.c.l.s4 1966171168
  %v206 = vunpack.c.0.s8 %v205
  %v207 = vlaneseq
  %v208 = vshrl.u32 %v207, 7
  %v209 = vsub.s32 %v206, %v208
  %v210 = vrot.slane %v182, %v209
  %v211 = vcombine.high %v189, %v189
  %v212 = vcombine.high %v196, %v196
  %v213 = vcombine.high %v203, %v203
  %v214 = vcombine.high %v210, %v210
  %v215 = vcombine.high %v151, %v151
  %v217 = vunpack.c.l.s4 1966171168
  %v218 = vunpack.c.0.s8 %v217
  %v219 = vlaneseq
  %v220 = vshrl.u32 %v219, 7
  %v221 = vsub.s32 %v218, %v220
  %v222 = vrot.slane %v151, %v221
  %v224 = vunpack.c.l.s4 1966171168
  %v225 = vunpack.c.0.s8 %v224
  %v226 = vlaneseq
  %v227 = vshrl.u32 %v226, 7
  %v228 = vsub.s32 %v225, %v227
  %v229 = vrot.slane %v215, %v228
  %v230 = vcombine.high %v222, %v222
  %v231 = vcombine.high %v229, %v229
  %v233 = vunpack.c.l.s4 1966171168
  %v234 = vunpack.c.0.s8 %v233
  %v235 = vlaneseq
  %v236 = vshrl.u32 %v235, 7
  %v237 = vsub.s32 %v234, %v236
  %v238 = vrot.slane %v222, %v237
  %v240 = vunpack.c.l.s4 1966171168
  %v241 = vunpack.c.0.s8 %v240
  %v242 = vlaneseq
  %v243 = vshrl.u32 %v242, 7
  %v244 = vsub.s32 %v241, %v243
  %v245 = vrot.slane %v229, %v244
  %v247 = vunpack.c.l.s4 1966171168
  %v248 = vunpack.c.0.s8 %v247
  %v249 = vlaneseq
  %v250 = vshrl.u32 %v249, 7
  %v251 = vsub.s32 %v248, %v250
  %v252 = vrot.slane %v230, %v251
  %v254 = vunpack.c.l.s4 1966171168
  %v255 = vunpack.c.0.s8 %v254
  %v256 = vlaneseq
  %v257 = vshrl.u32 %v256, 7
  %v258 = vsub.s32 %v255, %v257
  %v259 = vrot.slane %v231, %v258
  %v260 = vcombine.high %v238, %v238
  %v261 = vcombine.high %v245, %v245
  %v262 = vcombine.high %v252, %v252
  %v263 = vcombine.high %v259, %v259
  %280 = vst [vmem:[#allocation2] sm:$0x1] %v189
  %281 = vst [vmem:[#allocation2 + $0x2] sm:$0x1] %v203
  %282 = vst [vmem:[#allocation2 + $0x4] sm:$0x1] %v211
  %283 = vst [vmem:[#allocation2 + $0x6] sm:$0x1] %v213
  %284 = vst [vmem:[#allocation2 + $0x8] sm:$0x1] %v196
  %285 = vst [vmem:[#allocation2 + $0xa] sm:$0x1] %v210
  %286 = vst [vmem:[#allocation2 + $0xc] sm:$0x1] %v212
  %287 = vst [vmem:[#allocation2 + $0xe] sm:$0x1] %v214
  %288 = vst [vmem:[#allocation2 + $0x10] sm:$0x1] %v238
  %289 = vst [vmem:[#allocation2 + $0x12] sm:$0x1] %v252
  %290 = vst [vmem:[#allocation2 + $0x14] sm:$0x1] %v260
  %291 = vst [vmem:[#allocation2 + $0x16] sm:$0x1] %v262
  %292 = vst [vmem:[#allocation2 + $0x18] sm:$0x1] %v245
  %293 = vst [vmem:[#allocation2 + $0x1a] sm:$0x1] %v259
  %294 = vst [vmem:[#allocation2 + $0x1c] sm:$0x1] %v261
  %295 = vst [vmem:[#allocation2 + $0x1e] sm:$0x1] %v263
  %v298 = vcombine.high %v156, %v156
  %v300 = vunpack.c.l.s4 1966171168
  %v301 = vunpack.c.0.s8 %v300
  %v302 = vlaneseq
  %v303 = vshrl.u32 %v302, 7
  %v304 = vsub.s32 %v301, %v303
  %v305 = vrot.slane %v156, %v304
  %v307 = vunpack.c.l.s4 1966171168
  %v308 = vunpack.c.0.s8 %v307
  %v309 = vlaneseq
  %v310 = vshrl.u32 %v309, 7
  %v311 = vsub.s32 %v308, %v310
  %v312 = vrot.slane %v298, %v311
  %v313 = vcombine.high %v305, %v305
  %v314 = vcombine.high %v312, %v312
  %v316 = vunpack.c.l.s4 1966171168
  %v317 = vunpack.c.0.s8 %v316
  %v318 = vlaneseq
  %v319 = vshrl.u32 %v318, 7
  %v320 = vsub.s32 %v317, %v319
  %v321 = vrot.slane %v305, %v320
  %v323 = vunpack.c.l.s4 1966171168
  %v324 = vunpack.c.0.s8 %v323
  %v325 = vlaneseq
  %v326 = vshrl.u32 %v325, 7
  %v327 = vsub.s32 %v324, %v326
  %v328 = vrot.slane %v312, %v327
  %v330 = vunpack.c.l.s4 1966171168
  %v331 = vunpack.c.0.s8 %v330
  %v332 = vlaneseq
  %v333 = vshrl.u32 %v332, 7
  %v334 = vsub.s32 %v331, %v333
  %v335 = vrot.slane %v313, %v334
  %v337 = vunpack.c.l.s4 1966171168
  %v338 = vunpack.c.0.s8 %v337
  %v339 = vlaneseq
  %v340 = vshrl.u32 %v339, 7
  %v341 = vsub.s32 %v338, %v340
  %v342 = vrot.slane %v314, %v341
  %v343 = vcombine.high %v321, %v321
  %v344 = vcombine.high %v328, %v328
  %v345 = vcombine.high %v335, %v335
  %v346 = vcombine.high %v342, %v342
  %v347 = vcombine.high %v161, %v161
  %v349 = vunpack.c.l.s4 1966171168
  %v350 = vunpack.c.0.s8 %v349
  %v351 = vlaneseq
  %v352 = vshrl.u32 %v351, 7
  %v353 = vsub.s32 %v350, %v352
  %v354 = vrot.slane %v161, %v353
  %v356 = vunpack.c.l.s4 1966171168
  %v357 = vunpack.c.0.s8 %v356
  %v358 = vlaneseq
  %v359 = vshrl.u32 %v358, 7
  %v360 = vsub.s32 %v357, %v359
  %v361 = vrot.slane %v347, %v360
  %v362 = vcombine.high %v354, %v354
  %v363 = vcombine.high %v361, %v361
  %v365 = vunpack.c.l.s4 1966171168
  %v366 = vunpack.c.0.s8 %v365
  %v367 = vlaneseq
  %v368 = vshrl.u32 %v367, 7
  %v369 = vsub.s32 %v366, %v368
  %v370 = vrot.slane %v354, %v369
  %v372 = vunpack.c.l.s4 1966171168
  %v373 = vunpack.c.0.s8 %v372
  %v374 = vlaneseq
  %v375 = vshrl.u32 %v374, 7
  %v376 = vsub.s32 %v373, %v375
  %v377 = vrot.slane %v361, %v376
  %v379 = vunpack.c.l.s4 1966171168
  %v380 = vunpack.c.0.s8 %v379
  %v381 = vlaneseq
  %v382 = vshrl.u32 %v381, 7
  %v383 = vsub.s32 %v380, %v382
  %v384 = vrot.slane %v362, %v383
  %v386 = vunpack.c.l.s4 1966171168
  %v387 = vunpack.c.0.s8 %v386
  %v388 = vlaneseq
  %v389 = vshrl.u32 %v388, 7
  %v390 = vsub.s32 %v387, %v389
  %v391 = vrot.slane %v363, %v390
  %v392 = vcombine.high %v370, %v370
  %v393 = vcombine.high %v377, %v377
  %v394 = vcombine.high %v384, %v384
  %v395 = vcombine.high %v391, %v391
  %412 = vst [vmem:[#allocation2 + $0x1] sm:$0x1] %v321
  %413 = vst [vmem:[#allocation2 + $0x3] sm:$0x1] %v335
  %414 = vst [vmem:[#allocation2 + $0x5] sm:$0x1] %v343
  %415 = vst [vmem:[#allocation2 + $0x7] sm:$0x1] %v345
  %416 = vst [vmem:[#allocation2 + $0x9] sm:$0x1] %v328
  %417 = vst [vmem:[#allocation2 + $0xb] sm:$0x1] %v342
  %418 = vst [vmem:[#allocation2 + $0xd] sm:$0x1] %v344
  %419 = vst [vmem:[#allocation2 + $0xf] sm:$0x1] %v346
  %420 = vst [vmem:[#allocation2 + $0x11] sm:$0x1] %v370
  %421 = vst [vmem:[#allocation2 + $0x13] sm:$0x1] %v384
  %422 = vst [vmem:[#allocation2 + $0x15] sm:$0x1] %v392
  %423 = vst [vmem:[#allocation2 + $0x17] sm:$0x1] %v394
  %424 = vst [vmem:[#allocation2 + $0x19] sm:$0x1] %v377
  %425 = vst [vmem:[#allocation2 + $0x1b] sm:$0x1] %v391
  %426 = vst [vmem:[#allocation2 + $0x1d] sm:$0x1] %v393
  %427 = vst [vmem:[#allocation2 + $0x1f] sm:$0x1] %v395
  %v428 = vld [vmem:[%s1] sm:$0xff]
  %v429 = vld [vmem:[%s1 + $0x8] sm:$0xff]
  %v430 = vld [vmem:[%s1 + $0x10] sm:$0xff]
  %v431 = vld [vmem:[%s1 + $0x18] sm:$0xff]
  %v432 = vld [vmem:[%s1 + $0x20] sm:$0xff]
  %v433 = vld [vmem:[%s1 + $0x28] sm:$0xff]
  %v434 = vld [vmem:[%s6] sm:$0xff]
  %v435 = vld [vmem:[%s6 + $0x8] sm:$0xff]
  %v436 = vld [vmem:[%s6 + $0x10] sm:$0xff]
  %v437 = vld [vmem:[%s6 + $0x18] sm:$0xff]
  %v438 = vld [vmem:[%s8] sm:$0x1]
  %v440 = vlaneseq
  %v441 = vshrl.u32 %v440, 7
  %v442 = vsub.s32 0, %v441
  %v443 = vrot.slane %v438, %v442
  %v446 = vsel %vm66, %v428, 0
  %v449 = vsel %vm66, %v429, 0
  %v452 = vsel %vm66, %v430, 0
  %v455 = vsel %vm66, %v431, 0
  %v458 = vsel %vm66, %v432, 0
  %v461 = vsel %vm66, %v433, 0
  %463 = vmatprep.subr.mxu0 0.0
  %464 = vmatpush1.msra.mxu0 %v434
  %465 = vmatprep.subr.mxu0 0.0
  %466 = vmatpush1.msra.mxu0 %v435
  %467 = vmatprep.subr.mxu0 0.0
  %468 = vmatpush1.msra.mxu0 %v436
  %469 = vmatprep.subr.mxu0 0.0
  %470 = vmatpush1.msra.mxu0 %v437
  %471 = vmatprep.subr.mxu0 0.0
  %472 = vmatpush1.msra.mxu0 0.0
  %473 = vmatprep.subr.mxu0 0.0
  %474 = vmatpush1.msra.mxu0 0.0
  %475 = vmatprep.subr.mxu0 0.0
  %476 = vmatpush1.msra.mxu0 0.0
  %477 = vmatprep.subr.mxu0 0.0
  %478 = vmatpush1.msra.mxu0 0.0
  %479 = vmatprep.subr.mxu0 0.0
  %480 = vmatpush1.msra.mxu0 0.0
  %481 = vmatprep.subr.mxu0 0.0
  %482 = vmatpush1.msra.mxu0 0.0
  %483 = vmatprep.subr.mxu0 0.0
  %484 = vmatpush1.msra.mxu0 0.0
  %485 = vmatprep.subr.mxu0 0.0
  %486 = vmatpush1.msra.mxu0 0.0
  %487 = vmatprep.subr.mxu0 0.0
  %488 = vmatpush1.msra.mxu0 0.0
  %489 = vmatprep.subr.mxu0 0.0
  %490 = vmatpush1.msra.mxu0 0.0
  %491 = vmatprep.subr.mxu0 0.0
  %492 = vmatpush1.msra.mxu0 0.0
  %493 = vmatprep.subr.mxu0 0.0
  %494 = vmatpush1.msra.mxu0 0.0
  %495 = vmatprep.subr.mxu0 0.0
  %496 = vmatpush1.msra.mxu0 0.0
  %497 = vmatprep.subr.mxu0 0.0
  %498 = vmatpush1.msra.mxu0 0.0
  %499 = vmatprep.subr.mxu0 0.0
  %500 = vmatpush1.msra.mxu0 0.0
  %501 = vmatprep.subr.mxu0 0.0
  %502 = vmatpush1.msra.mxu0 0.0
  %503 = vmatprep.subr.mxu0 0.0
  %504 = vmatpush1.msra.mxu0 0.0
  %505 = vmatprep.subr.mxu0 0.0
  %506 = vmatpush1.msra.mxu0 0.0
  %507 = vmatprep.subr.mxu0 0.0
  %508 = vmatpush1.msra.mxu0 0.0
  %509 = vmatprep.subr.mxu0 0.0
  %510 = vmatpush1.msra.mxu0 0.0
  %511 = vmatprep.subr.mxu0 0.0
  %512 = vmatpush1.msra.mxu0 0.0
  %513 = vmatprep.subr.mxu0 0.0
  %514 = vmatpush1.msra.mxu0 0.0
  %515 = vmatprep.subr.mxu0 0.0
  %516 = vmatpush1.msra.mxu0 0.0
  %517 = vmatprep.subr.mxu0 0.0
  %518 = vmatpush1.msra.mxu0 0.0
  %519 = vmatprep.subr.mxu0 0.0
  %520 = vmatpush1.msra.mxu0 0.0
  %521 = vmatprep.subr.mxu0 0.0
  %522 = vmatpush1.msra.mxu0 0.0
  %523 = vmatprep.subr.mxu0 0.0
  %524 = vmatpush1.msra.mxu0 0.0
  %525 = vmatprep.subr.mxu0 0.0
  %526 = vmatpush1.msra.mxu0 0.0
  %527 = vmatprep.mubr.f32.mxu0 0.0
  %528 = vmatmul.mubr.f32.gmra.mrb[0].mxu0 %v446
  %v529 = vpop.f32.mrb[0].mxu0
  %v530 = vadd.f32 %v443, %v529
  %v531 = vpop.f32.mrb[0].mxu0
  %532 = vmatprep.mubr.f32.mxu0 0.0
  %533 = vmatmul.mubr.f32.gmra.mrb[0].mxu0 %v449
  %v534 = vpop.f32.mrb[0].mxu0
  %v535 = vadd.f32 %v443, %v534
  %v536 = vpop.f32.mrb[0].mxu0
  %537 = vmatprep.mubr.f32.mxu0 0.0
  %538 = vmatmul.mubr.f32.gmra.mrb[0].mxu0 %v452
  %v539 = vpop.f32.mrb[0].mxu0
  %v540 = vadd.f32 %v443, %v539
  %v541 = vpop.f32.mrb[0].mxu0
  %542 = vmatprep.mubr.f32.mxu0 0.0
  %543 = vmatmul.mubr.f32.gmra.mrb[0].mxu0 %v455
  %v544 = vpop.f32.mrb[0].mxu0
  %v545 = vadd.f32 %v443, %v544
  %v546 = vpop.f32.mrb[0].mxu0
  %547 = vmatprep.mubr.f32.mxu0 0.0
  %548 = vmatmul.mubr.f32.gmra.mrb[0].mxu0 %v458
  %v549 = vpop.f32.mrb[0].mxu0
  %v550 = vadd.f32 %v443, %v549
  %v551 = vpop.f32.mrb[0].mxu0
  %552 = vmatprep.mubr.f32.mxu0 0.0
  %553 = vmatmul.mubr.f32.gmra.mrb[0].mxu0 %v461
  %v554 = vpop.f32.mrb[0].mxu0
  %v555 = vadd.f32 %v443, %v554
  %v556 = vpop.f32.mrb[0].mxu0
  %557 = vdwg.mxu0
  %v559 = vcombine.high %v530, %v530
  %v561 = vunpack.c.l.s4 1966171168
  %v562 = vunpack.c.0.s8 %v561
  %v563 = vlaneseq
  %v564 = vshrl.u32 %v563, 7
  %v565 = vsub.s32 %v562, %v564
  %v566 = vrot.slane %v530, %v565
  %v568 = vunpack.c.l.s4 1966171168
  %v569 = vunpack.c.0.s8 %v568
  %v570 = vlaneseq
  %v571 = vshrl.u32 %v570, 7
  %v572 = vsub.s32 %v569, %v571
  %v573 = vrot.slane %v559, %v572
  %v574 = vcombine.high %v566, %v566
  %v575 = vcombine.high %v573, %v573
  %v577 = vunpack.c.l.s4 1966171168
  %v578 = vunpack.c.0.s8 %v577
  %v579 = vlaneseq
  %v580 = vshrl.u32 %v579, 7
  %v581 = vsub.s32 %v578, %v580
  %v582 = vrot.slane %v566, %v581
  %v584 = vunpack.c.l.s4 1966171168
  %v585 = vunpack.c.0.s8 %v584
  %v586 = vlaneseq
  %v587 = vshrl.u32 %v586, 7
  %v588 = vsub.s32 %v585, %v587
  %v589 = vrot.slane %v573, %v588
  %v591 = vunpack.c.l.s4 1966171168
  %v592 = vunpack.c.0.s8 %v591
  %v593 = vlaneseq
  %v594 = vshrl.u32 %v593, 7
  %v595 = vsub.s32 %v592, %v594
  %v596 = vrot.slane %v574, %v595
  %v598 = vunpack.c.l.s4 1966171168
  %v599 = vunpack.c.0.s8 %v598
  %v600 = vlaneseq
  %v601 = vshrl.u32 %v600, 7
  %v602 = vsub.s32 %v599, %v601
  %v603 = vrot.slane %v575, %v602
  %v604 = vcombine.high %v582, %v582
  %v605 = vcombine.high %v589, %v589
  %v606 = vcombine.high %v596, %v596
  %v607 = vcombine.high %v603, %v603
  %616 = vst [vmem:[#allocation3] sm:$0x1] %v582
  %617 = vst [vmem:[#allocation3 + $0x8] sm:$0x1] %v596
  %618 = vst [vmem:[#allocation3 + $0x10] sm:$0x1] %v604
  %619 = vst [vmem:[#allocation3 + $0x18] sm:$0x1] %v606
  %620 = vst [vmem:[#allocation3 + $0x20] sm:$0x1] %v589
  %621 = vst [vmem:[#allocation3 + $0x28] sm:$0x1] %v603
  %622 = vst [vmem:[#allocation3 + $0x30] sm:$0x1] %v605
  %623 = vst [vmem:[#allocation3 + $0x38] sm:$0x1] %v607
  %v625 = vcombine.high %v535, %v535
  %v627 = vunpack.c.l.s4 1966171168
  %v628 = vunpack.c.0.s8 %v627
  %v629 = vlaneseq
  %v630 = vshrl.u32 %v629, 7
  %v631 = vsub.s32 %v628, %v630
  %v632 = vrot.slane %v535, %v631
  %v634 = vunpack.c.l.s4 1966171168
  %v635 = vunpack.c.0.s8 %v634
  %v636 = vlaneseq
  %v637 = vshrl.u32 %v636, 7
  %v638 = vsub.s32 %v635, %v637
  %v639 = vrot.slane %v625, %v638
  %v640 = vcombine.high %v632, %v632
  %v641 = vcombine.high %v639, %v639
  %v643 = vunpack.c.l.s4 1966171168
  %v644 = vunpack.c.0.s8 %v643
  %v645 = vlaneseq
  %v646 = vshrl.u32 %v645, 7
  %v647 = vsub.s32 %v644, %v646
  %v648 = vrot.slane %v632, %v647
  %v650 = vunpack.c.l.s4 1966171168
  %v651 = vunpack.c.0.s8 %v650
  %v652 = vlaneseq
  %v653 = vshrl.u32 %v652, 7
  %v654 = vsub.s32 %v651, %v653
  %v655 = vrot.slane %v639, %v654
  %v657 = vunpack.c.l.s4 1966171168
  %v658 = vunpack.c.0.s8 %v657
  %v659 = vlaneseq
  %v660 = vshrl.u32 %v659, 7
  %v661 = vsub.s32 %v658, %v660
  %v662 = vrot.slane %v640, %v661
  %v664 = vunpack.c.l.s4 1966171168
  %v665 = vunpack.c.0.s8 %v664
  %v666 = vlaneseq
  %v667 = vshrl.u32 %v666, 7
  %v668 = vsub.s32 %v665, %v667
  %v669 = vrot.slane %v641, %v668
  %v670 = vcombine.high %v648, %v648
  %v671 = vcombine.high %v655, %v655
  %v672 = vcombine.high %v662, %v662
  %v673 = vcombine.high %v669, %v669
  %682 = vst [vmem:[#allocation3 + $0x1] sm:$0x1] %v648
  %683 = vst [vmem:[#allocation3 + $0x9] sm:$0x1] %v662
  %684 = vst [vmem:[#allocation3 + $0x11] sm:$0x1] %v670
  %685 = vst [vmem:[#allocation3 + $0x19] sm:$0x1] %v672
  %686 = vst [vmem:[#allocation3 + $0x21] sm:$0x1] %v655
  %687 = vst [vmem:[#allocation3 + $0x29] sm:$0x1] %v669
  %688 = vst [vmem:[#allocation3 + $0x31] sm:$0x1] %v671
  %689 = vst [vmem:[#allocation3 + $0x39] sm:$0x1] %v673
  %v691 = vcombine.high %v540, %v540
  %v693 = vunpack.c.l.s4 1966171168
  %v694 = vunpack.c.0.s8 %v693
  %v695 = vlaneseq
  %v696 = vshrl.u32 %v695, 7
  %v697 = vsub.s32 %v694, %v696
  %v698 = vrot.slane %v540, %v697
  %v700 = vunpack.c.l.s4 1966171168
  %v701 = vunpack.c.0.s8 %v700
  %v702 = vlaneseq
  %v703 = vshrl.u32 %v702, 7
  %v704 = vsub.s32 %v701, %v703
  %v705 = vrot.slane %v691, %v704
  %v706 = vcombine.high %v698, %v698
  %v707 = vcombine.high %v705, %v705
  %v709 = vunpack.c.l.s4 1966171168
  %v710 = vunpack.c.0.s8 %v709
  %v711 = vlaneseq
  %v712 = vshrl.u32 %v711, 7
  %v713 = vsub.s32 %v710, %v712
  %v714 = vrot.slane %v698, %v713
  %v716 = vunpack.c.l.s4 1966171168
  %v717 = vunpack.c.0.s8 %v716
  %v718 = vlaneseq
  %v719 = vshrl.u32 %v718, 7
  %v720 = vsub.s32 %v717, %v719
  %v721 = vrot.slane %v705, %v720
  %v723 = vunpack.c.l.s4 1966171168
  %v724 = vunpack.c.0.s8 %v723
  %v725 = vlaneseq
  %v726 = vshrl.u32 %v725, 7
  %v727 = vsub.s32 %v724, %v726
  %v728 = vrot.slane %v706, %v727
  %v730 = vunpack.c.l.s4 1966171168
  %v731 = vunpack.c.0.s8 %v730
  %v732 = vlaneseq
  %v733 = vshrl.u32 %v732, 7
  %v734 = vsub.s32 %v731, %v733
  %v735 = vrot.slane %v707, %v734
  %v736 = vcombine.high %v714, %v714
  %v737 = vcombine.high %v721, %v721
  %v738 = vcombine.high %v728, %v728
  %v739 = vcombine.high %v735, %v735
  %748 = vst [vmem:[#allocation3 + $0x2] sm:$0x1] %v714
  %749 = vst [vmem:[#allocation3 + $0xa] sm:$0x1] %v728
  %750 = vst [vmem:[#allocation3 + $0x12] sm:$0x1] %v736
  %751 = vst [vmem:[#allocation3 + $0x1a] sm:$0x1] %v738
  %752 = vst [vmem:[#allocation3 + $0x22] sm:$0x1] %v721
  %753 = vst [vmem:[#allocation3 + $0x2a] sm:$0x1] %v735
  %754 = vst [vmem:[#allocation3 + $0x32] sm:$0x1] %v737
  %755 = vst [vmem:[#allocation3 + $0x3a] sm:$0x1] %v739
  %v757 = vcombine.high %v545, %v545
  %v759 = vunpack.c.l.s4 1966171168
  %v760 = vunpack.c.0.s8 %v759
  %v761 = vlaneseq
  %v762 = vshrl.u32 %v761, 7
  %v763 = vsub.s32 %v760, %v762
  %v764 = vrot.slane %v545, %v763
  %v766 = vunpack.c.l.s4 1966171168
  %v767 = vunpack.c.0.s8 %v766
  %v768 = vlaneseq
  %v769 = vshrl.u32 %v768, 7
  %v770 = vsub.s32 %v767, %v769
  %v771 = vrot.slane %v757, %v770
  %v772 = vcombine.high %v764, %v764
  %v773 = vcombine.high %v771, %v771
  %v775 = vunpack.c.l.s4 1966171168
  %v776 = vunpack.c.0.s8 %v775
  %v777 = vlaneseq
  %v778 = vshrl.u32 %v777, 7
  %v779 = vsub.s32 %v776, %v778
  %v780 = vrot.slane %v764, %v779
  %v782 = vunpack.c.l.s4 1966171168
  %v783 = vunpack.c.0.s8 %v782
  %v784 = vlaneseq
  %v785 = vshrl.u32 %v784, 7
  %v786 = vsub.s32 %v783, %v785
  %v787 = vrot.slane %v771, %v786
  %v789 = vunpack.c.l.s4 1966171168
  %v790 = vunpack.c.0.s8 %v789
  %v791 = vlaneseq
  %v792 = vshrl.u32 %v791, 7
  %v793 = vsub.s32 %v790, %v792
  %v794 = vrot.slane %v772, %v793
  %v796 = vunpack.c.l.s4 1966171168
  %v797 = vunpack.c.0.s8 %v796
  %v798 = vlaneseq
  %v799 = vshrl.u32 %v798, 7
  %v800 = vsub.s32 %v797, %v799
  %v801 = vrot.slane %v773, %v800
  %v802 = vcombine.high %v780, %v780
  %v803 = vcombine.high %v787, %v787
  %v804 = vcombine.high %v794, %v794
  %v805 = vcombine.high %v801, %v801
  %814 = vst [vmem:[#allocation3 + $0x3] sm:$0x1] %v780
  %815 = vst [vmem:[#allocation3 + $0xb] sm:$0x1] %v794
  %816 = vst [vmem:[#allocation3 + $0x13] sm:$0x1] %v802
  %817 = vst [vmem:[#allocation3 + $0x1b] sm:$0x1] %v804
  %818 = vst [vmem:[#allocation3 + $0x23] sm:$0x1] %v787
  %819 = vst [vmem:[#allocation3 + $0x2b] sm:$0x1] %v801
  %820 = vst [vmem:[#allocation3 + $0x33] sm:$0x1] %v803
  %821 = vst [vmem:[#allocation3 + $0x3b] sm:$0x1] %v805
  %v823 = vcombine.high %v550, %v550
  %v825 = vunpack.c.l.s4 1966171168
  %v826 = vunpack.c.0.s8 %v825
  %v827 = vlaneseq
  %v828 = vshrl.u32 %v827, 7
  %v829 = vsub.s32 %v826, %v828
  %v830 = vrot.slane %v550, %v829
  %v832 = vunpack.c.l.s4 1966171168
  %v833 = vunpack.c.0.s8 %v832
  %v834 = vlaneseq
  %v835 = vshrl.u32 %v834, 7
  %v836 = vsub.s32 %v833, %v835
  %v837 = vrot.slane %v823, %v836
  %v838 = vcombine.high %v830, %v830
  %v839 = vcombine.high %v837, %v837
  %v841 = vunpack.c.l.s4 1966171168
  %v842 = vunpack.c.0.s8 %v841
  %v843 = vlaneseq
  %v844 = vshrl.u32 %v843, 7
  %v845 = vsub.s32 %v842, %v844
  %v846 = vrot.slane %v830, %v845
  %v848 = vunpack.c.l.s4 1966171168
  %v849 = vunpack.c.0.s8 %v848
  %v850 = vlaneseq
  %v851 = vshrl.u32 %v850, 7
  %v852 = vsub.s32 %v849, %v851
  %v853 = vrot.slane %v837, %v852
  %v855 = vunpack.c.l.s4 1966171168
  %v856 = vunpack.c.0.s8 %v855
  %v857 = vlaneseq
  %v858 = vshrl.u32 %v857, 7
  %v859 = vsub.s32 %v856, %v858
  %v860 = vrot.slane %v838, %v859
  %v862 = vunpack.c.l.s4 1966171168
  %v863 = vunpack.c.0.s8 %v862
  %v864 = vlaneseq
  %v865 = vshrl.u32 %v864, 7
  %v866 = vsub.s32 %v863, %v865
  %v867 = vrot.slane %v839, %v866
  %v868 = vcombine.high %v846, %v846
  %v869 = vcombine.high %v853, %v853
  %v870 = vcombine.high %v860, %v860
  %v871 = vcombine.high %v867, %v867
  %880 = vst [vmem:[#allocation3 + $0x4] sm:$0x1] %v846
  %881 = vst [vmem:[#allocation3 + $0xc] sm:$0x1] %v860
  %882 = vst [vmem:[#allocation3 + $0x14] sm:$0x1] %v868
  %883 = vst [vmem:[#allocation3 + $0x1c] sm:$0x1] %v870
  %884 = vst [vmem:[#allocation3 + $0x24] sm:$0x1] %v853
  %885 = vst [vmem:[#allocation3 + $0x2c] sm:$0x1] %v867
  %886 = vst [vmem:[#allocation3 + $0x34] sm:$0x1] %v869
  %887 = vst [vmem:[#allocation3 + $0x3c] sm:$0x1] %v871
  %v889 = vcombine.high %v555, %v555
  %v891 = vunpack.c.l.s4 1966171168
  %v892 = vunpack.c.0.s8 %v891
  %v893 = vlaneseq
  %v894 = vshrl.u32 %v893, 7
  %v895 = vsub.s32 %v892, %v894
  %v896 = vrot.slane %v555, %v895
  %v898 = vunpack.c.l.s4 1966171168
  %v899 = vunpack.c.0.s8 %v898
  %v900 = vlaneseq
  %v901 = vshrl.u32 %v900, 7
  %v902 = vsub.s32 %v899, %v901
  %v903 = vrot.slane %v889, %v902
  %v904 = vcombine.high %v896, %v896
  %v905 = vcombine.high %v903, %v903
  %v907 = vunpack.c.l.s4 1966171168
  %v908 = vunpack.c.0.s8 %v907
  %v909 = vlaneseq
  %v910 = vshrl.u32 %v909, 7
  %v911 = vsub.s32 %v908, %v910
  %v912 = vrot.slane %v896, %v911
  %v914 = vunpack.c.l.s4 1966171168
  %v915 = vunpack.c.0.s8 %v914
  %v916 = vlaneseq
  %v917 = vshrl.u32 %v916, 7
  %v918 = vsub.s32 %v915, %v917
  %v919 = vrot.slane %v903, %v918
  %v921 = vunpack.c.l.s4 1966171168
  %v922 = vunpack.c.0.s8 %v921
  %v923 = vlaneseq
  %v924 = vshrl.u32 %v923, 7
  %v925 = vsub.s32 %v922, %v924
  %v926 = vrot.slane %v904, %v925
  %v928 = vunpack.c.l.s4 1966171168
  %v929 = vunpack.c.0.s8 %v928
  %v930 = vlaneseq
  %v931 = vshrl.u32 %v930, 7
  %v932 = vsub.s32 %v929, %v931
  %v933 = vrot.slane %v905, %v932
  %v934 = vcombine.high %v912, %v912
  %v935 = vcombine.high %v919, %v919
  %v936 = vcombine.high %v926, %v926
  %v937 = vcombine.high %v933, %v933
  %946 = vst [vmem:[#allocation3 + $0x5] sm:$0x1] %v912
  %947 = vst [vmem:[#allocation3 + $0xd] sm:$0x1] %v926
  %948 = vst [vmem:[#allocation3 + $0x15] sm:$0x1] %v934
  %949 = vst [vmem:[#allocation3 + $0x1d] sm:$0x1] %v936
  %950 = vst [vmem:[#allocation3 + $0x25] sm:$0x1] %v919
  %951 = vst [vmem:[#allocation3 + $0x2d] sm:$0x1] %v933
  %952 = vst [vmem:[#allocation3 + $0x35] sm:$0x1] %v935
  %953 = vst [vmem:[#allocation3 + $0x3d] sm:$0x1] %v937
  %v954 = vld [vmem:[%s4] sm:$0xff]
  %v955 = vld [vmem:[%s4 + $0x8] sm:$0xff]
  %v956 = vld [vmem:[%s4 + $0x10] sm:$0xff]
  %v957 = vld [vmem:[%s4 + $0x18] sm:$0xff]
  %v958 = vld [vmem:[#allocation2] sm:$0x3]
  %v960 = vsel %vm66, 0.0, 0
  %962 = vmatprep.subr.mxu0 0.0
  %963 = vmatpush1.msra.mxu0 %v954
  %964 = vmatprep.subr.mxu0 0.0
  %965 = vmatpush1.msra.mxu0 %v955
  %966 = vmatprep.subr.mxu0 0.0
  %967 = vmatpush1.msra.mxu0 %v956
  %968 = vmatprep.subr.mxu0 0.0
  %969 = vmatpush1.msra.mxu0 %v957
  %970 = vmatprep.subr.mxu0 0.0
  %971 = vmatpush1.msra.mxu0 0.0
  %972 = vmatprep.subr.mxu0 0.0
  %973 = vmatpush1.msra.mxu0 0.0
  %974 = vmatprep.subr.mxu0 0.0
  %975 = vmatpush1.msra.mxu0 0.0
  %976 = vmatprep.subr.mxu0 0.0
  %977 = vmatpush1.msra.mxu0 0.0
  %978 = vmatprep.subr.mxu0 0.0
  %979 = vmatpush1.msra.mxu0 0.0
  %980 = vmatprep.subr.mxu0 0.0
  %981 = vmatpush1.msra.mxu0 0.0
  %982 = vmatprep.subr.mxu0 0.0
  %983 = vmatpush1.msra.mxu0 0.0
  %984 = vmatprep.subr.mxu0 0.0
  %985 = vmatpush1.msra.mxu0 0.0
  %986 = vmatprep.subr.mxu0 0.0
  %987 = vmatpush1.msra.mxu0 0.0
  %988 = vmatprep.subr.mxu0 0.0
  %989 = vmatpush1.msra.mxu0 0.0
  %990 = vmatprep.subr.mxu0 0.0
  %991 = vmatpush1.msra.mxu0 0.0
  %992 = vmatprep.subr.mxu0 0.0
  %993 = vmatpush1.msra.mxu0 0.0
  %994 = vmatprep.subr.mxu0 0.0
  %995 = vmatpush1.msra.mxu0 0.0
  %996 = vmatprep.subr.mxu0 0.0
  %997 = vmatpush1.msra.mxu0 0.0
  %998 = vmatprep.subr.mxu0 0.0
  %999 = vmatpush1.msra.mxu0 0.0
  %1000 = vmatprep.subr.mxu0 0.0
  %1001 = vmatpush1.msra.mxu0 0.0
  %1002 = vmatprep.subr.mxu0 0.0
  %1003 = vmatpush1.msra.mxu0 0.0
  %1004 = vmatprep.subr.mxu0 0.0
  %1005 = vmatpush1.msra.mxu0 0.0
  %1006 = vmatprep.subr.mxu0 0.0
  %1007 = vmatpush1.msra.mxu0 0.0
  %1008 = vmatprep.subr.mxu0 0.0
  %1009 = vmatpush1.msra.mxu0 0.0
  %1010 = vmatprep.subr.mxu0 0.0
  %1011 = vmatpush1.msra.mxu0 0.0
  %1012 = vmatprep.subr.mxu0 0.0
  %1013 = vmatpush1.msra.mxu0 0.0
  %1014 = vmatprep.subr.mxu0 0.0
  %1015 = vmatpush1.msra.mxu0 0.0
  %1016 = vmatprep.subr.mxu0 0.0
  %1017 = vmatpush1.msra.mxu0 0.0
  %1018 = vmatprep.subr.mxu0 0.0
  %1019 = vmatpush1.msra.mxu0 0.0
  %1020 = vmatprep.subr.mxu0 0.0
  %1021 = vmatpush1.msra.mxu0 0.0
  %1022 = vmatprep.subr.mxu0 0.0
  %1023 = vmatpush1.msra.mxu0 0.0
  %1024 = vmatprep.subr.mxu0 0.0
  %1025 = vmatpush1.msra.mxu0 0.0
  %1026 = vmatprep.mubr.f32.mxu0 0.0
  %1027 = vmatmul.mubr.f32.gmra.mrb[0].mxu0 %v960
  %v1028 = vpop.f32.mrb[0].mxu0
  %v1029 = vadd.f32 0.0, %v1028
  %v1030 = vpop.f32.mrb[0].mxu0
  %1031 = vdwg.mxu0
  %v1032 = vadd.f32 %v958, %v1029
  %v1033 = vmul.f32 %v1032, %v49
  %v1034 = vxor.u32 %v1033, 2147483648
  %v1035 = vmul.f32 %v1034, 1.442695
  %v1036 = vpow.pop %v1035
  %v1037 = vadd.f32 %v1036, 1.0
  %v1038 = vrcp.pop %v1037
  %v1039 = vmul.f32 1.0, %v1038
  %v1040 = vmul.f32 %v1039, %v49
  %v1041 = vadd.f32 %v1040, %v50
  %v1042 = vmul.f32 %v1041, 0.0
  %1044 = vrot.lane.b32.xlu0 %v1041, 64
  %v1045 = vpop.permute.xlu0 %1044
  %v1047 = vmul.f32 %v1041, %v1045
  %1049 = vrot.lane.b32.xlu0 %v1047, 32
  %v1050 = vpop.permute.xlu0 %1049
  %v1052 = vadd.f32 %v1042, %v1050
  %v1053 = vtanh.pop %v1052
  %1055 = vrot.lane.b32.xlu0 %v1053, 64
  %v1056 = vpop.permute.xlu0 %1055
  %v1058 = vmul.f32 %v1041, %v1056
  %1060 = vrot.lane.b32.xlu0 %v1058, 32
  %v1061 = vpop.permute.xlu0 %1060
  %vm1063 = vcmask 254976
  %1064 = vst.msk [vmem:[#allocation4] sm:$0x3] %vm1063, %v1061
  %s1065 = scalar_lea.vmem [#allocation2], 2
  %v1066 = vld [vmem:[%s1065] sm:$0x3]
  %v1067 = vsel %vm66, %v1061, 0
  %1069 = vmatprep.subr.mxu0 0.0
  %1070 = vmatpush1.msra.mxu0 %v954
  %1071 = vmatprep.subr.mxu0 0.0
  %1072 = vmatpush1.msra.mxu0 %v955
  %1073 = vmatprep.subr.mxu0 0.0
  %1074 = vmatpush1.msra.mxu0 %v956
  %1075 = vmatprep.subr.mxu0 0.0
  %1076 = vmatpush1.msra.mxu0 %v957
  %1077 = vmatprep.subr.mxu0 0.0
  %1078 = vmatpush1.msra.mxu0 0.0
  %1079 = vmatprep.subr.mxu0 0.0
  %1080 = vmatpush1.msra.mxu0 0.0
  %1081 = vmatprep.subr.mxu0 0.0
  %1082 = vmatpush1.msra.mxu0 0.0
  %1083 = vmatprep.subr.mxu0 0.0
  %1084 = vmatpush1.msra.mxu0 0.0
  %1085 = vmatprep.subr.mxu0 0.0
  %1086 = vmatpush1.msra.mxu0 0.0
  %1087 = vmatprep.subr.mxu0 0.0
  %1088 = vmatpush1.msra.mxu0 0.0
  %1089 = vmatprep.subr.mxu0 0.0
  %1090 = vmatpush1.msra.mxu0 0.0
  %1091 = vmatprep.subr.mxu0 0.0
  %1092 = vmatpush1.msra.mxu0 0.0
  %1093 = vmatprep.subr.mxu0 0.0
  %1094 = vmatpush1.msra.mxu0 0.0
  %1095 = vmatprep.subr.mxu0 0.0
  %1096 = vmatpush1.msra.mxu0 0.0
  %1097 = vmatprep.subr.mxu0 0.0
  %1098 = vmatpush1.msra.mxu0 0.0
  %1099 = vmatprep.subr.mxu0 0.0
  %1100 = vmatpush1.msra.mxu0 0.0
  %1101 = vmatprep.subr.mxu0 0.0
  %1102 = vmatpush1.msra.mxu0 0.0
  %1103 = vmatprep.subr.mxu0 0.0
  %1104 = vmatpush1.msra.mxu0 0.0
  %1105 = vmatprep.subr.mxu0 0.0
  %1106 = vmatpush1.msra.mxu0 0.0
  %1107 = vmatprep.subr.mxu0 0.0
  %1108 = vmatpush1.msra.mxu0 0.0
  %1109 = vmatprep.subr.mxu0 0.0
  %1110 = vmatpush1.msra.mxu0 0.0
  %1111 = vmatprep.subr.mxu0 0.0
  %1112 = vmatpush1.msra.mxu0 0.0
  %1113 = vmatprep.subr.mxu0 0.0
  %1114 = vmatpush1.msra.mxu0 0.0
  %1115 = vmatprep.subr.mxu0 0.0
  %1116 = vmatpush1.msra.mxu0 0.0
  %1117 = vmatprep.subr.mxu0 0.0
  %1118 = vmatpush1.msra.mxu0 0.0
  %1119 = vmatprep.subr.mxu0 0.0
  %1120 = vmatpush1.msra.mxu0 0.0
  %1121 = vmatprep.subr.mxu0 0.0
  %1122 = vmatpush1.msra.mxu0 0.0
  %1123 = vmatprep.subr.mxu0 0.0
  %1124 = vmatpush1.msra.mxu0 0.0
  %1125 = vmatprep.subr.mxu0 0.0
  %1126 = vmatpush1.msra.mxu0 0.0
  %1127 = vmatprep.subr.mxu0 0.0
  %1128 = vmatpush1.msra.mxu0 0.0
  %1129 = vmatprep.subr.mxu0 0.0
  %1130 = vmatpush1.msra.mxu0 0.0
  %1131 = vmatprep.subr.mxu0 0.0
  %1132 = vmatpush1.msra.mxu0 0.0
  %1133 = vmatprep.mubr.f32.mxu0 0.0
  %1134 = vmatmul.mubr.f32.gmra.mrb[0].mxu0 %v1067
  %v1135 = vpop.f32.mrb[0].mxu0
  %v1136 = vadd.f32 0.0, %v1135
  %v1137 = vpop.f32.mrb[0].mxu0
  %1138 = vdwg.mxu0
  %v1139 = vadd.f32 %v1066, %v1136
  %v1140 = vmul.f32 %v1139, %v49
  %v1141 = vxor.u32 %v1140, 2147483648
  %v1142 = vmul.f32 %v1141, 1.442695
  %v1143 = vpow.pop %v1142
  %v1144 = vadd.f32 %v1143, 1.0
  %v1145 = vrcp.pop %v1144
  %v1146 = vmul.f32 1.0, %v1145
  %v1147 = vmul.f32 %v1146, %v49
  %v1148 = vadd.f32 %v1147, %v50
  %v1149 = vmul.f32 %v1148, %v1052
  %1151 = vrot.lane.b32.xlu0 %v1148, 64
  %v1152 = vpop.permute.xlu0 %1151
  %v1154 = vmul.f32 %v1148, %v1152
  %1156 = vrot.lane.b32.xlu0 %v1154, 32
  %v1157 = vpop.permute.xlu0 %1156
  %v1159 = vadd.f32 %v1149, %v1157
  %v1160 = vtanh.pop %v1159
  %1162 = vrot.lane.b32.xlu0 %v1160, 64
  %v1163 = vpop.permute.xlu0 %1162
  %v1165 = vmul.f32 %v1148, %v1163
  %1167 = vrot.lane.b32.xlu0 %v1165, 32
  %v1168 = vpop.permute.xlu0 %1167
  %s1170 = scalar_lea.vmem [#allocation4], 2
  %1171 = vst.msk [vmem:[%s1170] sm:$0x3] %vm1063, %v1168
  %v1172 = vmax.f32 %v1058, %v1165
  %s1173 = scalar_lea.vmem [#allocation2], 4
  %v1174 = vld [vmem:[%s1173] sm:$0x3]
  %v1175 = vsel %vm66, %v1168, 0
  %1177 = vmatprep.subr.mxu0 0.0
  %1178 = vmatpush1.msra.mxu0 %v954
  %1179 = vmatprep.subr.mxu0 0.0
  %1180 = vmatpush1.msra.mxu0 %v955
  %1181 = vmatprep.subr.mxu0 0.0
  %1182 = vmatpush1.msra.mxu0 %v956
  %1183 = vmatprep.subr.mxu0 0.0
  %1184 = vmatpush1.msra.mxu0 %v957
  %1185 = vmatprep.subr.mxu0 0.0
  %1186 = vmatpush1.msra.mxu0 0.0
  %1187 = vmatprep.subr.mxu0 0.0
  %1188 = vmatpush1.msra.mxu0 0.0
  %1189 = vmatprep.subr.mxu0 0.0
  %1190 = vmatpush1.msra.mxu0 0.0
  %1191 = vmatprep.subr.mxu0 0.0
  %1192 = vmatpush1.msra.mxu0 0.0
  %1193 = vmatprep.subr.mxu0 0.0
  %1194 = vmatpush1.msra.mxu0 0.0
  %1195 = vmatprep.subr.mxu0 0.0
  %1196 = vmatpush1.msra.mxu0 0.0
  %1197 = vmatprep.subr.mxu0 0.0
  %1198 = vmatpush1.msra.mxu0 0.0
  %1199 = vmatprep.subr.mxu0 0.0
  %1200 = vmatpush1.msra.mxu0 0.0
  %1201 = vmatprep.subr.mxu0 0.0
  %1202 = vmatpush1.msra.mxu0 0.0
  %1203 = vmatprep.subr.mxu0 0.0
  %1204 = vmatpush1.msra.mxu0 0.0
  %1205 = vmatprep.subr.mxu0 0.0
  %1206 = vmatpush1.msra.mxu0 0.0
  %1207 = vmatprep.subr.mxu0 0.0
  %1208 = vmatpush1.msra.mxu0 0.0
  %1209 = vmatprep.subr.mxu0 0.0
  %1210 = vmatpush1.msra.mxu0 0.0
  %1211 = vmatprep.subr.mxu0 0.0
  %1212 = vmatpush1.msra.mxu0 0.0
  %1213 = vmatprep.subr.mxu0 0.0
  %1214 = vmatpush1.msra.mxu0 0.0
  %1215 = vmatprep.subr.mxu0 0.0
  %1216 = vmatpush1.msra.mxu0 0.0
  %1217 = vmatprep.subr.mxu0 0.0
  %1218 = vmatpush1.msra.mxu0 0.0
  %1219 = vmatprep.subr.mxu0 0.0
  %1220 = vmatpush1.msra.mxu0 0.0
  %1221 = vmatprep.subr.mxu0 0.0
  %1222 = vmatpush1.msra.mxu0 0.0
  %1223 = vmatprep.subr.mxu0 0.0
  %1224 = vmatpush1.msra.mxu0 0.0
  %1225 = vmatprep.subr.mxu0 0.0
  %1226 = vmatpush1.msra.mxu0 0.0
  %1227 = vmatprep.subr.mxu0 0.0
  %1228 = vmatpush1.msra.mxu0 0.0
  %1229 = vmatprep.subr.mxu0 0.0
  %1230 = vmatpush1.msra.mxu0 0.0
  %1231 = vmatprep.subr.mxu0 0.0
  %1232 = vmatpush1.msra.mxu0 0.0
  %1233 = vmatprep.subr.mxu0 0.0
  %1234 = vmatpush1.msra.mxu0 0.0
  %1235 = vmatprep.subr.mxu0 0.0
  %1236 = vmatpush1.msra.mxu0 0.0
  %1237 = vmatprep.subr.mxu0 0.0
  %1238 = vmatpush1.msra.mxu0 0.0
  %1239 = vmatprep.subr.mxu0 0.0
  %1240 = vmatpush1.msra.mxu0 0.0
  %1241 = vmatprep.mubr.f32.mxu0 0.0
  %1242 = vmatmul.mubr.f32.gmra.mrb[0].mxu0 %v1175
  %v1243 = vpop.f32.mrb[0].mxu0
  %v1244 = vadd.f32 0.0, %v1243
  %v1245 = vpop.f32.mrb[0].mxu0
  %1246 = vdwg.mxu0
  %v1247 = vadd.f32 %v1174, %v1244
  %v1248 = vmul.f32 %v1247, %v49
  %v1249 = vxor.u32 %v1248, 2147483648
  %v1250 = vmul.f32 %v1249, 1.442695
  %v1251 = vpow.pop %v1250
  %v1252 = vadd.f32 %v1251, 1.0
  %v1253 = vrcp.pop %v1252
  %v1254 = vmul.f32 1.0, %v1253
  %v1255 = vmul.f32 %v1254, %v49
  %v1256 = vadd.f32 %v1255, %v50
  %v1257 = vmul.f32 %v1256, %v1159
  %1259 = vrot.lane.b32.xlu0 %v1256, 64
  %v1260 = vpop.permute.xlu0 %1259
  %v1262 = vmul.f32 %v1256, %v1260
  %1264 = vrot.lane.b32.xlu0 %v1262, 32
  %v1265 = vpop.permute.xlu0 %1264
  %v1267 = vadd.f32 %v1257, %v1265
  %v1268 = vtanh.pop %v1267
  %1270 = vrot.lane.b32.xlu0 %v1268, 64
  %v1271 = vpop.permute.xlu0 %1270
  %v1273 = vmul.f32 %v1256, %v1271
  %1275 = vrot.lane.b32.xlu0 %v1273, 32
  %v1276 = vpop.permute.xlu0 %1275
  %s1278 = scalar_lea.vmem [#allocation4], 4
  %1279 = vst.msk [vmem:[%s1278] sm:$0x3] %vm1063, %v1276
  %v1280 = vmax.f32 %v1172, %v1273
  %s1281 = scalar_lea.vmem [#allocation2], 6
  %v1282 = vld [vmem:[%s1281] sm:$0x3]
  %v1283 = vsel %vm66, %v1276, 0
  %1285 = vmatprep.subr.mxu0 0.0
  %1286 = vmatpush1.msra.mxu0 %v954
  %1287 = vmatprep.subr.mxu0 0.0
  %1288 = vmatpush1.msra.mxu0 %v955
  %1289 = vmatprep.subr.mxu0 0.0
  %1290 = vmatpush1.msra.mxu0 %v956
  %1291 = vmatprep.subr.mxu0 0.0
  %1292 = vmatpush1.msra.mxu0 %v957
  %1293 = vmatprep.subr.mxu0 0.0
  %1294 = vmatpush1.msra.mxu0 0.0
  %1295 = vmatprep.subr.mxu0 0.0
  %1296 = vmatpush1.msra.mxu0 0.0
  %1297 = vmatprep.subr.mxu0 0.0
  %1298 = vmatpush1.msra.mxu0 0.0
  %1299 = vmatprep.subr.mxu0 0.0
  %1300 = vmatpush1.msra.mxu0 0.0
  %1301 = vmatprep.subr.mxu0 0.0
  %1302 = vmatpush1.msra.mxu0 0.0
  %1303 = vmatprep.subr.mxu0 0.0
  %1304 = vmatpush1.msra.mxu0 0.0
  %1305 = vmatprep.subr.mxu0 0.0
  %1306 = vmatpush1.msra.mxu0 0.0
  %1307 = vmatprep.subr.mxu0 0.0
  %1308 = vmatpush1.msra.mxu0 0.0
  %1309 = vmatprep.subr.mxu0 0.0
  %1310 = vmatpush1.msra.mxu0 0.0
  %1311 = vmatprep.subr.mxu0 0.0
  %1312 = vmatpush1.msra.mxu0 0.0
  %1313 = vmatprep.subr.mxu0 0.0
  %1314 = vmatpush1.msra.mxu0 0.0
  %1315 = vmatprep.subr.mxu0 0.0
  %1316 = vmatpush1.msra.mxu0 0.0
  %1317 = vmatprep.subr.mxu0 0.0
  %1318 = vmatpush1.msra.mxu0 0.0
  %1319 = vmatprep.subr.mxu0 0.0
  %1320 = vmatpush1.msra.mxu0 0.0
  %1321 = vmatprep.subr.mxu0 0.0
  %1322 = vmatpush1.msra.mxu0 0.0
  %1323 = vmatprep.subr.mxu0 0.0
  %1324 = vmatpush1.msra.mxu0 0.0
  %1325 = vmatprep.subr.mxu0 0.0
  %1326 = vmatpush1.msra.mxu0 0.0
  %1327 = vmatprep.subr.mxu0 0.0
  %1328 = vmatpush1.msra.mxu0 0.0
  %1329 = vmatprep.subr.mxu0 0.0
  %1330 = vmatpush1.msra.mxu0 0.0
  %1331 = vmatprep.subr.mxu0 0.0
  %1332 = vmatpush1.msra.mxu0 0.0
  %1333 = vmatprep.subr.mxu0 0.0
  %1334 = vmatpush1.msra.mxu0 0.0
  %1335 = vmatprep.subr.mxu0 0.0
  %1336 = vmatpush1.msra.mxu0 0.0
  %1337 = vmatprep.subr.mxu0 0.0
  %1338 = vmatpush1.msra.mxu0 0.0
  %1339 = vmatprep.subr.mxu0 0.0
  %1340 = vmatpush1.msra.mxu0 0.0
  %1341 = vmatprep.subr.mxu0 0.0
  %1342 = vmatpush1.msra.mxu0 0.0
  %1343 = vmatprep.subr.mxu0 0.0
  %1344 = vmatpush1.msra.mxu0 0.0
  %1345 = vmatprep.subr.mxu0 0.0
  %1346 = vmatpush1.msra.mxu0 0.0
  %1347 = vmatprep.subr.mxu0 0.0
  %1348 = vmatpush1.msra.mxu0 0.0
  %1349 = vmatprep.mubr.f32.mxu0 0.0
  %1350 = vmatmul.mubr.f32.gmra.mrb[0].mxu0 %v1283
  %v1351 = vpop.f32.mrb[0].mxu0
  %v1352 = vadd.f32 0.0, %v1351
  %v1353 = vpop.f32.mrb[0].mxu0
  %1354 = vdwg.mxu0
  %v1355 = vadd.f32 %v1282, %v1352
  %v1356 = vmul.f32 %v1355, %v49
  %v1357 = vxor.u32 %v1356, 2147483648
  %v1358 = vmul.f32 %v1357, 1.442695
  %v1359 = vpow.pop %v1358
  %v1360 = vadd.f32 %v1359, 1.0
  %v1361 = vrcp.pop %v1360
  %v1362 = vmul.f32 1.0, %v1361
  %v1363 = vmul.f32 %v1362, %v49
  %v1364 = vadd.f32 %v1363, %v50
  %v1365 = vmul.f32 %v1364, %v1267
  %1367 = vrot.lane.b32.xlu0 %v1364, 64
  %v1368 = vpop.permute.xlu0 %1367
  %v1370 = vmul.f32 %v1364, %v1368
  %1372 = vrot.lane.b32.xlu0 %v1370, 32
  %v1373 = vpop.permute.xlu0 %1372
  %v1375 = vadd.f32 %v1365, %v1373
  %v1376 = vtanh.pop %v1375
  %1378 = vrot.lane.b32.xlu0 %v1376, 64
  %v1379 = vpop.permute.xlu0 %1378
  %v1381 = vmul.f32 %v1364, %v1379
  %1383 = vrot.lane.b32.xlu0 %v1381, 32
  %v1384 = vpop.permute.xlu0 %1383
  %s1386 = scalar_lea.vmem [#allocation4], 6
  %1387 = vst.msk [vmem:[%s1386] sm:$0x3] %vm1063, %v1384
  %v1388 = vmax.f32 %v1280, %v1381
  %s1389 = scalar_lea.vmem [#allocation2], 8
  %v1390 = vld [vmem:[%s1389] sm:$0x3]
  %v1391 = vsel %vm66, %v1384, 0
  %1393 = vmatprep.subr.mxu0 0.0
  %1394 = vmatpush1.msra.mxu0 %v954
  %1395 = vmatprep.subr.mxu0 0.0
  %1396 = vmatpush1.msra.mxu0 %v955
  %1397 = vmatprep.subr.mxu0 0.0
  %1398 = vmatpush1.msra.mxu0 %v956
  %1399 = vmatprep.subr.mxu0 0.0
  %1400 = vmatpush1.msra.mxu0 %v957
  %1401 = vmatprep.subr.mxu0 0.0
  %1402 = vmatpush1.msra.mxu0 0.0
  %1403 = vmatprep.subr.mxu0 0.0
  %1404 = vmatpush1.msra.mxu0 0.0
  %1405 = vmatprep.subr.mxu0 0.0
  %1406 = vmatpush1.msra.mxu0 0.0
  %1407 = vmatprep.subr.mxu0 0.0
  %1408 = vmatpush1.msra.mxu0 0.0
  %1409 = vmatprep.subr.mxu0 0.0
  %1410 = vmatpush1.msra.mxu0 0.0
  %1411 = vmatprep.subr.mxu0 0.0
  %1412 = vmatpush1.msra.mxu0 0.0
  %1413 = vmatprep.subr.mxu0 0.0
  %1414 = vmatpush1.msra.mxu0 0.0
  %1415 = vmatprep.subr.mxu0 0.0
  %1416 = vmatpush1.msra.mxu0 0.0
  %1417 = vmatprep.subr.mxu0 0.0
  %1418 = vmatpush1.msra.mxu0 0.0
  %1419 = vmatprep.subr.mxu0 0.0
  %1420 = vmatpush1.msra.mxu0 0.0
  %1421 = vmatprep.subr.mxu0 0.0
  %1422 = vmatpush1.msra.mxu0 0.0
  %1423 = vmatprep.subr.mxu0 0.0
  %1424 = vmatpush1.msra.mxu0 0.0
  %1425 = vmatprep.subr.mxu0 0.0
  %1426 = vmatpush1.msra.mxu0 0.0
  %1427 = vmatprep.subr.mxu0 0.0
  %1428 = vmatpush1.msra.mxu0 0.0
  %1429 = vmatprep.subr.mxu0 0.0
  %1430 = vmatpush1.msra.mxu0 0.0
  %1431 = vmatprep.subr.mxu0 0.0
  %1432 = vmatpush1.msra.mxu0 0.0
  %1433 = vmatprep.subr.mxu0 0.0
  %1434 = vmatpush1.msra.mxu0 0.0
  %1435 = vmatprep.subr.mxu0 0.0
  %1436 = vmatpush1.msra.mxu0 0.0
  %1437 = vmatprep.subr.mxu0 0.0
  %1438 = vmatpush1.msra.mxu0 0.0
  %1439 = vmatprep.subr.mxu0 0.0
  %1440 = vmatpush1.msra.mxu0 0.0
  %1441 = vmatprep.subr.mxu0 0.0
  %1442 = vmatpush1.msra.mxu0 0.0
  %1443 = vmatprep.subr.mxu0 0.0
  %1444 = vmatpush1.msra.mxu0 0.0
  %1445 = vmatprep.subr.mxu0 0.0
  %1446 = vmatpush1.msra.mxu0 0.0
  %1447 = vmatprep.subr.mxu0 0.0
  %1448 = vmatpush1.msra.mxu0 0.0
  %1449 = vmatprep.subr.mxu0 0.0
  %1450 = vmatpush1.msra.mxu0 0.0
  %1451 = vmatprep.subr.mxu0 0.0
  %1452 = vmatpush1.msra.mxu0 0.0
  %1453 = vmatprep.subr.mxu0 0.0
  %1454 = vmatpush1.msra.mxu0 0.0
  %1455 = vmatprep.subr.mxu0 0.0
  %1456 = vmatpush1.msra.mxu0 0.0
  %1457 = vmatprep.mubr.f32.mxu0 0.0
  %1458 = vmatmul.mubr.f32.gmra.mrb[0].mxu0 %v1391
  %v1459 = vpop.f32.mrb[0].mxu0
  %v1460 = vadd.f32 0.0, %v1459
  %v1461 = vpop.f32.mrb[0].mxu0
  %1462 = vdwg.mxu0
  %v1463 = vadd.f32 %v1390, %v1460
  %v1464 = vmul.f32 %v1463, %v49
  %v1465 = vxor.u32 %v1464, 2147483648
  %v1466 = vmul.f32 %v1465, 1.442695
  %v1467 = vpow.pop %v1466
  %v1468 = vadd.f32 %v1467, 1.0
  %v1469 = vrcp.pop %v1468
  %v1470 = vmul.f32 1.0, %v1469
  %v1471 = vmul.f32 %v1470, %v49
  %v1472 = vadd.f32 %v1471, %v50
  %v1473 = vmul.f32 %v1472, %v1375
  %1475 = vrot.lane.b32.xlu0 %v1472, 64
  %v1476 = vpop.permute.xlu0 %1475
  %v1478 = vmul.f32 %v1472, %v1476
  %1480 = vrot.lane.b32.xlu0 %v1478, 32
  %v1481 = vpop.permute.xlu0 %1480
  %v1483 = vadd.f32 %v1473, %v1481
  %v1484 = vtanh.pop %v1483
  %1486 = vrot.lane.b32.xlu0 %v1484, 64
  %v1487 = vpop.permute.xlu0 %1486
  %v1489 = vmul.f32 %v1472, %v1487
  %1491 = vrot.lane.b32.xlu0 %v1489, 32
  %v1492 = vpop.permute.xlu0 %1491
  %s1494 = scalar_lea.vmem [#allocation4], 8
  %1495 = vst.msk [vmem:[%s1494] sm:$0x3] %vm1063, %v1492
  %v1496 = vmax.f32 %v1388, %v1489
  %s1497 = scalar_lea.vmem [#allocation2], 10
  %v1498 = vld [vmem:[%s1497] sm:$0x3]
  %v1499 = vsel %vm66, %v1492, 0
  %1501 = vmatprep.subr.mxu0 0.0
  %1502 = vmatpush1.msra.mxu0 %v954
  %1503 = vmatprep.subr.mxu0 0.0
  %1504 = vmatpush1.msra.mxu0 %v955
  %1505 = vmatprep.subr.mxu0 0.0
  %1506 = vmatpush1.msra.mxu0 %v956
  %1507 = vmatprep.subr.mxu0 0.0
  %1508 = vmatpush1.msra.mxu0 %v957
  %1509 = vmatprep.subr.mxu0 0.0
  %1510 = vmatpush1.msra.mxu0 0.0
  %1511 = vmatprep.subr.mxu0 0.0
  %1512 = vmatpush1.msra.mxu0 0.0
  %1513 = vmatprep.subr.mxu0 0.0
  %1514 = vmatpush1.msra.mxu0 0.0
  %1515 = vmatprep.subr.mxu0 0.0
  %1516 = vmatpush1.msra.mxu0 0.0
  %1517 = vmatprep.subr.mxu0 0.0
  %1518 = vmatpush1.msra.mxu0 0.0
  %1519 = vmatprep.subr.mxu0 0.0
  %1520 = vmatpush1.msra.mxu0 0.0
  %1521 = vmatprep.subr.mxu0 0.0
  %1522 = vmatpush1.msra.mxu0 0.0
  %1523 = vmatprep.subr.mxu0 0.0
  %1524 = vmatpush1.msra.mxu0 0.0
  %1525 = vmatprep.subr.mxu0 0.0
  %1526 = vmatpush1.msra.mxu0 0.0
  %1527 = vmatprep.subr.mxu0 0.0
  %1528 = vmatpush1.msra.mxu0 0.0
  %1529 = vmatprep.subr.mxu0 0.0
  %1530 = vmatpush1.msra.mxu0 0.0
  %1531 = vmatprep.subr.mxu0 0.0
  %1532 = vmatpush1.msra.mxu0 0.0
  %1533 = vmatprep.subr.mxu0 0.0
  %1534 = vmatpush1.msra.mxu0 0.0
  %1535 = vmatprep.subr.mxu0 0.0
  %1536 = vmatpush1.msra.mxu0 0.0
  %1537 = vmatprep.subr.mxu0 0.0
  %1538 = vmatpush1.msra.mxu0 0.0
  %1539 = vmatprep.subr.mxu0 0.0
  %1540 = vmatpush1.msra.mxu0 0.0
  %1541 = vmatprep.subr.mxu0 0.0
  %1542 = vmatpush1.msra.mxu0 0.0
  %1543 = vmatprep.subr.mxu0 0.0
  %1544 = vmatpush1.msra.mxu0 0.0
  %1545 = vmatprep.subr.mxu0 0.0
  %1546 = vmatpush1.msra.mxu0 0.0
  %1547 = vmatprep.subr.mxu0 0.0
  %1548 = vmatpush1.msra.mxu0 0.0
  %1549 = vmatprep.subr.mxu0 0.0
  %1550 = vmatpush1.msra.mxu0 0.0
  %1551 = vmatprep.subr.mxu0 0.0
  %1552 = vmatpush1.msra.mxu0 0.0
  %1553 = vmatprep.subr.mxu0 0.0
  %1554 = vmatpush1.msra.mxu0 0.0
  %1555 = vmatprep.subr.mxu0 0.0
  %1556 = vmatpush1.msra.mxu0 0.0
  %1557 = vmatprep.subr.mxu0 0.0
  %1558 = vmatpush1.msra.mxu0 0.0
  %1559 = vmatprep.subr.mxu0 0.0
  %1560 = vmatpush1.msra.mxu0 0.0
  %1561 = vmatprep.subr.mxu0 0.0
  %1562 = vmatpush1.msra.mxu0 0.0
  %1563 = vmatprep.subr.mxu0 0.0
  %1564 = vmatpush1.msra.mxu0 0.0
  %1565 = vmatprep.mubr.f32.mxu0 0.0
  %1566 = vmatmul.mubr.f32.gmra.mrb[0].mxu0 %v1499
  %v1567 = vpop.f32.mrb[0].mxu0
  %v1568 = vadd.f32 0.0, %v1567
  %v1569 = vpop.f32.mrb[0].mxu0
  %1570 = vdwg.mxu0
  %v1571 = vadd.f32 %v1498, %v1568
  %v1572 = vmul.f32 %v1571, %v49
  %v1573 = vxor.u32 %v1572, 2147483648
  %v1574 = vmul.f32 %v1573, 1.442695
  %v1575 = vpow.pop %v1574
  %v1576 = vadd.f32 %v1575, 1.0
  %v1577 = vrcp.pop %v1576
  %v1578 = vmul.f32 1.0, %v1577
  %v1579 = vmul.f32 %v1578, %v49
  %v1580 = vadd.f32 %v1579, %v50
  %v1581 = vmul.f32 %v1580, %v1483
  %1583 = vrot.lane.b32.xlu0 %v1580, 64
  %v1584 = vpop.permute.xlu0 %1583
  %v1586 = vmul.f32 %v1580, %v1584
  %1588 = vrot.lane.b32.xlu0 %v1586, 32
  %v1589 = vpop.permute.xlu0 %1588
  %v1591 = vadd.f32 %v1581, %v1589
  %v1592 = vtanh.pop %v1591
  %1594 = vrot.lane.b32.xlu0 %v1592, 64
  %v1595 = vpop.permute.xlu0 %1594
  %v1597 = vmul.f32 %v1580, %v1595
  %1599 = vrot.lane.b32.xlu0 %v1597, 32
  %v1600 = vpop.permute.xlu0 %1599
  %s1602 = scalar_lea.vmem [#allocation4], 10
  %1603 = vst.msk [vmem:[%s1602] sm:$0x3] %vm1063, %v1600
  %v1604 = vmax.f32 %v1496, %v1597
  %s1605 = scalar_lea.vmem [#allocation2], 12
  %v1606 = vld [vmem:[%s1605] sm:$0x3]
  %v1607 = vsel %vm66, %v1600, 0
  %1609 = vmatprep.subr.mxu0 0.0
  %1610 = vmatpush1.msra.mxu0 %v954
  %1611 = vmatprep.subr.mxu0 0.0
  %1612 = vmatpush1.msra.mxu0 %v955
  %1613 = vmatprep.subr.mxu0 0.0
  %1614 = vmatpush1.msra.mxu0 %v956
  %1615 = vmatprep.subr.mxu0 0.0
  %1616 = vmatpush1.msra.mxu0 %v957
  %1617 = vmatprep.subr.mxu0 0.0
  %1618 = vmatpush1.msra.mxu0 0.0
  %1619 = vmatprep.subr.mxu0 0.0
  %1620 = vmatpush1.msra.mxu0 0.0
  %1621 = vmatprep.subr.mxu0 0.0
  %1622 = vmatpush1.msra.mxu0 0.0
  %1623 = vmatprep.subr.mxu0 0.0
  %1624 = vmatpush1.msra.mxu0 0.0
  %1625 = vmatprep.subr.mxu0 0.0
  %1626 = vmatpush1.msra.mxu0 0.0
  %1627 = vmatprep.subr.mxu0 0.0
  %1628 = vmatpush1.msra.mxu0 0.0
  %1629 = vmatprep.subr.mxu0 0.0
  %1630 = vmatpush1.msra.mxu0 0.0
  %1631 = vmatprep.subr.mxu0 0.0
  %1632 = vmatpush1.msra.mxu0 0.0
  %1633 = vmatprep.subr.mxu0 0.0
  %1634 = vmatpush1.msra.mxu0 0.0
  %1635 = vmatprep.subr.mxu0 0.0
  %1636 = vmatpush1.msra.mxu0 0.0
  %1637 = vmatprep.subr.mxu0 0.0
  %1638 = vmatpush1.msra.mxu0 0.0
  %1639 = vmatprep.subr.mxu0 0.0
  %1640 = vmatpush1.msra.mxu0 0.0
  %1641 = vmatprep.subr.mxu0 0.0
  %1642 = vmatpush1.msra.mxu0 0.0
  %1643 = vmatprep.subr.mxu0 0.0
  %1644 = vmatpush1.msra.mxu0 0.0
  %1645 = vmatprep.subr.mxu0 0.0
  %1646 = vmatpush1.msra.mxu0 0.0
  %1647 = vmatprep.subr.mxu0 0.0
  %1648 = vmatpush1.msra.mxu0 0.0
  %1649 = vmatprep.subr.mxu0 0.0
  %1650 = vmatpush1.msra.mxu0 0.0
  %1651 = vmatprep.subr.mxu0 0.0
  %1652 = vmatpush1.msra.mxu0 0.0
  %1653 = vmatprep.subr.mxu0 0.0
  %1654 = vmatpush1.msra.mxu0 0.0
  %1655 = vmatprep.subr.mxu0 0.0
  %1656 = vmatpush1.msra.mxu0 0.0
  %1657 = vmatprep.subr.mxu0 0.0
  %1658 = vmatpush1.msra.mxu0 0.0
  %1659 = vmatprep.subr.mxu0 0.0
  %1660 = vmatpush1.msra.mxu0 0.0
  %1661 = vmatprep.subr.mxu0 0.0
  %1662 = vmatpush1.msra.mxu0 0.0
  %1663 = vmatprep.subr.mxu0 0.0
  %1664 = vmatpush1.msra.mxu0 0.0
  %1665 = vmatprep.subr.mxu0 0.0
  %1666 = vmatpush1.msra.mxu0 0.0
  %1667 = vmatprep.subr.mxu0 0.0
  %1668 = vmatpush1.msra.mxu0 0.0
  %1669 = vmatprep.subr.mxu0 0.0
  %1670 = vmatpush1.msra.mxu0 0.0
  %1671 = vmatprep.subr.mxu0 0.0
  %1672 = vmatpush1.msra.mxu0 0.0
  %1673 = vmatprep.mubr.f32.mxu0 0.0
  %1674 = vmatmul.mubr.f32.gmra.mrb[0].mxu0 %v1607
  %v1675 = vpop.f32.mrb[0].mxu0
  %v1676 = vadd.f32 0.0, %v1675
  %v1677 = vpop.f32.mrb[0].mxu0
  %1678 = vdwg.mxu0
  %v1679 = vadd.f32 %v1606, %v1676
  %v1680 = vmul.f32 %v1679, %v49
  %v1681 = vxor.u32 %v1680, 2147483648
  %v1682 = vmul.f32 %v1681, 1.442695
  %v1683 = vpow.pop %v1682
  %v1684 = vadd.f32 %v1683, 1.0
  %v1685 = vrcp.pop %v1684
  %v1686 = vmul.f32 1.0, %v1685
  %v1687 = vmul.f32 %v1686, %v49
  %v1688 = vadd.f32 %v1687, %v50
  %v1689 = vmul.f32 %v1688, %v1591
  %1691 = vrot.lane.b32.xlu0 %v1688, 64
  %v1692 = vpop.permute.xlu0 %1691
  %v1694 = vmul.f32 %v1688, %v1692
  %1696 = vrot.lane.b32.xlu0 %v1694, 32
  %v1697 = vpop.permute.xlu0 %1696
  %v1699 = vadd.f32 %v1689, %v1697
  %v1700 = vtanh.pop %v1699
  %1702 = vrot.lane.b32.xlu0 %v1700, 64
  %v1703 = vpop.permute.xlu0 %1702
  %v1705 = vmul.f32 %v1688, %v1703
  %1707 = vrot.lane.b32.xlu0 %v1705, 32
  %v1708 = vpop.permute.xlu0 %1707
  %s1710 = scalar_lea.vmem [#allocation4], 12
  %1711 = vst.msk [vmem:[%s1710] sm:$0x3] %vm1063, %v1708
  %v1712 = vmax.f32 %v1604, %v1705
  %s1713 = scalar_lea.vmem [#allocation2], 14
  %v1714 = vld [vmem:[%s1713] sm:$0x3]
  %v1715 = vsel %vm66, %v1708, 0
  %1717 = vmatprep.subr.mxu0 0.0
  %1718 = vmatpush1.msra.mxu0 %v954
  %1719 = vmatprep.subr.mxu0 0.0
  %1720 = vmatpush1.msra.mxu0 %v955
  %1721 = vmatprep.subr.mxu0 0.0
  %1722 = vmatpush1.msra.mxu0 %v956
  %1723 = vmatprep.subr.mxu0 0.0
  %1724 = vmatpush1.msra.mxu0 %v957
  %1725 = vmatprep.subr.mxu0 0.0
  %1726 = vmatpush1.msra.mxu0 0.0
  %1727 = vmatprep.subr.mxu0 0.0
  %1728 = vmatpush1.msra.mxu0 0.0
  %1729 = vmatprep.subr.mxu0 0.0
  %1730 = vmatpush1.msra.mxu0 0.0
  %1731 = vmatprep.subr.mxu0 0.0
  %1732 = vmatpush1.msra.mxu0 0.0
  %1733 = vmatprep.subr.mxu0 0.0
  %1734 = vmatpush1.msra.mxu0 0.0
  %1735 = vmatprep.subr.mxu0 0.0
  %1736 = vmatpush1.msra.mxu0 0.0
  %1737 = vmatprep.subr.mxu0 0.0
  %1738 = vmatpush1.msra.mxu0 0.0
  %1739 = vmatprep.subr.mxu0 0.0
  %1740 = vmatpush1.msra.mxu0 0.0
  %1741 = vmatprep.subr.mxu0 0.0
  %1742 = vmatpush1.msra.mxu0 0.0
  %1743 = vmatprep.subr.mxu0 0.0
  %1744 = vmatpush1.msra.mxu0 0.0
  %1745 = vmatprep.subr.mxu0 0.0
  %1746 = vmatpush1.msra.mxu0 0.0
  %1747 = vmatprep.subr.mxu0 0.0
  %1748 = vmatpush1.msra.mxu0 0.0
  %1749 = vmatprep.subr.mxu0 0.0
  %1750 = vmatpush1.msra.mxu0 0.0
  %1751 = vmatprep.subr.mxu0 0.0
  %1752 = vmatpush1.msra.mxu0 0.0
  %1753 = vmatprep.subr.mxu0 0.0
  %1754 = vmatpush1.msra.mxu0 0.0
  %1755 = vmatprep.subr.mxu0 0.0
  %1756 = vmatpush1.msra.mxu0 0.0
  %1757 = vmatprep.subr.mxu0 0.0
  %1758 = vmatpush1.msra.mxu0 0.0
  %1759 = vmatprep.subr.mxu0 0.0
  %1760 = vmatpush1.msra.mxu0 0.0
  %1761 = vmatprep.subr.mxu0 0.0
  %1762 = vmatpush1.msra.mxu0 0.0
  %1763 = vmatprep.subr.mxu0 0.0
  %1764 = vmatpush1.msra.mxu0 0.0
  %1765 = vmatprep.subr.mxu0 0.0
  %1766 = vmatpush1.msra.mxu0 0.0
  %1767 = vmatprep.subr.mxu0 0.0
  %1768 = vmatpush1.msra.mxu0 0.0
  %1769 = vmatprep.subr.mxu0 0.0
  %1770 = vmatpush1.msra.mxu0 0.0
  %1771 = vmatprep.subr.mxu0 0.0
  %1772 = vmatpush1.msra.mxu0 0.0
  %1773 = vmatprep.subr.mxu0 0.0
  %1774 = vmatpush1.msra.mxu0 0.0
  %1775 = vmatprep.subr.mxu0 0.0
  %1776 = vmatpush1.msra.mxu0 0.0
  %1777 = vmatprep.subr.mxu0 0.0
  %1778 = vmatpush1.msra.mxu0 0.0
  %1779 = vmatprep.subr.mxu0 0.0
  %1780 = vmatpush1.msra.mxu0 0.0
  %1781 = vmatprep.mubr.f32.mxu0 0.0
  %1782 = vmatmul.mubr.f32.gmra.mrb[0].mxu0 %v1715
  %v1783 = vpop.f32.mrb[0].mxu0
  %v1784 = vadd.f32 0.0, %v1783
  %v1785 = vpop.f32.mrb[0].mxu0
  %1786 = vdwg.mxu0
  %v1787 = vadd.f32 %v1714, %v1784
  %v1788 = vmul.f32 %v1787, %v49
  %v1789 = vxor.u32 %v1788, 2147483648
  %v1790 = vmul.f32 %v1789, 1.442695
  %v1791 = vpow.pop %v1790
  %v1792 = vadd.f32 %v1791, 1.0
  %v1793 = vrcp.pop %v1792
  %v1794 = vmul.f32 1.0, %v1793
  %v1795 = vmul.f32 %v1794, %v49
  %v1796 = vadd.f32 %v1795, %v50
  %v1797 = vmul.f32 %v1796, %v1699
  %1799 = vrot.lane.b32.xlu0 %v1796, 64
  %v1800 = vpop.permute.xlu0 %1799
  %v1802 = vmul.f32 %v1796, %v1800
  %1804 = vrot.lane.b32.xlu0 %v1802, 32
  %v1805 = vpop.permute.xlu0 %1804
  %v1807 = vadd.f32 %v1797, %v1805
  %v1808 = vtanh.pop %v1807
  %1810 = vrot.lane.b32.xlu0 %v1808, 64
  %v1811 = vpop.permute.xlu0 %1810
  %v1813 = vmul.f32 %v1796, %v1811
  %1815 = vrot.lane.b32.xlu0 %v1813, 32
  %v1816 = vpop.permute.xlu0 %1815
  %s1818 = scalar_lea.vmem [#allocation4], 14
  %1819 = vst.msk [vmem:[%s1818] sm:$0x3] %vm1063, %v1816
  %v1820 = vmax.f32 %v1712, %v1813
  %s1821 = scalar_lea.vmem [#allocation2], 16
  %v1822 = vld [vmem:[%s1821] sm:$0x3]
  %v1823 = vsel %vm66, %v1816, 0
  %1825 = vmatprep.subr.mxu0 0.0
  %1826 = vmatpush1.msra.mxu0 %v954
  %1827 = vmatprep.subr.mxu0 0.0
  %1828 = vmatpush1.msra.mxu0 %v955
  %1829 = vmatprep.subr.mxu0 0.0
  %1830 = vmatpush1.msra.mxu0 %v956
  %1831 = vmatprep.subr.mxu0 0.0
  %1832 = vmatpush1.msra.mxu0 %v957
  %1833 = vmatprep.subr.mxu0 0.0
  %1834 = vmatpush1.msra.mxu0 0.0
  %1835 = vmatprep.subr.mxu0 0.0
  %1836 = vmatpush1.msra.mxu0 0.0
  %1837 = vmatprep.subr.mxu0 0.0
  %1838 = vmatpush1.msra.mxu0 0.0
  %1839 = vmatprep.subr.mxu0 0.0
  %1840 = vmatpush1.msra.mxu0 0.0
  %1841 = vmatprep.subr.mxu0 0.0
  %1842 = vmatpush1.msra.mxu0 0.0
  %1843 = vmatprep.subr.mxu0 0.0
  %1844 = vmatpush1.msra.mxu0 0.0
  %1845 = vmatprep.subr.mxu0 0.0
  %1846 = vmatpush1.msra.mxu0 0.0
  %1847 = vmatprep.subr.mxu0 0.0
  %1848 = vmatpush1.msra.mxu0 0.0
  %1849 = vmatprep.subr.mxu0 0.0
  %1850 = vmatpush1.msra.mxu0 0.0
  %1851 = vmatprep.subr.mxu0 0.0
  %1852 = vmatpush1.msra.mxu0 0.0
  %1853 = vmatprep.subr.mxu0 0.0
  %1854 = vmatpush1.msra.mxu0 0.0
  %1855 = vmatprep.subr.mxu0 0.0
  %1856 = vmatpush1.msra.mxu0 0.0
  %1857 = vmatprep.subr.mxu0 0.0
  %1858 = vmatpush1.msra.mxu0 0.0
  %1859 = vmatprep.subr.mxu0 0.0
  %1860 = vmatpush1.msra.mxu0 0.0
  %1861 = vmatprep.subr.mxu0 0.0
  %1862 = vmatpush1.msra.mxu0 0.0
  %1863 = vmatprep.subr.mxu0 0.0
  %1864 = vmatpush1.msra.mxu0 0.0
  %1865 = vmatprep.subr.mxu0 0.0
  %1866 = vmatpush1.msra.mxu0 0.0
  %1867 = vmatprep.subr.mxu0 0.0
  %1868 = vmatpush1.msra.mxu0 0.0
  %1869 = vmatprep.subr.mxu0 0.0
  %1870 = vmatpush1.msra.mxu0 0.0
  %1871 = vmatprep.subr.mxu0 0.0
  %1872 = vmatpush1.msra.mxu0 0.0
  %1873 = vmatprep.subr.mxu0 0.0
  %1874 = vmatpush1.msra.mxu0 0.0
  %1875 = vmatprep.subr.mxu0 0.0
  %1876 = vmatpush1.msra.mxu0 0.0
  %1877 = vmatprep.subr.mxu0 0.0
  %1878 = vmatpush1.msra.mxu0 0.0
  %1879 = vmatprep.subr.mxu0 0.0
  %1880 = vmatpush1.msra.mxu0 0.0
  %1881 = vmatprep.subr.mxu0 0.0
  %1882 = vmatpush1.msra.mxu0 0.0
  %1883 = vmatprep.subr.mxu0 0.0
  %1884 = vmatpush1.msra.mxu0 0.0
  %1885 = vmatprep.subr.mxu0 0.0
  %1886 = vmatpush1.msra.mxu0 0.0
  %1887 = vmatprep.subr.mxu0 0.0
  %1888 = vmatpush1.msra.mxu0 0.0
  %1889 = vmatprep.mubr.f32.mxu0 0.0
  %1890 = vmatmul.mubr.f32.gmra.mrb[0].mxu0 %v1823
  %v1891 = vpop.f32.mrb[0].mxu0
  %v1892 = vadd.f32 0.0, %v1891
  %v1893 = vpop.f32.mrb[0].mxu0
  %1894 = vdwg.mxu0
  %v1895 = vadd.f32 %v1822, %v1892
  %v1896 = vmul.f32 %v1895, %v49
  %v1897 = vxor.u32 %v1896, 2147483648
  %v1898 = vmul.f32 %v1897, 1.442695
  %v1899 = vpow.pop %v1898
  %v1900 = vadd.f32 %v1899, 1.0
  %v1901 = vrcp.pop %v1900
  %v1902 = vmul.f32 1.0, %v1901
  %v1903 = vmul.f32 %v1902, %v49
  %v1904 = vadd.f32 %v1903, %v50
  %v1905 = vmul.f32 %v1904, %v1807
  %1907 = vrot.lane.b32.xlu0 %v1904, 64
  %v1908 = vpop.permute.xlu0 %1907
  %v1910 = vmul.f32 %v1904, %v1908
  %1912 = vrot.lane.b32.xlu0 %v1910, 32
  %v1913 = vpop.permute.xlu0 %1912
  %v1915 = vadd.f32 %v1905, %v1913
  %v1916 = vtanh.pop %v1915
  %1918 = vrot.lane.b32.xlu0 %v1916, 64
  %v1919 = vpop.permute.xlu0 %1918
  %v1921 = vmul.f32 %v1904, %v1919
  %1923 = vrot.lane.b32.xlu0 %v1921, 32
  %v1924 = vpop.permute.xlu0 %1923
  %s1926 = scalar_lea.vmem [#allocation4], 16
  %1927 = vst.msk [vmem:[%s1926] sm:$0x3] %vm1063, %v1924
  %v1928 = vmax.f32 %v1820, %v1921
  %s1929 = scalar_lea.vmem [#allocation2], 18
  %v1930 = vld [vmem:[%s1929] sm:$0x3]
  %v1931 = vsel %vm66, %v1924, 0
  %1933 = vmatprep.subr.mxu0 0.0
  %1934 = vmatpush1.msra.mxu0 %v954
  %1935 = vmatprep.subr.mxu0 0.0
  %1936 = vmatpush1.msra.mxu0 %v955
  %1937 = vmatprep.subr.mxu0 0.0
  %1938 = vmatpush1.msra.mxu0 %v956
  %1939 = vmatprep.subr.mxu0 0.0
  %1940 = vmatpush1.msra.mxu0 %v957
  %1941 = vmatprep.subr.mxu0 0.0
  %1942 = vmatpush1.msra.mxu0 0.0
  %1943 = vmatprep.subr.mxu0 0.0
  %1944 = vmatpush1.msra.mxu0 0.0
  %1945 = vmatprep.subr.mxu0 0.0
  %1946 = vmatpush1.msra.mxu0 0.0
  %1947 = vmatprep.subr.mxu0 0.0
  %1948 = vmatpush1.msra.mxu0 0.0
  %1949 = vmatprep.subr.mxu0 0.0
  %1950 = vmatpush1.msra.mxu0 0.0
  %1951 = vmatprep.subr.mxu0 0.0
  %1952 = vmatpush1.msra.mxu0 0.0
  %1953 = vmatprep.subr.mxu0 0.0
  %1954 = vmatpush1.msra.mxu0 0.0
  %1955 = vmatprep.subr.mxu0 0.0
  %1956 = vmatpush1.msra.mxu0 0.0
  %1957 = vmatprep.subr.mxu0 0.0
  %1958 = vmatpush1.msra.mxu0 0.0
  %1959 = vmatprep.subr.mxu0 0.0
  %1960 = vmatpush1.msra.mxu0 0.0
  %1961 = vmatprep.subr.mxu0 0.0
  %1962 = vmatpush1.msra.mxu0 0.0
  %1963 = vmatprep.subr.mxu0 0.0
  %1964 = vmatpush1.msra.mxu0 0.0
  %1965 = vmatprep.subr.mxu0 0.0
  %1966 = vmatpush1.msra.mxu0 0.0
  %1967 = vmatprep.subr.mxu0 0.0
  %1968 = vmatpush1.msra.mxu0 0.0
  %1969 = vmatprep.subr.mxu0 0.0
  %1970 = vmatpush1.msra.mxu0 0.0
  %1971 = vmatprep.subr.mxu0 0.0
  %1972 = vmatpush1.msra.mxu0 0.0
  %1973 = vmatprep.subr.mxu0 0.0
  %1974 = vmatpush1.msra.mxu0 0.0
  %1975 = vmatprep.subr.mxu0 0.0
  %1976 = vmatpush1.msra.mxu0 0.0
  %1977 = vmatprep.subr.mxu0 0.0
  %1978 = vmatpush1.msra.mxu0 0.0
  %1979 = vmatprep.subr.mxu0 0.0
  %1980 = vmatpush1.msra.mxu0 0.0
  %1981 = vmatprep.subr.mxu0 0.0
  %1982 = vmatpush1.msra.mxu0 0.0
  %1983 = vmatprep.subr.mxu0 0.0
  %1984 = vmatpush1.msra.mxu0 0.0
  %1985 = vmatprep.subr.mxu0 0.0
  %1986 = vmatpush1.msra.mxu0 0.0
  %1987 = vmatprep.subr.mxu0 0.0
  %1988 = vmatpush1.msra.mxu0 0.0
  %1989 = vmatprep.subr.mxu0 0.0
  %1990 = vmatpush1.msra.mxu0 0.0
  %1991 = vmatprep.subr.mxu0 0.0
  %1992 = vmatpush1.msra.mxu0 0.0
  %1993 = vmatprep.subr.mxu0 0.0
  %1994 = vmatpush1.msra.mxu0 0.0
  %1995 = vmatprep.subr.mxu0 0.0
  %1996 = vmatpush1.msra.mxu0 0.0
  %1997 = vmatprep.mubr.f32.mxu0 0.0
  %1998 = vmatmul.mubr.f32.gmra.mrb[0].mxu0 %v1931
  %v1999 = vpop.f32.mrb[0].mxu0
  %v2000 = vadd.f32 0.0, %v1999
  %v2001 = vpop.f32.mrb[0].mxu0
  %2002 = vdwg.mxu0
  %v2003 = vadd.f32 %v1930, %v2000
  %v2004 = vmul.f32 %v2003, %v49
  %v2005 = vxor.u32 %v2004, 2147483648
  %v2006 = vmul.f32 %v2005, 1.442695
  %v2007 = vpow.pop %v2006
  %v2008 = vadd.f32 %v2007, 1.0
  %v2009 = vrcp.pop %v2008
  %v2010 = vmul.f32 1.0, %v2009
  %v2011 = vmul.f32 %v2010, %v49
  %v2012 = vadd.f32 %v2011, %v50
  %v2013 = vmul.f32 %v2012, %v1915
  %2015 = vrot.lane.b32.xlu0 %v2012, 64
  %v2016 = vpop.permute.xlu0 %2015
  %v2018 = vmul.f32 %v2012, %v2016
  %2020 = vrot.lane.b32.xlu0 %v2018, 32
  %v2021 = vpop.permute.xlu0 %2020
  %v2023 = vadd.f32 %v2013, %v2021
  %v2024 = vtanh.pop %v2023
  %2026 = vrot.lane.b32.xlu0 %v2024, 64
  %v2027 = vpop.permute.xlu0 %2026
  %v2029 = vmul.f32 %v2012, %v2027
  %2031 = vrot.lane.b32.xlu0 %v2029, 32
  %v2032 = vpop.permute.xlu0 %2031
  %s2034 = scalar_lea.vmem [#allocation4], 18
  %2035 = vst.msk [vmem:[%s2034] sm:$0x3] %vm1063, %v2032
  %v2036 = vmax.f32 %v1928, %v2029
  %s2037 = scalar_lea.vmem [#allocation2], 20
  %v2038 = vld [vmem:[%s2037] sm:$0x3]
  %v2039 = vsel %vm66, %v2032, 0
  %2041 = vmatprep.subr.mxu0 0.0
  %2042 = vmatpush1.msra.mxu0 %v954
  %2043 = vmatprep.subr.mxu0 0.0
  %2044 = vmatpush1.msra.mxu0 %v955
  %2045 = vmatprep.subr.mxu0 0.0
  %2046 = vmatpush1.msra.mxu0 %v956
  %2047 = vmatprep.subr.mxu0 0.0
  %2048 = vmatpush1.msra.mxu0 %v957
  %2049 = vmatprep.subr.mxu0 0.0
  %2050 = vmatpush1.msra.mxu0 0.0
  %2051 = vmatprep.subr.mxu0 0.0
  %2052 = vmatpush1.msra.mxu0 0.0
  %2053 = vmatprep.subr.mxu0 0.0
  %2054 = vmatpush1.msra.mxu0 0.0
  %2055 = vmatprep.subr.mxu0 0.0
  %2056 = vmatpush1.msra.mxu0 0.0
  %2057 = vmatprep.subr.mxu0 0.0
  %2058 = vmatpush1.msra.mxu0 0.0
  %2059 = vmatprep.subr.mxu0 0.0
  %2060 = vmatpush1.msra.mxu0 0.0
  %2061 = vmatprep.subr.mxu0 0.0
  %2062 = vmatpush1.msra.mxu0 0.0
  %2063 = vmatprep.subr.mxu0 0.0
  %2064 = vmatpush1.msra.mxu0 0.0
  %2065 = vmatprep.subr.mxu0 0.0
  %2066 = vmatpush1.msra.mxu0 0.0
  %2067 = vmatprep.subr.mxu0 0.0
  %2068 = vmatpush1.msra.mxu0 0.0
  %2069 = vmatprep.subr.mxu0 0.0
  %2070 = vmatpush1.msra.mxu0 0.0
  %2071 = vmatprep.subr.mxu0 0.0
  %2072 = vmatpush1.msra.mxu0 0.0
  %2073 = vmatprep.subr.mxu0 0.0
  %2074 = vmatpush1.msra.mxu0 0.0
  %2075 = vmatprep.subr.mxu0 0.0
  %2076 = vmatpush1.msra.mxu0 0.0
  %2077 = vmatprep.subr.mxu0 0.0
  %2078 = vmatpush1.msra.mxu0 0.0
  %2079 = vmatprep.subr.mxu0 0.0
  %2080 = vmatpush1.msra.mxu0 0.0
  %2081 = vmatprep.subr.mxu0 0.0
  %2082 = vmatpush1.msra.mxu0 0.0
  %2083 = vmatprep.subr.mxu0 0.0
  %2084 = vmatpush1.msra.mxu0 0.0
  %2085 = vmatprep.subr.mxu0 0.0
  %2086 = vmatpush1.msra.mxu0 0.0
  %2087 = vmatprep.subr.mxu0 0.0
  %2088 = vmatpush1.msra.mxu0 0.0
  %2089 = vmatprep.subr.mxu0 0.0
  %2090 = vmatpush1.msra.mxu0 0.0
  %2091 = vmatprep.subr.mxu0 0.0
  %2092 = vmatpush1.msra.mxu0 0.0
  %2093 = vmatprep.subr.mxu0 0.0
  %2094 = vmatpush1.msra.mxu0 0.0
  %2095 = vmatprep.subr.mxu0 0.0
  %2096 = vmatpush1.msra.mxu0 0.0
  %2097 = vmatprep.subr.mxu0 0.0
  %2098 = vmatpush1.msra.mxu0 0.0
  %2099 = vmatprep.subr.mxu0 0.0
  %2100 = vmatpush1.msra.mxu0 0.0
  %2101 = vmatprep.subr.mxu0 0.0
  %2102 = vmatpush1.msra.mxu0 0.0
  %2103 = vmatprep.subr.mxu0 0.0
  %2104 = vmatpush1.msra.mxu0 0.0
  %2105 = vmatprep.mubr.f32.mxu0 0.0
  %2106 = vmatmul.mubr.f32.gmra.mrb[0].mxu0 %v2039
  %v2107 = vpop.f32.mrb[0].mxu0
  %v2108 = vadd.f32 0.0, %v2107
  %v2109 = vpop.f32.mrb[0].mxu0
  %2110 = vdwg.mxu0
  %v2111 = vadd.f32 %v2038, %v2108
  %v2112 = vmul.f32 %v2111, %v49
  %v2113 = vxor.u32 %v2112, 2147483648
  %v2114 = vmul.f32 %v2113, 1.442695
  %v2115 = vpow.pop %v2114
  %v2116 = vadd.f32 %v2115, 1.0
  %v2117 = vrcp.pop %v2116
  %v2118 = vmul.f32 1.0, %v2117
  %v2119 = vmul.f32 %v2118, %v49
  %v2120 = vadd.f32 %v2119, %v50
  %v2121 = vmul.f32 %v2120, %v2023
  %2123 = vrot.lane.b32.xlu0 %v2120, 64
  %v2124 = vpop.permute.xlu0 %2123
  %v2126 = vmul.f32 %v2120, %v2124
  %2128 = vrot.lane.b32.xlu0 %v2126, 32
  %v2129 = vpop.permute.xlu0 %2128
  %v2131 = vadd.f32 %v2121, %v2129
  %v2132 = vtanh.pop %v2131
  %2134 = vrot.lane.b32.xlu0 %v2132, 64
  %v2135 = vpop.permute.xlu0 %2134
  %v2137 = vmul.f32 %v2120, %v2135
  %2139 = vrot.lane.b32.xlu0 %v2137, 32
  %v2140 = vpop.permute.xlu0 %2139
  %s2142 = scalar_lea.vmem [#allocation4], 20
  %2143 = vst.msk [vmem:[%s2142] sm:$0x3] %vm1063, %v2140
  %v2144 = vmax.f32 %v2036, %v2137
  %s2145 = scalar_lea.vmem [#allocation2], 22
  %v2146 = vld [vmem:[%s2145] sm:$0x3]
  %v2147 = vsel %vm66, %v2140, 0
  %2149 = vmatprep.subr.mxu0 0.0
  %2150 = vmatpush1.msra.mxu0 %v954
  %2151 = vmatprep.subr.mxu0 0.0
  %2152 = vmatpush1.msra.mxu0 %v955
  %2153 = vmatprep.subr.mxu0 0.0
  %2154 = vmatpush1.msra.mxu0 %v956
  %2155 = vmatprep.subr.mxu0 0.0
  %2156 = vmatpush1.msra.mxu0 %v957
  %2157 = vmatprep.subr.mxu0 0.0
  %2158 = vmatpush1.msra.mxu0 0.0
  %2159 = vmatprep.subr.mxu0 0.0
  %2160 = vmatpush1.msra.mxu0 0.0
  %2161 = vmatprep.subr.mxu0 0.0
  %2162 = vmatpush1.msra.mxu0 0.0
  %2163 = vmatprep.subr.mxu0 0.0
  %2164 = vmatpush1.msra.mxu0 0.0
  %2165 = vmatprep.subr.mxu0 0.0
  %2166 = vmatpush1.msra.mxu0 0.0
  %2167 = vmatprep.subr.mxu0 0.0
  %2168 = vmatpush1.msra.mxu0 0.0
  %2169 = vmatprep.subr.mxu0 0.0
  %2170 = vmatpush1.msra.mxu0 0.0
  %2171 = vmatprep.subr.mxu0 0.0
  %2172 = vmatpush1.msra.mxu0 0.0
  %2173 = vmatprep.subr.mxu0 0.0
  %2174 = vmatpush1.msra.mxu0 0.0
  %2175 = vmatprep.subr.mxu0 0.0
  %2176 = vmatpush1.msra.mxu0 0.0
  %2177 = vmatprep.subr.mxu0 0.0
  %2178 = vmatpush1.msra.mxu0 0.0
  %2179 = vmatprep.subr.mxu0 0.0
  %2180 = vmatpush1.msra.mxu0 0.0
  %2181 = vmatprep.subr.mxu0 0.0
  %2182 = vmatpush1.msra.mxu0 0.0
  %2183 = vmatprep.subr.mxu0 0.0
  %2184 = vmatpush1.msra.mxu0 0.0
  %2185 = vmatprep.subr.mxu0 0.0
  %2186 = vmatpush1.msra.mxu0 0.0
  %2187 = vmatprep.subr.mxu0 0.0
  %2188 = vmatpush1.msra.mxu0 0.0
  %2189 = vmatprep.subr.mxu0 0.0
  %2190 = vmatpush1.msra.mxu0 0.0
  %2191 = vmatprep.subr.mxu0 0.0
  %2192 = vmatpush1.msra.mxu0 0.0
  %2193 = vmatprep.subr.mxu0 0.0
  %2194 = vmatpush1.msra.mxu0 0.0
  %2195 = vmatprep.subr.mxu0 0.0
  %2196 = vmatpush1.msra.mxu0 0.0
  %2197 = vmatprep.subr.mxu0 0.0
  %2198 = vmatpush1.msra.mxu0 0.0
  %2199 = vmatprep.subr.mxu0 0.0
  %2200 = vmatpush1.msra.mxu0 0.0
  %2201 = vmatprep.subr.mxu0 0.0
  %2202 = vmatpush1.msra.mxu0 0.0
  %2203 = vmatprep.subr.mxu0 0.0
  %2204 = vmatpush1.msra.mxu0 0.0
  %2205 = vmatprep.subr.mxu0 0.0
  %2206 = vmatpush1.msra.mxu0 0.0
  %2207 = vmatprep.subr.mxu0 0.0
  %2208 = vmatpush1.msra.mxu0 0.0
  %2209 = vmatprep.subr.mxu0 0.0
  %2210 = vmatpush1.msra.mxu0 0.0
  %2211 = vmatprep.subr.mxu0 0.0
  %2212 = vmatpush1.msra.mxu0 0.0
  %2213 = vmatprep.mubr.f32.mxu0 0.0
  %2214 = vmatmul.mubr.f32.gmra.mrb[0].mxu0 %v2147
  %v2215 = vpop.f32.mrb[0].mxu0
  %v2216 = vadd.f32 0.0, %v2215
  %v2217 = vpop.f32.mrb[0].mxu0
  %2218 = vdwg.mxu0
  %v2219 = vadd.f32 %v2146, %v2216
  %v2220 = vmul.f32 %v2219, %v49
  %v2221 = vxor.u32 %v2220, 2147483648
  %v2222 = vmul.f32 %v2221, 1.442695
  %v2223 = vpow.pop %v2222
  %v2224 = vadd.f32 %v2223, 1.0
  %v2225 = vrcp.pop %v2224
  %v2226 = vmul.f32 1.0, %v2225
  %v2227 = vmul.f32 %v2226, %v49
  %v2228 = vadd.f32 %v2227, %v50
  %v2229 = vmul.f32 %v2228, %v2131
  %2231 = vrot.lane.b32.xlu0 %v2228, 64
  %v2232 = vpop.permute.xlu0 %2231
  %v2234 = vmul.f32 %v2228, %v2232
  %2236 = vrot.lane.b32.xlu0 %v2234, 32
  %v2237 = vpop.permute.xlu0 %2236
  %v2239 = vadd.f32 %v2229, %v2237
  %v2240 = vtanh.pop %v2239
  %2242 = vrot.lane.b32.xlu0 %v2240, 64
  %v2243 = vpop.permute.xlu0 %2242
  %v2245 = vmul.f32 %v2228, %v2243
  %2247 = vrot.lane.b32.xlu0 %v2245, 32
  %v2248 = vpop.permute.xlu0 %2247
  %s2250 = scalar_lea.vmem [#allocation4], 22
  %2251 = vst.msk [vmem:[%s2250] sm:$0x3] %vm1063, %v2248
  %v2252 = vmax.f32 %v2144, %v2245
  %s2253 = scalar_lea.vmem [#allocation2], 24
  %v2254 = vld [vmem:[%s2253] sm:$0x3]
  %v2255 = vsel %vm66, %v2248, 0
  %2257 = vmatprep.subr.mxu0 0.0
  %2258 = vmatpush1.msra.mxu0 %v954
  %2259 = vmatprep.subr.mxu0 0.0
  %2260 = vmatpush1.msra.mxu0 %v955
  %2261 = vmatprep.subr.mxu0 0.0
  %2262 = vmatpush1.msra.mxu0 %v956
  %2263 = vmatprep.subr.mxu0 0.0
  %2264 = vmatpush1.msra.mxu0 %v957
  %2265 = vmatprep.subr.mxu0 0.0
  %2266 = vmatpush1.msra.mxu0 0.0
  %2267 = vmatprep.subr.mxu0 0.0
  %2268 = vmatpush1.msra.mxu0 0.0
  %2269 = vmatprep.subr.mxu0 0.0
  %2270 = vmatpush1.msra.mxu0 0.0
  %2271 = vmatprep.subr.mxu0 0.0
  %2272 = vmatpush1.msra.mxu0 0.0
  %2273 = vmatprep.subr.mxu0 0.0
  %2274 = vmatpush1.msra.mxu0 0.0
  %2275 = vmatprep.subr.mxu0 0.0
  %2276 = vmatpush1.msra.mxu0 0.0
  %2277 = vmatprep.subr.mxu0 0.0
  %2278 = vmatpush1.msra.mxu0 0.0
  %2279 = vmatprep.subr.mxu0 0.0
  %2280 = vmatpush1.msra.mxu0 0.0
  %2281 = vmatprep.subr.mxu0 0.0
  %2282 = vmatpush1.msra.mxu0 0.0
  %2283 = vmatprep.subr.mxu0 0.0
  %2284 = vmatpush1.msra.mxu0 0.0
  %2285 = vmatprep.subr.mxu0 0.0
  %2286 = vmatpush1.msra.mxu0 0.0
  %2287 = vmatprep.subr.mxu0 0.0
  %2288 = vmatpush1.msra.mxu0 0.0
  %2289 = vmatprep.subr.mxu0 0.0
  %2290 = vmatpush1.msra.mxu0 0.0
  %2291 = vmatprep.subr.mxu0 0.0
  %2292 = vmatpush1.msra.mxu0 0.0
  %2293 = vmatprep.subr.mxu0 0.0
  %2294 = vmatpush1.msra.mxu0 0.0
  %2295 = vmatprep.subr.mxu0 0.0
  %2296 = vmatpush1.msra.mxu0 0.0
  %2297 = vmatprep.subr.mxu0 0.0
  %2298 = vmatpush1.msra.mxu0 0.0
  %2299 = vmatprep.subr.mxu0 0.0
  %2300 = vmatpush1.msra.mxu0 0.0
  %2301 = vmatprep.subr.mxu0 0.0
  %2302 = vmatpush1.msra.mxu0 0.0
  %2303 = vmatprep.subr.mxu0 0.0
  %2304 = vmatpush1.msra.mxu0 0.0
  %2305 = vmatprep.subr.mxu0 0.0
  %2306 = vmatpush1.msra.mxu0 0.0
  %2307 = vmatprep.subr.mxu0 0.0
  %2308 = vmatpush1.msra.mxu0 0.0
  %2309 = vmatprep.subr.mxu0 0.0
  %2310 = vmatpush1.msra.mxu0 0.0
  %2311 = vmatprep.subr.mxu0 0.0
  %2312 = vmatpush1.msra.mxu0 0.0
  %2313 = vmatprep.subr.mxu0 0.0
  %2314 = vmatpush1.msra.mxu0 0.0
  %2315 = vmatprep.subr.mxu0 0.0
  %2316 = vmatpush1.msra.mxu0 0.0
  %2317 = vmatprep.subr.mxu0 0.0
  %2318 = vmatpush1.msra.mxu0 0.0
  %2319 = vmatprep.subr.mxu0 0.0
  %2320 = vmatpush1.msra.mxu0 0.0
  %2321 = vmatprep.mubr.f32.mxu0 0.0
  %2322 = vmatmul.mubr.f32.gmra.mrb[0].mxu0 %v2255
  %v2323 = vpop.f32.mrb[0].mxu0
  %v2324 = vadd.f32 0.0, %v2323
  %v2325 = vpop.f32.mrb[0].mxu0
  %2326 = vdwg.mxu0
  %v2327 = vadd.f32 %v2254, %v2324
  %v2328 = vmul.f32 %v2327, %v49
  %v2329 = vxor.u32 %v2328, 2147483648
  %v2330 = vmul.f32 %v2329, 1.442695
  %v2331 = vpow.pop %v2330
  %v2332 = vadd.f32 %v2331, 1.0
  %v2333 = vrcp.pop %v2332
  %v2334 = vmul.f32 1.0, %v2333
  %v2335 = vmul.f32 %v2334, %v49
  %v2336 = vadd.f32 %v2335, %v50
  %v2337 = vmul.f32 %v2336, %v2239
  %2339 = vrot.lane.b32.xlu0 %v2336, 64
  %v2340 = vpop.permute.xlu0 %2339
  %v2342 = vmul.f32 %v2336, %v2340
  %2344 = vrot.lane.b32.xlu0 %v2342, 32
  %v2345 = vpop.permute.xlu0 %2344
  %v2347 = vadd.f32 %v2337, %v2345
  %v2348 = vtanh.pop %v2347
  %2350 = vrot.lane.b32.xlu0 %v2348, 64
  %v2351 = vpop.permute.xlu0 %2350
  %v2353 = vmul.f32 %v2336, %v2351
  %2355 = vrot.lane.b32.xlu0 %v2353, 32
  %v2356 = vpop.permute.xlu0 %2355
  %s2358 = scalar_lea.vmem [#allocation4], 24
  %2359 = vst.msk [vmem:[%s2358] sm:$0x3] %vm1063, %v2356
  %v2360 = vmax.f32 %v2252, %v2353
  %s2361 = scalar_lea.vmem [#allocation2], 26
  %v2362 = vld [vmem:[%s2361] sm:$0x3]
  %v2363 = vsel %vm66, %v2356, 0
  %2365 = vmatprep.subr.mxu0 0.0
  %2366 = vmatpush1.msra.mxu0 %v954
  %2367 = vmatprep.subr.mxu0 0.0
  %2368 = vmatpush1.msra.mxu0 %v955
  %2369 = vmatprep.subr.mxu0 0.0
  %2370 = vmatpush1.msra.mxu0 %v956
  %2371 = vmatprep.subr.mxu0 0.0
  %2372 = vmatpush1.msra.mxu0 %v957
  %2373 = vmatprep.subr.mxu0 0.0
  %2374 = vmatpush1.msra.mxu0 0.0
  %2375 = vmatprep.subr.mxu0 0.0
  %2376 = vmatpush1.msra.mxu0 0.0
  %2377 = vmatprep.subr.mxu0 0.0
  %2378 = vmatpush1.msra.mxu0 0.0
  %2379 = vmatprep.subr.mxu0 0.0
  %2380 = vmatpush1.msra.mxu0 0.0
  %2381 = vmatprep.subr.mxu0 0.0
  %2382 = vmatpush1.msra.mxu0 0.0
  %2383 = vmatprep.subr.mxu0 0.0
  %2384 = vmatpush1.msra.mxu0 0.0
  %2385 = vmatprep.subr.mxu0 0.0
  %2386 = vmatpush1.msra.mxu0 0.0
  %2387 = vmatprep.subr.mxu0 0.0
  %2388 = vmatpush1.msra.mxu0 0.0
  %2389 = vmatprep.subr.mxu0 0.0
  %2390 = vmatpush1.msra.mxu0 0.0
  %2391 = vmatprep.subr.mxu0 0.0
  %2392 = vmatpush1.msra.mxu0 0.0
  %2393 = vmatprep.subr.mxu0 0.0
  %2394 = vmatpush1.msra.mxu0 0.0
  %2395 = vmatprep.subr.mxu0 0.0
  %2396 = vmatpush1.msra.mxu0 0.0
  %2397 = vmatprep.subr.mxu0 0.0
  %2398 = vmatpush1.msra.mxu0 0.0
  %2399 = vmatprep.subr.mxu0 0.0
  %2400 = vmatpush1.msra.mxu0 0.0
  %2401 = vmatprep.subr.mxu0 0.0
  %2402 = vmatpush1.msra.mxu0 0.0
  %2403 = vmatprep.subr.mxu0 0.0
  %2404 = vmatpush1.msra.mxu0 0.0
  %2405 = vmatprep.subr.mxu0 0.0
  %2406 = vmatpush1.msra.mxu0 0.0
  %2407 = vmatprep.subr.mxu0 0.0
  %2408 = vmatpush1.msra.mxu0 0.0
  %2409 = vmatprep.subr.mxu0 0.0
  %2410 = vmatpush1.msra.mxu0 0.0
  %2411 = vmatprep.subr.mxu0 0.0
  %2412 = vmatpush1.msra.mxu0 0.0
  %2413 = vmatprep.subr.mxu0 0.0
  %2414 = vmatpush1.msra.mxu0 0.0
  %2415 = vmatprep.subr.mxu0 0.0
  %2416 = vmatpush1.msra.mxu0 0.0
  %2417 = vmatprep.subr.mxu0 0.0
  %2418 = vmatpush1.msra.mxu0 0.0
  %2419 = vmatprep.subr.mxu0 0.0
  %2420 = vmatpush1.msra.mxu0 0.0
  %2421 = vmatprep.subr.mxu0 0.0
  %2422 = vmatpush1.msra.mxu0 0.0
  %2423 = vmatprep.subr.mxu0 0.0
  %2424 = vmatpush1.msra.mxu0 0.0
  %2425 = vmatprep.subr.mxu0 0.0
  %2426 = vmatpush1.msra.mxu0 0.0
  %2427 = vmatprep.subr.mxu0 0.0
  %2428 = vmatpush1.msra.mxu0 0.0
  %2429 = vmatprep.mubr.f32.mxu0 0.0
  %2430 = vmatmul.mubr.f32.gmra.mrb[0].mxu0 %v2363
  %v2431 = vpop.f32.mrb[0].mxu0
  %v2432 = vadd.f32 0.0, %v2431
  %v2433 = vpop.f32.mrb[0].mxu0
  %2434 = vdwg.mxu0
  %v2435 = vadd.f32 %v2362, %v2432
  %v2436 = vmul.f32 %v2435, %v49
  %v2437 = vxor.u32 %v2436, 2147483648
  %v2438 = vmul.f32 %v2437, 1.442695
  %v2439 = vpow.pop %v2438
  %v2440 = vadd.f32 %v2439, 1.0
  %v2441 = vrcp.pop %v2440
  %v2442 = vmul.f32 1.0, %v2441
  %v2443 = vmul.f32 %v2442, %v49
  %v2444 = vadd.f32 %v2443, %v50
  %v2445 = vmul.f32 %v2444, %v2347
  %2447 = vrot.lane.b32.xlu0 %v2444, 64
  %v2448 = vpop.permute.xlu0 %2447
  %v2450 = vmul.f32 %v2444, %v2448
  %2452 = vrot.lane.b32.xlu0 %v2450, 32
  %v2453 = vpop.permute.xlu0 %2452
  %v2455 = vadd.f32 %v2445, %v2453
  %v2456 = vtanh.pop %v2455
  %2458 = vrot.lane.b32.xlu0 %v2456, 64
  %v2459 = vpop.permute.xlu0 %2458
  %v2461 = vmul.f32 %v2444, %v2459
  %2463 = vrot.lane.b32.xlu0 %v2461, 32
  %v2464 = vpop.permute.xlu0 %2463
  %s2466 = scalar_lea.vmem [#allocation4], 26
  %2467 = vst.msk [vmem:[%s2466] sm:$0x3] %vm1063, %v2464
  %v2468 = vmax.f32 %v2360, %v2461
  %s2469 = scalar_lea.vmem [#allocation2], 28
  %v2470 = vld [vmem:[%s2469] sm:$0x3]
  %v2471 = vsel %vm66, %v2464, 0
  %2473 = vmatprep.subr.mxu0 0.0
  %2474 = vmatpush1.msra.mxu0 %v954
  %2475 = vmatprep.subr.mxu0 0.0
  %2476 = vmatpush1.msra.mxu0 %v955
  %2477 = vmatprep.subr.mxu0 0.0
  %2478 = vmatpush1.msra.mxu0 %v956
  %2479 = vmatprep.subr.mxu0 0.0
  %2480 = vmatpush1.msra.mxu0 %v957
  %2481 = vmatprep.subr.mxu0 0.0
  %2482 = vmatpush1.msra.mxu0 0.0
  %2483 = vmatprep.subr.mxu0 0.0
  %2484 = vmatpush1.msra.mxu0 0.0
  %2485 = vmatprep.subr.mxu0 0.0
  %2486 = vmatpush1.msra.mxu0 0.0
  %2487 = vmatprep.subr.mxu0 0.0
  %2488 = vmatpush1.msra.mxu0 0.0
  %2489 = vmatprep.subr.mxu0 0.0
  %2490 = vmatpush1.msra.mxu0 0.0
  %2491 = vmatprep.subr.mxu0 0.0
  %2492 = vmatpush1.msra.mxu0 0.0
  %2493 = vmatprep.subr.mxu0 0.0
  %2494 = vmatpush1.msra.mxu0 0.0
  %2495 = vmatprep.subr.mxu0 0.0
  %2496 = vmatpush1.msra.mxu0 0.0
  %2497 = vmatprep.subr.mxu0 0.0
  %2498 = vmatpush1.msra.mxu0 0.0
  %2499 = vmatprep.subr.mxu0 0.0
  %2500 = vmatpush1.msra.mxu0 0.0
  %2501 = vmatprep.subr.mxu0 0.0
  %2502 = vmatpush1.msra.mxu0 0.0
  %2503 = vmatprep.subr.mxu0 0.0
  %2504 = vmatpush1.msra.mxu0 0.0
  %2505 = vmatprep.subr.mxu0 0.0
  %2506 = vmatpush1.msra.mxu0 0.0
  %2507 = vmatprep.subr.mxu0 0.0
  %2508 = vmatpush1.msra.mxu0 0.0
  %2509 = vmatprep.subr.mxu0 0.0
  %2510 = vmatpush1.msra.mxu0 0.0
  %2511 = vmatprep.subr.mxu0 0.0
  %2512 = vmatpush1.msra.mxu0 0.0
  %2513 = vmatprep.subr.mxu0 0.0
  %2514 = vmatpush1.msra.mxu0 0.0
  %2515 = vmatprep.subr.mxu0 0.0
  %2516 = vmatpush1.msra.mxu0 0.0
  %2517 = vmatprep.subr.mxu0 0.0
  %2518 = vmatpush1.msra.mxu0 0.0
  %2519 = vmatprep.subr.mxu0 0.0
  %2520 = vmatpush1.msra.mxu0 0.0
  %2521 = vmatprep.subr.mxu0 0.0
  %2522 = vmatpush1.msra.mxu0 0.0
  %2523 = vmatprep.subr.mxu0 0.0
  %2524 = vmatpush1.msra.mxu0 0.0
  %2525 = vmatprep.subr.mxu0 0.0
  %2526 = vmatpush1.msra.mxu0 0.0
  %2527 = vmatprep.subr.mxu0 0.0
  %2528 = vmatpush1.msra.mxu0 0.0
  %2529 = vmatprep.subr.mxu0 0.0
  %2530 = vmatpush1.msra.mxu0 0.0
  %2531 = vmatprep.subr.mxu0 0.0
  %2532 = vmatpush1.msra.mxu0 0.0
  %2533 = vmatprep.subr.mxu0 0.0
  %2534 = vmatpush1.msra.mxu0 0.0
  %2535 = vmatprep.subr.mxu0 0.0
  %2536 = vmatpush1.msra.mxu0 0.0
  %2537 = vmatprep.mubr.f32.mxu0 0.0
  %2538 = vmatmul.mubr.f32.gmra.mrb[0].mxu0 %v2471
  %v2539 = vpop.f32.mrb[0].mxu0
  %v2540 = vadd.f32 0.0, %v2539
  %v2541 = vpop.f32.mrb[0].mxu0
  %2542 = vdwg.mxu0
  %v2543 = vadd.f32 %v2470, %v2540
  %v2544 = vmul.f32 %v2543, %v49
  %v2545 = vxor.u32 %v2544, 2147483648
  %v2546 = vmul.f32 %v2545, 1.442695
  %v2547 = vpow.pop %v2546
  %v2548 = vadd.f32 %v2547, 1.0
  %v2549 = vrcp.pop %v2548
  %v2550 = vmul.f32 1.0, %v2549
  %v2551 = vmul.f32 %v2550, %v49
  %v2552 = vadd.f32 %v2551, %v50
  %v2553 = vmul.f32 %v2552, %v2455
  %2555 = vrot.lane.b32.xlu0 %v2552, 64
  %v2556 = vpop.permute.xlu0 %2555
  %v2558 = vmul.f32 %v2552, %v2556
  %2560 = vrot.lane.b32.xlu0 %v2558, 32
  %v2561 = vpop.permute.xlu0 %2560
  %v2563 = vadd.f32 %v2553, %v2561
  %v2564 = vtanh.pop %v2563
  %2566 = vrot.lane.b32.xlu0 %v2564, 64
  %v2567 = vpop.permute.xlu0 %2566
  %v2569 = vmul.f32 %v2552, %v2567
  %2571 = vrot.lane.b32.xlu0 %v2569, 32
  %v2572 = vpop.permute.xlu0 %2571
  %s2574 = scalar_lea.vmem [#allocation4], 28
  %2575 = vst.msk [vmem:[%s2574] sm:$0x3] %vm1063, %v2572
  %v2576 = vmax.f32 %v2468, %v2569
  %s2577 = scalar_lea.vmem [#allocation2], 30
  %v2578 = vld [vmem:[%s2577] sm:$0x3]
  %v2579 = vsel %vm66, %v2572, 0
  %2581 = vmatprep.subr.mxu0 0.0
  %2582 = vmatpush1.msra.mxu0 %v954
  %2583 = vmatprep.subr.mxu0 0.0
  %2584 = vmatpush1.msra.mxu0 %v955
  %2585 = vmatprep.subr.mxu0 0.0
  %2586 = vmatpush1.msra.mxu0 %v956
  %2587 = vmatprep.subr.mxu0 0.0
  %2588 = vmatpush1.msra.mxu0 %v957
  %2589 = vmatprep.subr.mxu0 0.0
  %2590 = vmatpush1.msra.mxu0 0.0
  %2591 = vmatprep.subr.mxu0 0.0
  %2592 = vmatpush1.msra.mxu0 0.0
  %2593 = vmatprep.subr.mxu0 0.0
  %2594 = vmatpush1.msra.mxu0 0.0
  %2595 = vmatprep.subr.mxu0 0.0
  %2596 = vmatpush1.msra.mxu0 0.0
  %2597 = vmatprep.subr.mxu0 0.0
  %2598 = vmatpush1.msra.mxu0 0.0
  %2599 = vmatprep.subr.mxu0 0.0
  %2600 = vmatpush1.msra.mxu0 0.0
  %2601 = vmatprep.subr.mxu0 0.0
  %2602 = vmatpush1.msra.mxu0 0.0
  %2603 = vmatprep.subr.mxu0 0.0
  %2604 = vmatpush1.msra.mxu0 0.0
  %2605 = vmatprep.subr.mxu0 0.0
  %2606 = vmatpush1.msra.mxu0 0.0
  %2607 = vmatprep.subr.mxu0 0.0
  %2608 = vmatpush1.msra.mxu0 0.0
  %2609 = vmatprep.subr.mxu0 0.0
  %2610 = vmatpush1.msra.mxu0 0.0
  %2611 = vmatprep.subr.mxu0 0.0
  %2612 = vmatpush1.msra.mxu0 0.0
  %2613 = vmatprep.subr.mxu0 0.0
  %2614 = vmatpush1.msra.mxu0 0.0
  %2615 = vmatprep.subr.mxu0 0.0
  %2616 = vmatpush1.msra.mxu0 0.0
  %2617 = vmatprep.subr.mxu0 0.0
  %2618 = vmatpush1.msra.mxu0 0.0
  %2619 = vmatprep.subr.mxu0 0.0
  %2620 = vmatpush1.msra.mxu0 0.0
  %2621 = vmatprep.subr.mxu0 0.0
  %2622 = vmatpush1.msra.mxu0 0.0
  %2623 = vmatprep.subr.mxu0 0.0
  %2624 = vmatpush1.msra.mxu0 0.0
  %2625 = vmatprep.subr.mxu0 0.0
  %2626 = vmatpush1.msra.mxu0 0.0
  %2627 = vmatprep.subr.mxu0 0.0
  %2628 = vmatpush1.msra.mxu0 0.0
  %2629 = vmatprep.subr.mxu0 0.0
  %2630 = vmatpush1.msra.mxu0 0.0
  %2631 = vmatprep.subr.mxu0 0.0
  %2632 = vmatpush1.msra.mxu0 0.0
  %2633 = vmatprep.subr.mxu0 0.0
  %2634 = vmatpush1.msra.mxu0 0.0
  %2635 = vmatprep.subr.mxu0 0.0
  %2636 = vmatpush1.msra.mxu0 0.0
  %2637 = vmatprep.subr.mxu0 0.0
  %2638 = vmatpush1.msra.mxu0 0.0
  %2639 = vmatprep.subr.mxu0 0.0
  %2640 = vmatpush1.msra.mxu0 0.0
  %2641 = vmatprep.subr.mxu0 0.0
  %2642 = vmatpush1.msra.mxu0 0.0
  %2643 = vmatprep.subr.mxu0 0.0
  %2644 = vmatpush1.msra.mxu0 0.0
  %2645 = vmatprep.mubr.f32.mxu0 0.0
  %2646 = vmatmul.mubr.f32.gmra.mrb[0].mxu0 %v2579
  %v2647 = vpop.f32.mrb[0].mxu0
  %v2648 = vadd.f32 0.0, %v2647
  %v2649 = vpop.f32.mrb[0].mxu0
  %2650 = vdwg.mxu0
  %v2651 = vadd.f32 %v2578, %v2648
  %v2652 = vmul.f32 %v2651, %v49
  %v2653 = vxor.u32 %v2652, 2147483648
  %v2654 = vmul.f32 %v2653, 1.442695
  %v2655 = vpow.pop %v2654
  %v2656 = vadd.f32 %v2655, 1.0
  %v2657 = vrcp.pop %v2656
  %v2658 = vmul.f32 1.0, %v2657
  %v2659 = vmul.f32 %v2658, %v49
  %v2660 = vadd.f32 %v2659, %v50
  %v2661 = vmul.f32 %v2660, %v2563
  %2663 = vrot.lane.b32.xlu0 %v2660, 64
  %v2664 = vpop.permute.xlu0 %2663
  %v2666 = vmul.f32 %v2660, %v2664
  %2668 = vrot.lane.b32.xlu0 %v2666, 32
  %v2669 = vpop.permute.xlu0 %2668
  %v2671 = vadd.f32 %v2661, %v2669
  %v2672 = vtanh.pop %v2671
  %2674 = vrot.lane.b32.xlu0 %v2672, 64
  %v2675 = vpop.permute.xlu0 %2674
  %v2677 = vmul.f32 %v2660, %v2675
  %2679 = vrot.lane.b32.xlu0 %v2677, 32
  %v2680 = vpop.permute.xlu0 %2679
  %s2682 = scalar_lea.vmem [#allocation4], 30
  %2683 = vst.msk [vmem:[%s2682] sm:$0x3] %vm1063, %v2680
  %v2684 = vmax.f32 %v2576, %v2677
  %v2685 = vld [vmem:[%s7] sm:$0xff]
  %v2686 = vld [vmem:[%s7 + $0x8] sm:$0xff]
  %v2687 = vld [vmem:[%s7 + $0x10] sm:$0xff]
  %v2688 = vld [vmem:[%s7 + $0x18] sm:$0xff]
  %v2689 = vld [vmem:[#allocation3] sm:$0x3f]
  %2690 = vmatprep.subr.mxu0 0.0
  %2691 = vmatpush1.msra.mxu0 %v2685
  %2692 = vmatprep.subr.mxu0 0.0
  %2693 = vmatpush1.msra.mxu0 %v2686
  %2694 = vmatprep.subr.mxu0 0.0
  %2695 = vmatpush1.msra.mxu0 %v2687
  %2696 = vmatprep.subr.mxu0 0.0
  %2697 = vmatpush1.msra.mxu0 %v2688
  %2698 = vmatprep.subr.mxu0 0.0
  %2699 = vmatpush1.msra.mxu0 0.0
  %2700 = vmatprep.subr.mxu0 0.0
  %2701 = vmatpush1.msra.mxu0 0.0
  %2702 = vmatprep.subr.mxu0 0.0
  %2703 = vmatpush1.msra.mxu0 0.0
  %2704 = vmatprep.subr.mxu0 0.0
  %2705 = vmatpush1.msra.mxu0 0.0
  %2706 = vmatprep.subr.mxu0 0.0
  %2707 = vmatpush1.msra.mxu0 0.0
  %2708 = vmatprep.subr.mxu0 0.0
  %2709 = vmatpush1.msra.mxu0 0.0
  %2710 = vmatprep.subr.mxu0 0.0
  %2711 = vmatpush1.msra.mxu0 0.0
  %2712 = vmatprep.subr.mxu0 0.0
  %2713 = vmatpush1.msra.mxu0 0.0
  %2714 = vmatprep.subr.mxu0 0.0
  %2715 = vmatpush1.msra.mxu0 0.0
  %2716 = vmatprep.subr.mxu0 0.0
  %2717 = vmatpush1.msra.mxu0 0.0
  %2718 = vmatprep.subr.mxu0 0.0
  %2719 = vmatpush1.msra.mxu0 0.0
  %2720 = vmatprep.subr.mxu0 0.0
  %2721 = vmatpush1.msra.mxu0 0.0
  %2722 = vmatprep.subr.mxu0 0.0
  %2723 = vmatpush1.msra.mxu0 0.0
  %2724 = vmatprep.subr.mxu0 0.0
  %2725 = vmatpush1.msra.mxu0 0.0
  %2726 = vmatprep.subr.mxu0 0.0
  %2727 = vmatpush1.msra.mxu0 0.0
  %2728 = vmatprep.subr.mxu0 0.0
  %2729 = vmatpush1.msra.mxu0 0.0
  %2730 = vmatprep.subr.mxu0 0.0
  %2731 = vmatpush1.msra.mxu0 0.0
  %2732 = vmatprep.subr.mxu0 0.0
  %2733 = vmatpush1.msra.mxu0 0.0
  %2734 = vmatprep.subr.mxu0 0.0
  %2735 = vmatpush1.msra.mxu0 0.0
  %2736 = vmatprep.subr.mxu0 0.0
  %2737 = vmatpush1.msra.mxu0 0.0
  %2738 = vmatprep.subr.mxu0 0.0
  %2739 = vmatpush1.msra.mxu0 0.0
  %2740 = vmatprep.subr.mxu0 0.0
  %2741 = vmatpush1.msra.mxu0 0.0
  %2742 = vmatprep.subr.mxu0 0.0
  %2743 = vmatpush1.msra.mxu0 0.0
  %2744 = vmatprep.subr.mxu0 0.0
  %2745 = vmatpush1.msra.mxu0 0.0
  %2746 = vmatprep.subr.mxu0 0.0
  %2747 = vmatpush1.msra.mxu0 0.0
  %2748 = vmatprep.subr.mxu0 0.0
  %2749 = vmatpush1.msra.mxu0 0.0
  %2750 = vmatprep.subr.mxu0 0.0
  %2751 = vmatpush1.msra.mxu0 0.0
  %2752 = vmatprep.subr.mxu0 0.0
  %2753 = vmatpush1.msra.mxu0 0.0
  %2754 = vmatprep.mubr.f32.mxu0 0.0
  %2755 = vmatmul.mubr.f32.gmra.mrb[0].mxu0 %v960
  %v2756 = vpop.f32.mrb[0].mxu0
  %v2757 = vadd.f32 0.0, %v2756
  %v2758 = vpop.f32.mrb[0].mxu0
  %2759 = vdwg.mxu0
  %v2760 = vadd.f32 %v2689, %v2757
  %v2761 = vmul.f32 %v2760, %v49
  %v2762 = vxor.u32 %v2761, 2147483648
  %v2763 = vmul.f32 %v2762, 1.442695
  %v2764 = vpow.pop %v2763
  %v2765 = vadd.f32 %v2764, 1.0
  %v2766 = vrcp.pop %v2765
  %v2767 = vmul.f32 1.0, %v2766
  %v2768 = vmul.f32 %v2767, %v49
  %v2769 = vadd.f32 %v2768, %v50
  %v2770 = vmul.f32 %v2769, 0.0
  %2772 = vrot.lane.b32.xlu0 %v2769, 64
  %v2773 = vpop.permute.xlu0 %2772
  %v2775 = vmul.f32 %v2769, %v2773
  %2777 = vrot.lane.b32.xlu0 %v2775, 32
  %v2778 = vpop.permute.xlu0 %2777
  %v2780 = vadd.f32 %v2770, %v2778
  %v2781 = vtanh.pop %v2780
  %2783 = vrot.lane.b32.xlu0 %v2781, 64
  %v2784 = vpop.permute.xlu0 %2783
  %v2786 = vmul.f32 %v2769, %v2784
  %s2787 = scalar_lea.vmem [#allocation3], 8
  %v2788 = vld [vmem:[%s2787] sm:$0x3f]
  %2790 = vrot.lane.b32.xlu0 %v2786, 32
  %v2791 = vpop.permute.xlu0 %2790
  %v2792 = vsel %vm66, %v2791, 0
  %2794 = vmatprep.subr.mxu0 0.0
  %2795 = vmatpush1.msra.mxu0 %v2685
  %2796 = vmatprep.subr.mxu0 0.0
  %2797 = vmatpush1.msra.mxu0 %v2686
  %2798 = vmatprep.subr.mxu0 0.0
  %2799 = vmatpush1.msra.mxu0 %v2687
  %2800 = vmatprep.subr.mxu0 0.0
  %2801 = vmatpush1.msra.mxu0 %v2688
  %2802 = vmatprep.subr.mxu0 0.0
  %2803 = vmatpush1.msra.mxu0 0.0
  %2804 = vmatprep.subr.mxu0 0.0
  %2805 = vmatpush1.msra.mxu0 0.0
  %2806 = vmatprep.subr.mxu0 0.0
  %2807 = vmatpush1.msra.mxu0 0.0
  %2808 = vmatprep.subr.mxu0 0.0
  %2809 = vmatpush1.msra.mxu0 0.0
  %2810 = vmatprep.subr.mxu0 0.0
  %2811 = vmatpush1.msra.mxu0 0.0
  %2812 = vmatprep.subr.mxu0 0.0
  %2813 = vmatpush1.msra.mxu0 0.0
  %2814 = vmatprep.subr.mxu0 0.0
  %2815 = vmatpush1.msra.mxu0 0.0
  %2816 = vmatprep.subr.mxu0 0.0
  %2817 = vmatpush1.msra.mxu0 0.0
  %2818 = vmatprep.subr.mxu0 0.0
  %2819 = vmatpush1.msra.mxu0 0.0
  %2820 = vmatprep.subr.mxu0 0.0
  %2821 = vmatpush1.msra.mxu0 0.0
  %2822 = vmatprep.subr.mxu0 0.0
  %2823 = vmatpush1.msra.mxu0 0.0
  %2824 = vmatprep.subr.mxu0 0.0
  %2825 = vmatpush1.msra.mxu0 0.0
  %2826 = vmatprep.subr.mxu0 0.0
  %2827 = vmatpush1.msra.mxu0 0.0
  %2828 = vmatprep.subr.mxu0 0.0
  %2829 = vmatpush1.msra.mxu0 0.0
  %2830 = vmatprep.subr.mxu0 0.0
  %2831 = vmatpush1.msra.mxu0 0.0
  %2832 = vmatprep.subr.mxu0 0.0
  %2833 = vmatpush1.msra.mxu0 0.0
  %2834 = vmatprep.subr.mxu0 0.0
  %2835 = vmatpush1.msra.mxu0 0.0
  %2836 = vmatprep.subr.mxu0 0.0
  %2837 = vmatpush1.msra.mxu0 0.0
  %2838 = vmatprep.subr.mxu0 0.0
  %2839 = vmatpush1.msra.mxu0 0.0
  %2840 = vmatprep.subr.mxu0 0.0
  %2841 = vmatpush1.msra.mxu0 0.0
  %2842 = vmatprep.subr.mxu0 0.0
  %2843 = vmatpush1.msra.mxu0 0.0
  %2844 = vmatprep.subr.mxu0 0.0
  %2845 = vmatpush1.msra.mxu0 0.0
  %2846 = vmatprep.subr.mxu0 0.0
  %2847 = vmatpush1.msra.mxu0 0.0
  %2848 = vmatprep.subr.mxu0 0.0
  %2849 = vmatpush1.msra.mxu0 0.0
  %2850 = vmatprep.subr.mxu0 0.0
  %2851 = vmatpush1.msra.mxu0 0.0
  %2852 = vmatprep.subr.mxu0 0.0
  %2853 = vmatpush1.msra.mxu0 0.0
  %2854 = vmatprep.subr.mxu0 0.0
  %2855 = vmatpush1.msra.mxu0 0.0
  %2856 = vmatprep.subr.mxu0 0.0
  %2857 = vmatpush1.msra.mxu0 0.0
  %2858 = vmatprep.mubr.f32.mxu0 0.0
  %2859 = vmatmul.mubr.f32.gmra.mrb[0].mxu0 %v2792
  %v2860 = vpop.f32.mrb[0].mxu0
  %v2861 = vadd.f32 0.0, %v2860
  %v2862 = vpop.f32.mrb[0].mxu0
  %2863 = vdwg.mxu0
  %v2864 = vadd.f32 %v2788, %v2861
  %v2865 = vmul.f32 %v2864, %v49
  %v2866 = vxor.u32 %v2865, 2147483648
  %v2867 = vmul.f32 %v2866, 1.442695
  %v2868 = vpow.pop %v2867
  %v2869 = vadd.f32 %v2868, 1.0
  %v2870 = vrcp.pop %v2869
  %v2871 = vmul.f32 1.0, %v2870
  %v2872 = vmul.f32 %v2871, %v49
  %v2873 = vadd.f32 %v2872, %v50
  %v2874 = vmul.f32 %v2873, %v2780
  %2876 = vrot.lane.b32.xlu0 %v2873, 64
  %v2877 = vpop.permute.xlu0 %2876
  %v2879 = vmul.f32 %v2873, %v2877
  %2881 = vrot.lane.b32.xlu0 %v2879, 32
  %v2882 = vpop.permute.xlu0 %2881
  %v2884 = vadd.f32 %v2874, %v2882
  %v2885 = vtanh.pop %v2884
  %2887 = vrot.lane.b32.xlu0 %v2885, 64
  %v2888 = vpop.permute.xlu0 %2887
  %v2890 = vmul.f32 %v2873, %v2888
  %v2891 = vmax.f32 %v2786, %v2890
  %s2892 = scalar_lea.vmem [#allocation3], 16
  %v2893 = vld [vmem:[%s2892] sm:$0x3f]
  %2895 = vrot.lane.b32.xlu0 %v2890, 32
  %v2896 = vpop.permute.xlu0 %2895
  %v2897 = vsel %vm66, %v2896, 0
  %2899 = vmatprep.subr.mxu0 0.0
  %2900 = vmatpush1.msra.mxu0 %v2685
  %2901 = vmatprep.subr.mxu0 0.0
  %2902 = vmatpush1.msra.mxu0 %v2686
  %2903 = vmatprep.subr.mxu0 0.0
  %2904 = vmatpush1.msra.mxu0 %v2687
  %2905 = vmatprep.subr.mxu0 0.0
  %2906 = vmatpush1.msra.mxu0 %v2688
  %2907 = vmatprep.subr.mxu0 0.0
  %2908 = vmatpush1.msra.mxu0 0.0
  %2909 = vmatprep.subr.mxu0 0.0
  %2910 = vmatpush1.msra.mxu0 0.0
  %2911 = vmatprep.subr.mxu0 0.0
  %2912 = vmatpush1.msra.mxu0 0.0
  %2913 = vmatprep.subr.mxu0 0.0
  %2914 = vmatpush1.msra.mxu0 0.0
  %2915 = vmatprep.subr.mxu0 0.0
  %2916 = vmatpush1.msra.mxu0 0.0
  %2917 = vmatprep.subr.mxu0 0.0
  %2918 = vmatpush1.msra.mxu0 0.0
  %2919 = vmatprep.subr.mxu0 0.0
  %2920 = vmatpush1.msra.mxu0 0.0
  %2921 = vmatprep.subr.mxu0 0.0
  %2922 = vmatpush1.msra.mxu0 0.0
  %2923 = vmatprep.subr.mxu0 0.0
  %2924 = vmatpush1.msra.mxu0 0.0
  %2925 = vmatprep.subr.mxu0 0.0
  %2926 = vmatpush1.msra.mxu0 0.0
  %2927 = vmatprep.subr.mxu0 0.0
  %2928 = vmatpush1.msra.mxu0 0.0
  %2929 = vmatprep.subr.mxu0 0.0
  %2930 = vmatpush1.msra.mxu0 0.0
  %2931 = vmatprep.subr.mxu0 0.0
  %2932 = vmatpush1.msra.mxu0 0.0
  %2933 = vmatprep.subr.mxu0 0.0
  %2934 = vmatpush1.msra.mxu0 0.0
  %2935 = vmatprep.subr.mxu0 0.0
  %2936 = vmatpush1.msra.mxu0 0.0
  %2937 = vmatprep.subr.mxu0 0.0
  %2938 = vmatpush1.msra.mxu0 0.0
  %2939 = vmatprep.subr.mxu0 0.0
  %2940 = vmatpush1.msra.mxu0 0.0
  %2941 = vmatprep.subr.mxu0 0.0
  %2942 = vmatpush1.msra.mxu0 0.0
  %2943 = vmatprep.subr.mxu0 0.0
  %2944 = vmatpush1.msra.mxu0 0.0
  %2945 = vmatprep.subr.mxu0 0.0
  %2946 = vmatpush1.msra.mxu0 0.0
  %2947 = vmatprep.subr.mxu0 0.0
  %2948 = vmatpush1.msra.mxu0 0.0
  %2949 = vmatprep.subr.mxu0 0.0
  %2950 = vmatpush1.msra.mxu0 0.0
  %2951 = vmatprep.subr.mxu0 0.0
  %2952 = vmatpush1.msra.mxu0 0.0
  %2953 = vmatprep.subr.mxu0 0.0
  %2954 = vmatpush1.msra.mxu0 0.0
  %2955 = vmatprep.subr.mxu0 0.0
  %2956 = vmatpush1.msra.mxu0 0.0
  %2957 = vmatprep.subr.mxu0 0.0
  %2958 = vmatpush1.msra.mxu0 0.0
  %2959 = vmatprep.subr.mxu0 0.0
  %2960 = vmatpush1.msra.mxu0 0.0
  %2961 = vmatprep.subr.mxu0 0.0
  %2962 = vmatpush1.msra.mxu0 0.0
  %2963 = vmatprep.mubr.f32.mxu0 0.0
  %2964 = vmatmul.mubr.f32.gmra.mrb[0].mxu0 %v2897
  %v2965 = vpop.f32.mrb[0].mxu0
  %v2966 = vadd.f32 0.0, %v2965
  %v2967 = vpop.f32.mrb[0].mxu0
  %2968 = vdwg.mxu0
  %v2969 = vadd.f32 %v2893, %v2966
  %v2970 = vmul.f32 %v2969, %v49
  %v2971 = vxor.u32 %v2970, 2147483648
  %v2972 = vmul.f32 %v2971, 1.442695
  %v2973 = vpow.pop %v2972
  %v2974 = vadd.f32 %v2973, 1.0
  %v2975 = vrcp.pop %v2974
  %v2976 = vmul.f32 1.0, %v2975
  %v2977 = vmul.f32 %v2976, %v49
  %v2978 = vadd.f32 %v2977, %v50
  %v2979 = vmul.f32 %v2978, %v2884
  %2981 = vrot.lane.b32.xlu0 %v2978, 64
  %v2982 = vpop.permute.xlu0 %2981
  %v2984 = vmul.f32 %v2978, %v2982
  %2986 = vrot.lane.b32.xlu0 %v2984, 32
  %v2987 = vpop.permute.xlu0 %2986
  %v2989 = vadd.f32 %v2979, %v2987
  %v2990 = vtanh.pop %v2989
  %2992 = vrot.lane.b32.xlu0 %v2990, 64
  %v2993 = vpop.permute.xlu0 %2992
  %v2995 = vmul.f32 %v2978, %v2993
  %v2996 = vmax.f32 %v2891, %v2995
  %s2997 = scalar_lea.vmem [#allocation3], 24
  %v2998 = vld [vmem:[%s2997] sm:$0x3f]
  %3000 = vrot.lane.b32.xlu0 %v2995, 32
  %v3001 = vpop.permute.xlu0 %3000
  %v3002 = vsel %vm66, %v3001, 0
  %3004 = vmatprep.subr.mxu0 0.0
  %3005 = vmatpush1.msra.mxu0 %v2685
  %3006 = vmatprep.subr.mxu0 0.0
  %3007 = vmatpush1.msra.mxu0 %v2686
  %3008 = vmatprep.subr.mxu0 0.0
  %3009 = vmatpush1.msra.mxu0 %v2687
  %3010 = vmatprep.subr.mxu0 0.0
  %3011 = vmatpush1.msra.mxu0 %v2688
  %3012 = vmatprep.subr.mxu0 0.0
  %3013 = vmatpush1.msra.mxu0 0.0
  %3014 = vmatprep.subr.mxu0 0.0
  %3015 = vmatpush1.msra.mxu0 0.0
  %3016 = vmatprep.subr.mxu0 0.0
  %3017 = vmatpush1.msra.mxu0 0.0
  %3018 = vmatprep.subr.mxu0 0.0
  %3019 = vmatpush1.msra.mxu0 0.0
  %3020 = vmatprep.subr.mxu0 0.0
  %3021 = vmatpush1.msra.mxu0 0.0
  %3022 = vmatprep.subr.mxu0 0.0
  %3023 = vmatpush1.msra.mxu0 0.0
  %3024 = vmatprep.subr.mxu0 0.0
  %3025 = vmatpush1.msra.mxu0 0.0
  %3026 = vmatprep.subr.mxu0 0.0
  %3027 = vmatpush1.msra.mxu0 0.0
  %3028 = vmatprep.subr.mxu0 0.0
  %3029 = vmatpush1.msra.mxu0 0.0
  %3030 = vmatprep.subr.mxu0 0.0
  %3031 = vmatpush1.msra.mxu0 0.0
  %3032 = vmatprep.subr.mxu0 0.0
  %3033 = vmatpush1.msra.mxu0 0.0
  %3034 = vmatprep.subr.mxu0 0.0
  %3035 = vmatpush1.msra.mxu0 0.0
  %3036 = vmatprep.subr.mxu0 0.0
  %3037 = vmatpush1.msra.mxu0 0.0
  %3038 = vmatprep.subr.mxu0 0.0
  %3039 = vmatpush1.msra.mxu0 0.0
  %3040 = vmatprep.subr.mxu0 0.0
  %3041 = vmatpush1.msra.mxu0 0.0
  %3042 = vmatprep.subr.mxu0 0.0
  %3043 = vmatpush1.msra.mxu0 0.0
  %3044 = vmatprep.subr.mxu0 0.0
  %3045 = vmatpush1.msra.mxu0 0.0
  %3046 = vmatprep.subr.mxu0 0.0
  %3047 = vmatpush1.msra.mxu0 0.0
  %3048 = vmatprep.subr.mxu0 0.0
  %3049 = vmatpush1.msra.mxu0 0.0
  %3050 = vmatprep.subr.mxu0 0.0
  %3051 = vmatpush1.msra.mxu0 0.0
  %3052 = vmatprep.subr.mxu0 0.0
  %3053 = vmatpush1.msra.mxu0 0.0
  %3054 = vmatprep.subr.mxu0 0.0
  %3055 = vmatpush1.msra.mxu0 0.0
  %3056 = vmatprep.subr.mxu0 0.0
  %3057 = vmatpush1.msra.mxu0 0.0
  %3058 = vmatprep.subr.mxu0 0.0
  %3059 = vmatpush1.msra.mxu0 0.0
  %3060 = vmatprep.subr.mxu0 0.0
  %3061 = vmatpush1.msra.mxu0 0.0
  %3062 = vmatprep.subr.mxu0 0.0
  %3063 = vmatpush1.msra.mxu0 0.0
  %3064 = vmatprep.subr.mxu0 0.0
  %3065 = vmatpush1.msra.mxu0 0.0
  %3066 = vmatprep.subr.mxu0 0.0
  %3067 = vmatpush1.msra.mxu0 0.0
  %3068 = vmatprep.mubr.f32.mxu0 0.0
  %3069 = vmatmul.mubr.f32.gmra.mrb[0].mxu0 %v3002
  %v3070 = vpop.f32.mrb[0].mxu0
  %v3071 = vadd.f32 0.0, %v3070
  %v3072 = vpop.f32.mrb[0].mxu0
  %3073 = vdwg.mxu0
  %v3074 = vadd.f32 %v2998, %v3071
  %v3075 = vmul.f32 %v3074, %v49
  %v3076 = vxor.u32 %v3075, 2147483648
  %v3077 = vmul.f32 %v3076, 1.442695
  %v3078 = vpow.pop %v3077
  %v3079 = vadd.f32 %v3078, 1.0
  %v3080 = vrcp.pop %v3079
  %v3081 = vmul.f32 1.0, %v3080
  %v3082 = vmul.f32 %v3081, %v49
  %v3083 = vadd.f32 %v3082, %v50
  %v3084 = vmul.f32 %v3083, %v2989
  %3086 = vrot.lane.b32.xlu0 %v3083, 64
  %v3087 = vpop.permute.xlu0 %3086
  %v3089 = vmul.f32 %v3083, %v3087
  %3091 = vrot.lane.b32.xlu0 %v3089, 32
  %v3092 = vpop.permute.xlu0 %3091
  %v3094 = vadd.f32 %v3084, %v3092
  %v3095 = vtanh.pop %v3094
  %3097 = vrot.lane.b32.xlu0 %v3095, 64
  %v3098 = vpop.permute.xlu0 %3097
  %v3100 = vmul.f32 %v3083, %v3098
  %v3101 = vmax.f32 %v2996, %v3100
  %s3102 = scalar_lea.vmem [#allocation3], 32
  %v3103 = vld [vmem:[%s3102] sm:$0x3f]
  %3105 = vrot.lane.b32.xlu0 %v3100, 32
  %v3106 = vpop.permute.xlu0 %3105
  %v3107 = vsel %vm66, %v3106, 0
  %3109 = vmatprep.subr.mxu0 0.0
  %3110 = vmatpush1.msra.mxu0 %v2685
  %3111 = vmatprep.subr.mxu0 0.0
  %3112 = vmatpush1.msra.mxu0 %v2686
  %3113 = vmatprep.subr.mxu0 0.0
  %3114 = vmatpush1.msra.mxu0 %v2687
  %3115 = vmatprep.subr.mxu0 0.0
  %3116 = vmatpush1.msra.mxu0 %v2688
  %3117 = vmatprep.subr.mxu0 0.0
  %3118 = vmatpush1.msra.mxu0 0.0
  %3119 = vmatprep.subr.mxu0 0.0
  %3120 = vmatpush1.msra.mxu0 0.0
  %3121 = vmatprep.subr.mxu0 0.0
  %3122 = vmatpush1.msra.mxu0 0.0
  %3123 = vmatprep.subr.mxu0 0.0
  %3124 = vmatpush1.msra.mxu0 0.0
  %3125 = vmatprep.subr.mxu0 0.0
  %3126 = vmatpush1.msra.mxu0 0.0
  %3127 = vmatprep.subr.mxu0 0.0
  %3128 = vmatpush1.msra.mxu0 0.0
  %3129 = vmatprep.subr.mxu0 0.0
  %3130 = vmatpush1.msra.mxu0 0.0
  %3131 = vmatprep.subr.mxu0 0.0
  %3132 = vmatpush1.msra.mxu0 0.0
  %3133 = vmatprep.subr.mxu0 0.0
  %3134 = vmatpush1.msra.mxu0 0.0
  %3135 = vmatprep.subr.mxu0 0.0
  %3136 = vmatpush1.msra.mxu0 0.0
  %3137 = vmatprep.subr.mxu0 0.0
  %3138 = vmatpush1.msra.mxu0 0.0
  %3139 = vmatprep.subr.mxu0 0.0
  %3140 = vmatpush1.msra.mxu0 0.0
  %3141 = vmatprep.subr.mxu0 0.0
  %3142 = vmatpush1.msra.mxu0 0.0
  %3143 = vmatprep.subr.mxu0 0.0
  %3144 = vmatpush1.msra.mxu0 0.0
  %3145 = vmatprep.subr.mxu0 0.0
  %3146 = vmatpush1.msra.mxu0 0.0
  %3147 = vmatprep.subr.mxu0 0.0
  %3148 = vmatpush1.msra.mxu0 0.0
  %3149 = vmatprep.subr.mxu0 0.0
  %3150 = vmatpush1.msra.mxu0 0.0
  %3151 = vmatprep.subr.mxu0 0.0
  %3152 = vmatpush1.msra.mxu0 0.0
  %3153 = vmatprep.subr.mxu0 0.0
  %3154 = vmatpush1.msra.mxu0 0.0
  %3155 = vmatprep.subr.mxu0 0.0
  %3156 = vmatpush1.msra.mxu0 0.0
  %3157 = vmatprep.subr.mxu0 0.0
  %3158 = vmatpush1.msra.mxu0 0.0
  %3159 = vmatprep.subr.mxu0 0.0
  %3160 = vmatpush1.msra.mxu0 0.0
  %3161 = vmatprep.subr.mxu0 0.0
  %3162 = vmatpush1.msra.mxu0 0.0
  %3163 = vmatprep.subr.mxu0 0.0
  %3164 = vmatpush1.msra.mxu0 0.0
  %3165 = vmatprep.subr.mxu0 0.0
  %3166 = vmatpush1.msra.mxu0 0.0
  %3167 = vmatprep.subr.mxu0 0.0
  %3168 = vmatpush1.msra.mxu0 0.0
  %3169 = vmatprep.subr.mxu0 0.0
  %3170 = vmatpush1.msra.mxu0 0.0
  %3171 = vmatprep.subr.mxu0 0.0
  %3172 = vmatpush1.msra.mxu0 0.0
  %3173 = vmatprep.mubr.f32.mxu0 0.0
  %3174 = vmatmul.mubr.f32.gmra.mrb[0].mxu0 %v3107
  %v3175 = vpop.f32.mrb[0].mxu0
  %v3176 = vadd.f32 0.0, %v3175
  %v3177 = vpop.f32.mrb[0].mxu0
  %3178 = vdwg.mxu0
  %v3179 = vadd.f32 %v3103, %v3176
  %v3180 = vmul.f32 %v3179, %v49
  %v3181 = vxor.u32 %v3180, 2147483648
  %v3182 = vmul.f32 %v3181, 1.442695
  %v3183 = vpow.pop %v3182
  %v3184 = vadd.f32 %v3183, 1.0
  %v3185 = vrcp.pop %v3184
  %v3186 = vmul.f32 1.0, %v3185
  %v3187 = vmul.f32 %v3186, %v49
  %v3188 = vadd.f32 %v3187, %v50
  %v3189 = vmul.f32 %v3188, %v3094
  %3191 = vrot.lane.b32.xlu0 %v3188, 64
  %v3192 = vpop.permute.xlu0 %3191
  %v3194 = vmul.f32 %v3188, %v3192
  %3196 = vrot.lane.b32.xlu0 %v3194, 32
  %v3197 = vpop.permute.xlu0 %3196
  %v3199 = vadd.f32 %v3189, %v3197
  %v3200 = vtanh.pop %v3199
  %3202 = vrot.lane.b32.xlu0 %v3200, 64
  %v3203 = vpop.permute.xlu0 %3202
  %v3205 = vmul.f32 %v3188, %v3203
  %v3206 = vmax.f32 %v3101, %v3205
  %s3207 = scalar_lea.vmem [#allocation3], 40
  %v3208 = vld [vmem:[%s3207] sm:$0x3f]
  %3210 = vrot.lane.b32.xlu0 %v3205, 32
  %v3211 = vpop.permute.xlu0 %3210
  %v3212 = vsel %vm66, %v3211, 0
  %3214 = vmatprep.subr.mxu0 0.0
  %3215 = vmatpush1.msra.mxu0 %v2685
  %3216 = vmatprep.subr.mxu0 0.0
  %3217 = vmatpush1.msra.mxu0 %v2686
  %3218 = vmatprep.subr.mxu0 0.0
  %3219 = vmatpush1.msra.mxu0 %v2687
  %3220 = vmatprep.subr.mxu0 0.0
  %3221 = vmatpush1.msra.mxu0 %v2688
  %3222 = vmatprep.subr.mxu0 0.0
  %3223 = vmatpush1.msra.mxu0 0.0
  %3224 = vmatprep.subr.mxu0 0.0
  %3225 = vmatpush1.msra.mxu0 0.0
  %3226 = vmatprep.subr.mxu0 0.0
  %3227 = vmatpush1.msra.mxu0 0.0
  %3228 = vmatprep.subr.mxu0 0.0
  %3229 = vmatpush1.msra.mxu0 0.0
  %3230 = vmatprep.subr.mxu0 0.0
  %3231 = vmatpush1.msra.mxu0 0.0
  %3232 = vmatprep.subr.mxu0 0.0
  %3233 = vmatpush1.msra.mxu0 0.0
  %3234 = vmatprep.subr.mxu0 0.0
  %3235 = vmatpush1.msra.mxu0 0.0
  %3236 = vmatprep.subr.mxu0 0.0
  %3237 = vmatpush1.msra.mxu0 0.0
  %3238 = vmatprep.subr.mxu0 0.0
  %3239 = vmatpush1.msra.mxu0 0.0
  %3240 = vmatprep.subr.mxu0 0.0
  %3241 = vmatpush1.msra.mxu0 0.0
  %3242 = vmatprep.subr.mxu0 0.0
  %3243 = vmatpush1.msra.mxu0 0.0
  %3244 = vmatprep.subr.mxu0 0.0
  %3245 = vmatpush1.msra.mxu0 0.0
  %3246 = vmatprep.subr.mxu0 0.0
  %3247 = vmatpush1.msra.mxu0 0.0
  %3248 = vmatprep.subr.mxu0 0.0
  %3249 = vmatpush1.msra.mxu0 0.0
  %3250 = vmatprep.subr.mxu0 0.0
  %3251 = vmatpush1.msra.mxu0 0.0
  %3252 = vmatprep.subr.mxu0 0.0
  %3253 = vmatpush1.msra.mxu0 0.0
  %3254 = vmatprep.subr.mxu0 0.0
  %3255 = vmatpush1.msra.mxu0 0.0
  %3256 = vmatprep.subr.mxu0 0.0
  %3257 = vmatpush1.msra.mxu0 0.0
  %3258 = vmatprep.subr.mxu0 0.0
  %3259 = vmatpush1.msra.mxu0 0.0
  %3260 = vmatprep.subr.mxu0 0.0
  %3261 = vmatpush1.msra.mxu0 0.0
  %3262 = vmatprep.subr.mxu0 0.0
  %3263 = vmatpush1.msra.mxu0 0.0
  %3264 = vmatprep.subr.mxu0 0.0
  %3265 = vmatpush1.msra.mxu0 0.0
  %3266 = vmatprep.subr.mxu0 0.0
  %3267 = vmatpush1.msra.mxu0 0.0
  %3268 = vmatprep.subr.mxu0 0.0
  %3269 = vmatpush1.msra.mxu0 0.0
  %3270 = vmatprep.subr.mxu0 0.0
  %3271 = vmatpush1.msra.mxu0 0.0
  %3272 = vmatprep.subr.mxu0 0.0
  %3273 = vmatpush1.msra.mxu0 0.0
  %3274 = vmatprep.subr.mxu0 0.0
  %3275 = vmatpush1.msra.mxu0 0.0
  %3276 = vmatprep.subr.mxu0 0.0
  %3277 = vmatpush1.msra.mxu0 0.0
  %3278 = vmatprep.mubr.f32.mxu0 0.0
  %3279 = vmatmul.mubr.f32.gmra.mrb[0].mxu0 %v3212
  %v3280 = vpop.f32.mrb[0].mxu0
  %v3281 = vadd.f32 0.0, %v3280
  %v3282 = vpop.f32.mrb[0].mxu0
  %3283 = vdwg.mxu0
  %v3284 = vadd.f32 %v3208, %v3281
  %v3285 = vmul.f32 %v3284, %v49
  %v3286 = vxor.u32 %v3285, 2147483648
  %v3287 = vmul.f32 %v3286, 1.442695
  %v3288 = vpow.pop %v3287
  %v3289 = vadd.f32 %v3288, 1.0
  %v3290 = vrcp.pop %v3289
  %v3291 = vmul.f32 1.0, %v3290
  %v3292 = vmul.f32 %v3291, %v49
  %v3293 = vadd.f32 %v3292, %v50
  %v3294 = vmul.f32 %v3293, %v3199
  %3296 = vrot.lane.b32.xlu0 %v3293, 64
  %v3297 = vpop.permute.xlu0 %3296
  %v3299 = vmul.f32 %v3293, %v3297
  %3301 = vrot.lane.b32.xlu0 %v3299, 32
  %v3302 = vpop.permute.xlu0 %3301
  %v3304 = vadd.f32 %v3294, %v3302
  %v3305 = vtanh.pop %v3304
  %3307 = vrot.lane.b32.xlu0 %v3305, 64
  %v3308 = vpop.permute.xlu0 %3307
  %v3310 = vmul.f32 %v3293, %v3308
  %v3311 = vmax.f32 %v3206, %v3310
  %s3312 = scalar_lea.vmem [#allocation3], 48
  %v3313 = vld [vmem:[%s3312] sm:$0x3f]
  %3315 = vrot.lane.b32.xlu0 %v3310, 32
  %v3316 = vpop.permute.xlu0 %3315
  %v3317 = vsel %vm66, %v3316, 0
  %3319 = vmatprep.subr.mxu0 0.0
  %3320 = vmatpush1.msra.mxu0 %v2685
  %3321 = vmatprep.subr.mxu0 0.0
  %3322 = vmatpush1.msra.mxu0 %v2686
  %3323 = vmatprep.subr.mxu0 0.0
  %3324 = vmatpush1.msra.mxu0 %v2687
  %3325 = vmatprep.subr.mxu0 0.0
  %3326 = vmatpush1.msra.mxu0 %v2688
  %3327 = vmatprep.subr.mxu0 0.0
  %3328 = vmatpush1.msra.mxu0 0.0
  %3329 = vmatprep.subr.mxu0 0.0
  %3330 = vmatpush1.msra.mxu0 0.0
  %3331 = vmatprep.subr.mxu0 0.0
  %3332 = vmatpush1.msra.mxu0 0.0
  %3333 = vmatprep.subr.mxu0 0.0
  %3334 = vmatpush1.msra.mxu0 0.0
  %3335 = vmatprep.subr.mxu0 0.0
  %3336 = vmatpush1.msra.mxu0 0.0
  %3337 = vmatprep.subr.mxu0 0.0
  %3338 = vmatpush1.msra.mxu0 0.0
  %3339 = vmatprep.subr.mxu0 0.0
  %3340 = vmatpush1.msra.mxu0 0.0
  %3341 = vmatprep.subr.mxu0 0.0
  %3342 = vmatpush1.msra.mxu0 0.0
  %3343 = vmatprep.subr.mxu0 0.0
  %3344 = vmatpush1.msra.mxu0 0.0
  %3345 = vmatprep.subr.mxu0 0.0
  %3346 = vmatpush1.msra.mxu0 0.0
  %3347 = vmatprep.subr.mxu0 0.0
  %3348 = vmatpush1.msra.mxu0 0.0
  %3349 = vmatprep.subr.mxu0 0.0
  %3350 = vmatpush1.msra.mxu0 0.0
  %3351 = vmatprep.subr.mxu0 0.0
  %3352 = vmatpush1.msra.mxu0 0.0
  %3353 = vmatprep.subr.mxu0 0.0
  %3354 = vmatpush1.msra.mxu0 0.0
  %3355 = vmatprep.subr.mxu0 0.0
  %3356 = vmatpush1.msra.mxu0 0.0
  %3357 = vmatprep.subr.mxu0 0.0
  %3358 = vmatpush1.msra.mxu0 0.0
  %3359 = vmatprep.subr.mxu0 0.0
  %3360 = vmatpush1.msra.mxu0 0.0
  %3361 = vmatprep.subr.mxu0 0.0
  %3362 = vmatpush1.msra.mxu0 0.0
  %3363 = vmatprep.subr.mxu0 0.0
  %3364 = vmatpush1.msra.mxu0 0.0
  %3365 = vmatprep.subr.mxu0 0.0
  %3366 = vmatpush1.msra.mxu0 0.0
  %3367 = vmatprep.subr.mxu0 0.0
  %3368 = vmatpush1.msra.mxu0 0.0
  %3369 = vmatprep.subr.mxu0 0.0
  %3370 = vmatpush1.msra.mxu0 0.0
  %3371 = vmatprep.subr.mxu0 0.0
  %3372 = vmatpush1.msra.mxu0 0.0
  %3373 = vmatprep.subr.mxu0 0.0
  %3374 = vmatpush1.msra.mxu0 0.0
  %3375 = vmatprep.subr.mxu0 0.0
  %3376 = vmatpush1.msra.mxu0 0.0
  %3377 = vmatprep.subr.mxu0 0.0
  %3378 = vmatpush1.msra.mxu0 0.0
  %3379 = vmatprep.subr.mxu0 0.0
  %3380 = vmatpush1.msra.mxu0 0.0
  %3381 = vmatprep.subr.mxu0 0.0
  %3382 = vmatpush1.msra.mxu0 0.0
  %3383 = vmatprep.mubr.f32.mxu0 0.0
  %3384 = vmatmul.mubr.f32.gmra.mrb[0].mxu0 %v3317
  %v3385 = vpop.f32.mrb[0].mxu0
  %v3386 = vadd.f32 0.0, %v3385
  %v3387 = vpop.f32.mrb[0].mxu0
  %3388 = vdwg.mxu0
  %v3389 = vadd.f32 %v3313, %v3386
  %v3390 = vmul.f32 %v3389, %v49
  %v3391 = vxor.u32 %v3390, 2147483648
  %v3392 = vmul.f32 %v3391, 1.442695
  %v3393 = vpow.pop %v3392
  %v3394 = vadd.f32 %v3393, 1.0
  %v3395 = vrcp.pop %v3394
  %v3396 = vmul.f32 1.0, %v3395
  %v3397 = vmul.f32 %v3396, %v49
  %v3398 = vadd.f32 %v3397, %v50
  %v3399 = vmul.f32 %v3398, %v3304
  %3401 = vrot.lane.b32.xlu0 %v3398, 64
  %v3402 = vpop.permute.xlu0 %3401
  %v3404 = vmul.f32 %v3398, %v3402
  %3406 = vrot.lane.b32.xlu0 %v3404, 32
  %v3407 = vpop.permute.xlu0 %3406
  %v3409 = vadd.f32 %v3399, %v3407
  %v3410 = vtanh.pop %v3409
  %3412 = vrot.lane.b32.xlu0 %v3410, 64
  %v3413 = vpop.permute.xlu0 %3412
  %v3415 = vmul.f32 %v3398, %v3413
  %v3416 = vmax.f32 %v3311, %v3415
  %s3417 = scalar_lea.vmem [#allocation3], 56
  %v3418 = vld [vmem:[%s3417] sm:$0x3f]
  %3420 = vrot.lane.b32.xlu0 %v3415, 32
  %v3421 = vpop.permute.xlu0 %3420
  %v3422 = vsel %vm66, %v3421, 0
  %3424 = vmatprep.subr.mxu0 0.0
  %3425 = vmatpush1.msra.mxu0 %v2685
  %3426 = vmatprep.subr.mxu0 0.0
  %3427 = vmatpush1.msra.mxu0 %v2686
  %3428 = vmatprep.subr.mxu0 0.0
  %3429 = vmatpush1.msra.mxu0 %v2687
  %3430 = vmatprep.subr.mxu0 0.0
  %3431 = vmatpush1.msra.mxu0 %v2688
  %3432 = vmatprep.subr.mxu0 0.0
  %3433 = vmatpush1.msra.mxu0 0.0
  %3434 = vmatprep.subr.mxu0 0.0
  %3435 = vmatpush1.msra.mxu0 0.0
  %3436 = vmatprep.subr.mxu0 0.0
  %3437 = vmatpush1.msra.mxu0 0.0
  %3438 = vmatprep.subr.mxu0 0.0
  %3439 = vmatpush1.msra.mxu0 0.0
  %3440 = vmatprep.subr.mxu0 0.0
  %3441 = vmatpush1.msra.mxu0 0.0
  %3442 = vmatprep.subr.mxu0 0.0
  %3443 = vmatpush1.msra.mxu0 0.0
  %3444 = vmatprep.subr.mxu0 0.0
  %3445 = vmatpush1.msra.mxu0 0.0
  %3446 = vmatprep.subr.mxu0 0.0
  %3447 = vmatpush1.msra.mxu0 0.0
  %3448 = vmatprep.subr.mxu0 0.0
  %3449 = vmatpush1.msra.mxu0 0.0
  %3450 = vmatprep.subr.mxu0 0.0
  %3451 = vmatpush1.msra.mxu0 0.0
  %3452 = vmatprep.subr.mxu0 0.0
  %3453 = vmatpush1.msra.mxu0 0.0
  %3454 = vmatprep.subr.mxu0 0.0
  %3455 = vmatpush1.msra.mxu0 0.0
  %3456 = vmatprep.subr.mxu0 0.0
  %3457 = vmatpush1.msra.mxu0 0.0
  %3458 = vmatprep.subr.mxu0 0.0
  %3459 = vmatpush1.msra.mxu0 0.0
  %3460 = vmatprep.subr.mxu0 0.0
  %3461 = vmatpush1.msra.mxu0 0.0
  %3462 = vmatprep.subr.mxu0 0.0
  %3463 = vmatpush1.msra.mxu0 0.0
  %3464 = vmatprep.subr.mxu0 0.0
  %3465 = vmatpush1.msra.mxu0 0.0
  %3466 = vmatprep.subr.mxu0 0.0
  %3467 = vmatpush1.msra.mxu0 0.0
  %3468 = vmatprep.subr.mxu0 0.0
  %3469 = vmatpush1.msra.mxu0 0.0
  %3470 = vmatprep.subr.mxu0 0.0
  %3471 = vmatpush1.msra.mxu0 0.0
  %3472 = vmatprep.subr.mxu0 0.0
  %3473 = vmatpush1.msra.mxu0 0.0
  %3474 = vmatprep.subr.mxu0 0.0
  %3475 = vmatpush1.msra.mxu0 0.0
  %3476 = vmatprep.subr.mxu0 0.0
  %3477 = vmatpush1.msra.mxu0 0.0
  %3478 = vmatprep.subr.mxu0 0.0
  %3479 = vmatpush1.msra.mxu0 0.0
  %3480 = vmatprep.subr.mxu0 0.0
  %3481 = vmatpush1.msra.mxu0 0.0
  %3482 = vmatprep.subr.mxu0 0.0
  %3483 = vmatpush1.msra.mxu0 0.0
  %3484 = vmatprep.subr.mxu0 0.0
  %3485 = vmatpush1.msra.mxu0 0.0
  %3486 = vmatprep.subr.mxu0 0.0
  %3487 = vmatpush1.msra.mxu0 0.0
  %3488 = vmatprep.mubr.f32.mxu0 0.0
  %3489 = vmatmul.mubr.f32.gmra.mrb[0].mxu0 %v3422
  %v3490 = vpop.f32.mrb[0].mxu0
  %v3491 = vadd.f32 0.0, %v3490
  %v3492 = vpop.f32.mrb[0].mxu0
  %3493 = vdwg.mxu0
  %v3494 = vadd.f32 %v3418, %v3491
  %v3495 = vmul.f32 %v3494, %v49
  %v3496 = vxor.u32 %v3495, 2147483648
  %v3497 = vmul.f32 %v3496, 1.442695
  %v3498 = vpow.pop %v3497
  %v3499 = vadd.f32 %v3498, 1.0
  %v3500 = vrcp.pop %v3499
  %v3501 = vmul.f32 1.0, %v3500
  %v3502 = vmul.f32 %v3501, %v49
  %v3503 = vadd.f32 %v3502, %v50
  %v3504 = vmul.f32 %v3503, %v3409
  %3506 = vrot.lane.b32.xlu0 %v3503, 64
  %v3507 = vpop.permute.xlu0 %3506
  %v3509 = vmul.f32 %v3503, %v3507
  %3511 = vrot.lane.b32.xlu0 %v3509, 32
  %v3512 = vpop.permute.xlu0 %3511
  %v3514 = vadd.f32 %v3504, %v3512
  %v3515 = vtanh.pop %v3514
  %3517 = vrot.lane.b32.xlu0 %v3515, 64
  %v3518 = vpop.permute.xlu0 %3517
  %v3520 = vmul.f32 %v3503, %v3518
  %v3521 = vmax.f32 %v3416, %v3520
  %v3522 = vld [vmem:[%s2] sm:$0xff]
  %v3523 = vld [vmem:[%s2 + $0x8] sm:$0xff]
  %v3524 = vld [vmem:[%s9] sm:$0xff]
  %v3525 = vld [vmem:[%s9 + $0x8] sm:$0xff]
  %v3526 = vld [vmem:[%s9 + $0x10] sm:$0xff]
  %v3527 = vld [vmem:[%s9 + $0x18] sm:$0xff]
  %v3529 = vsel %vm66, %v3522, 0
  %v3532 = vsel %vm66, %v3523, 0
  %3534 = vmatprep.subr.mxu0 0.0
  %3535 = vmatpush1.msra.mxu0 %v3524
  %3536 = vmatprep.subr.mxu0 0.0
  %3537 = vmatpush1.msra.mxu0 %v3525
  %3538 = vmatprep.subr.mxu0 0.0
  %3539 = vmatpush1.msra.mxu0 %v3526
  %3540 = vmatprep.subr.mxu0 0.0
  %3541 = vmatpush1.msra.mxu0 %v3527
  %3542 = vmatprep.subr.mxu0 0.0
  %3543 = vmatpush1.msra.mxu0 0.0
  %3544 = vmatprep.subr.mxu0 0.0
  %3545 = vmatpush1.msra.mxu0 0.0
  %3546 = vmatprep.subr.mxu0 0.0
  %3547 = vmatpush1.msra.mxu0 0.0
  %3548 = vmatprep.subr.mxu0 0.0
  %3549 = vmatpush1.msra.mxu0 0.0
  %3550 = vmatprep.subr.mxu0 0.0
  %3551 = vmatpush1.msra.mxu0 0.0
  %3552 = vmatprep.subr.mxu0 0.0
  %3553 = vmatpush1.msra.mxu0 0.0
  %3554 = vmatprep.subr.mxu0 0.0
  %3555 = vmatpush1.msra.mxu0 0.0
  %3556 = vmatprep.subr.mxu0 0.0
  %3557 = vmatpush1.msra.mxu0 0.0
  %3558 = vmatprep.subr.mxu0 0.0
  %3559 = vmatpush1.msra.mxu0 0.0
  %3560 = vmatprep.subr.mxu0 0.0
  %3561 = vmatpush1.msra.mxu0 0.0
  %3562 = vmatprep.subr.mxu0 0.0
  %3563 = vmatpush1.msra.mxu0 0.0
  %3564 = vmatprep.subr.mxu0 0.0
  %3565 = vmatpush1.msra.mxu0 0.0
  %3566 = vmatprep.subr.mxu0 0.0
  %3567 = vmatpush1.msra.mxu0 0.0
  %3568 = vmatprep.subr.mxu0 0.0
  %3569 = vmatpush1.msra.mxu0 0.0
  %3570 = vmatprep.subr.mxu0 0.0
  %3571 = vmatpush1.msra.mxu0 0.0
  %3572 = vmatprep.subr.mxu0 0.0
  %3573 = vmatpush1.msra.mxu0 0.0
  %3574 = vmatprep.subr.mxu0 0.0
  %3575 = vmatpush1.msra.mxu0 0.0
  %3576 = vmatprep.subr.mxu0 0.0
  %3577 = vmatpush1.msra.mxu0 0.0
  %3578 = vmatprep.subr.mxu0 0.0
  %3579 = vmatpush1.msra.mxu0 0.0
  %3580 = vmatprep.subr.mxu0 0.0
  %3581 = vmatpush1.msra.mxu0 0.0
  %3582 = vmatprep.subr.mxu0 0.0
  %3583 = vmatpush1.msra.mxu0 0.0
  %3584 = vmatprep.subr.mxu0 0.0
  %3585 = vmatpush1.msra.mxu0 0.0
  %3586 = vmatprep.subr.mxu0 0.0
  %3587 = vmatpush1.msra.mxu0 0.0
  %3588 = vmatprep.subr.mxu0 0.0
  %3589 = vmatpush1.msra.mxu0 0.0
  %3590 = vmatprep.subr.mxu0 0.0
  %3591 = vmatpush1.msra.mxu0 0.0
  %3592 = vmatprep.subr.mxu0 0.0
  %3593 = vmatpush1.msra.mxu0 0.0
  %3594 = vmatprep.subr.mxu0 0.0
  %3595 = vmatpush1.msra.mxu0 0.0
  %3596 = vmatprep.subr.mxu0 0.0
  %3597 = vmatpush1.msra.mxu0 0.0
  %3598 = vmatprep.mubr.f32.mxu0 0.0
  %3599 = vmatmul.mubr.f32.gmra.mrb[0].mxu0 %v3529
  %v3600 = vpop.f32.mrb[0].mxu0
  %v3601 = vadd.f32 0.0, %v3600
  %v3602 = vpop.f32.mrb[0].mxu0
  %3603 = vmatprep.mubr.f32.mxu0 0.0
  %3604 = vmatmul.mubr.f32.gmra.mrb[0].mxu0 %v3532
  %v3605 = vpop.f32.mrb[0].mxu0
  %v3606 = vadd.f32 0.0, %v3605
  %v3607 = vpop.f32.mrb[0].mxu0
  %3608 = vdwg.mxu0
  %v3609 = vld [vmem:[%s10] sm:$0xff]
  %v3610 = vld [vmem:[%s10 + $0x8] sm:$0xff]
  %v3611 = vld [vmem:[%s10 + $0x10] sm:$0xff]
  %v3612 = vld [vmem:[%s10 + $0x18] sm:$0xff]
  %v3613 = vld [vmem:[#allocation4] sm:$0x3]
  %v3614 = vld [vmem:[#allocation4 + $0x2] sm:$0x3]
  %v3615 = vld [vmem:[#allocation4 + $0x4] sm:$0x3]
  %v3616 = vld [vmem:[#allocation4 + $0x6] sm:$0x3]
  %v3617 = vld [vmem:[#allocation4 + $0x8] sm:$0x3]
  %v3618 = vld [vmem:[#allocation4 + $0xa] sm:$0x3]
  %v3619 = vld [vmem:[#allocation4 + $0xc] sm:$0x3]
  %v3620 = vld [vmem:[#allocation4 + $0xe] sm:$0x3]
  %v3621 = vld [vmem:[#allocation4 + $0x10] sm:$0x3]
  %v3622 = vld [vmem:[#allocation4 + $0x12] sm:$0x3]
  %v3623 = vld [vmem:[#allocation4 + $0x14] sm:$0x3]
  %v3624 = vld [vmem:[#allocation4 + $0x16] sm:$0x3]
  %v3625 = vld [vmem:[#allocation4 + $0x18] sm:$0x3]
  %v3626 = vld [vmem:[#allocation4 + $0x1a] sm:$0x3]
  %v3627 = vld [vmem:[#allocation4 + $0x1c] sm:$0x3]
  %v3628 = vld [vmem:[#allocation4 + $0x1e] sm:$0x3]
  %v3629 = vld [vmem:[%s2] sm:$0xff]
  %v3646 = vrot.slane %v3614, 7
  %vm3647 = vcmask 1041409
  %v3648 = vsel %vm3647, %v3646, %v3613
  %v3649 = vrot.slane %v3615, 6
  %vm3650 = vcmask 1042434
  %v3651 = vsel %vm3650, %v3649, %v3648
  %v3652 = vrot.slane %v3616, 5
  %vm3653 = vcmask 1043459
  %v3654 = vsel %vm3653, %v3652, %v3651
  %v3655 = vrot.slane %v3617, 4
  %vm3656 = vcmask 1044484
  %v3657 = vsel %vm3656, %v3655, %v3654
  %v3658 = vrot.slane %v3618, 3
  %vm3659 = vcmask 1045509
  %v3660 = vsel %vm3659, %v3658, %v3657
  %v3661 = vrot.slane %v3619, 2
  %vm3662 = vcmask 1046534
  %v3663 = vsel %vm3662, %v3661, %v3660
  %v3664 = vrot.slane %v3620, 1
  %vm3665 = vcmask 1047559
  %v3666 = vsel %vm3665, %v3664, %v3663
  %v3667 = vrot.slane %v3622, 7
  %v3668 = vsel %vm3647, %v3667, %v3621
  %v3669 = vrot.slane %v3623, 6
  %v3670 = vsel %vm3650, %v3669, %v3668
  %v3671 = vrot.slane %v3624, 5
  %v3672 = vsel %vm3653, %v3671, %v3670
  %v3673 = vrot.slane %v3625, 4
  %v3674 = vsel %vm3656, %v3673, %v3672
  %v3675 = vrot.slane %v3626, 3
  %v3676 = vsel %vm3659, %v3675, %v3674
  %v3677 = vrot.slane %v3627, 2
  %v3678 = vsel %vm3662, %v3677, %v3676
  %v3679 = vrot.slane %v3628, 1
  %v3680 = vsel %vm3665, %v3679, %v3678
  %v3682 = vsel %vm66, %v3601, 0
  %v3684 = vsel %vm66, %v3666, 0
  %v3686 = vsel %vm66, %v3680, 0
  %3688 = vmatprep.subr.mxu0 0.0
  %3689 = vmatpush1.xpose.msra.mxu0 %v3684
  %3690 = vmatprep.subr.mxu0 0.0
  %3691 = vmatpush1.xpose.msra.mxu0 %v3686
  %3692 = vmatprep.subr.mxu0 0.0
  %3693 = vmatpush1.xpose.msra.mxu0 0.0
  %3694 = vmatprep.subr.mxu0 0.0
  %3695 = vmatpush1.xpose.msra.mxu0 0.0
  %3696 = vmatprep.subr.mxu0 0.0
  %3697 = vmatpush1.xpose.msra.mxu0 0.0
  %3698 = vmatprep.subr.mxu0 0.0
  %3699 = vmatpush1.xpose.msra.mxu0 0.0
  %3700 = vmatprep.subr.mxu0 0.0
  %3701 = vmatpush1.xpose.msra.mxu0 0.0
  %3702 = vmatprep.subr.mxu0 0.0
  %3703 = vmatpush1.xpose.msra.mxu0 0.0
  %3704 = vmatprep.subr.mxu0 0.0
  %3705 = vmatpush1.xpose.msra.mxu0 0.0
  %3706 = vmatprep.subr.mxu0 0.0
  %3707 = vmatpush1.xpose.msra.mxu0 0.0
  %3708 = vmatprep.subr.mxu0 0.0
  %3709 = vmatpush1.xpose.msra.mxu0 0.0
  %3710 = vmatprep.subr.mxu0 0.0
  %3711 = vmatpush1.xpose.msra.mxu0 0.0
  %3712 = vmatprep.subr.mxu0 0.0
  %3713 = vmatpush1.xpose.msra.mxu0 0.0
  %3714 = vmatprep.subr.mxu0 0.0
  %3715 = vmatpush1.xpose.msra.mxu0 0.0
  %3716 = vmatprep.subr.mxu0 0.0
  %3717 = vmatpush1.xpose.msra.mxu0 0.0
  %3718 = vmatprep.subr.mxu0 0.0
  %3719 = vmatpush1.xpose.msra.mxu0 0.0
  %3720 = vmatprep.subr.mxu0 0.0
  %3721 = vmatpush1.xpose.msra.mxu0 0.0
  %3722 = vmatprep.subr.mxu0 0.0
  %3723 = vmatpush1.xpose.msra.mxu0 0.0
  %3724 = vmatprep.subr.mxu0 0.0
  %3725 = vmatpush1.xpose.msra.mxu0 0.0
  %3726 = vmatprep.subr.mxu0 0.0
  %3727 = vmatpush1.xpose.msra.mxu0 0.0
  %3728 = vmatprep.subr.mxu0 0.0
  %3729 = vmatpush1.xpose.msra.mxu0 0.0
  %3730 = vmatprep.subr.mxu0 0.0
  %3731 = vmatpush1.xpose.msra.mxu0 0.0
  %3732 = vmatprep.subr.mxu0 0.0
  %3733 = vmatpush1.xpose.msra.mxu0 0.0
  %3734 = vmatprep.subr.mxu0 0.0
  %3735 = vmatpush1.xpose.msra.mxu0 0.0
  %3736 = vmatprep.subr.mxu0 0.0
  %3737 = vmatpush1.xpose.msra.mxu0 0.0
  %3738 = vmatprep.subr.mxu0 0.0
  %3739 = vmatpush1.xpose.msra.mxu0 0.0
  %3740 = vmatprep.subr.mxu0 0.0
  %3741 = vmatpush1.xpose.msra.mxu0 0.0
  %3742 = vmatprep.subr.mxu0 0.0
  %3743 = vmatpush1.xpose.msra.mxu0 0.0
  %3744 = vmatprep.subr.mxu0 0.0
  %3745 = vmatpush1.xpose.msra.mxu0 0.0
  %3746 = vmatprep.subr.mxu0 0.0
  %3747 = vmatpush1.xpose.msra.mxu0 0.0
  %3748 = vmatprep.subr.mxu0 0.0
  %3749 = vmatpush1.xpose.msra.mxu0 0.0
  %3750 = vmatprep.subr.mxu0 0.0
  %3751 = vmatpush1.xpose.msra.mxu0 0.0
  %3752 = vmatprep.mubr.f32.mxu0 0.0
  %3753 = vmatmul.mubr.f32.gmra.mrb[0].mxu0 %v3682
  %v3754 = vpop.f32.mrb[0].mxu0
  %v3755 = vadd.f32 0.0, %v3754
  %v3756 = vpop.f32.mrb[0].mxu0
  %3757 = vdwg.mxu0
  %vm3758 = vcmask 130048
  %v3759 = vsel %vm3758, %v3755, -inf
  %3760 = vmax.xlane.f32.xlu0 %v3759
  %v3761 = vpop.xlane.xlu0 %3760
  %v3762 = vsub.f32 %v3755, %v3761
  %v3763 = vmul.f32 %v3762, 1.442695
  %v3764 = vpow.pop %v3763
  %v3765 = vsel %vm3758, %v3764, 0.0
  %3766 = vadd.xlane.f32.xlu0 %v3765
  %v3767 = vpop.xlane.xlu0 %3766
  %v3768 = vrcp.pop %v3767
  %v3769 = vmul.f32 %v3764, %v3768
  %v3773 = vsel %vm3758, %v3769, 0
  %3775 = vmatprep.subr.mxu0 0.0
  %3776 = vmatpush1.msra.mxu0 %v3666
  %3777 = vmatprep.subr.mxu0 0.0
  %3778 = vmatpush1.msra.mxu0 %v3680
  %3779 = vmatprep.subr.mxu0 0.0
  %3780 = vmatpush1.msra.mxu0 0.0
  %3781 = vmatprep.subr.mxu0 0.0
  %3782 = vmatpush1.msra.mxu0 0.0
  %3783 = vmatprep.subr.mxu0 0.0
  %3784 = vmatpush1.msra.mxu0 0.0
  %3785 = vmatprep.subr.mxu0 0.0
  %3786 = vmatpush1.msra.mxu0 0.0
  %3787 = vmatprep.subr.mxu0 0.0
  %3788 = vmatpush1.msra.mxu0 0.0
  %3789 = vmatprep.subr.mxu0 0.0
  %3790 = vmatpush1.msra.mxu0 0.0
  %3791 = vmatprep.subr.mxu0 0.0
  %3792 = vmatpush1.msra.mxu0 0.0
  %3793 = vmatprep.subr.mxu0 0.0
  %3794 = vmatpush1.msra.mxu0 0.0
  %3795 = vmatprep.subr.mxu0 0.0
  %3796 = vmatpush1.msra.mxu0 0.0
  %3797 = vmatprep.subr.mxu0 0.0
  %3798 = vmatpush1.msra.mxu0 0.0
  %3799 = vmatprep.subr.mxu0 0.0
  %3800 = vmatpush1.msra.mxu0 0.0
  %3801 = vmatprep.subr.mxu0 0.0
  %3802 = vmatpush1.msra.mxu0 0.0
  %3803 = vmatprep.subr.mxu0 0.0
  %3804 = vmatpush1.msra.mxu0 0.0
  %3805 = vmatprep.subr.mxu0 0.0
  %3806 = vmatpush1.msra.mxu0 0.0
  %3807 = vmatprep.subr.mxu0 0.0
  %3808 = vmatpush1.msra.mxu0 0.0
  %3809 = vmatprep.subr.mxu0 0.0
  %3810 = vmatpush1.msra.mxu0 0.0
  %3811 = vmatprep.subr.mxu0 0.0
  %3812 = vmatpush1.msra.mxu0 0.0
  %3813 = vmatprep.subr.mxu0 0.0
  %3814 = vmatpush1.msra.mxu0 0.0
  %3815 = vmatprep.subr.mxu0 0.0
  %3816 = vmatpush1.msra.mxu0 0.0
  %3817 = vmatprep.subr.mxu0 0.0
  %3818 = vmatpush1.msra.mxu0 0.0
  %3819 = vmatprep.subr.mxu0 0.0
  %3820 = vmatpush1.msra.mxu0 0.0
  %3821 = vmatprep.subr.mxu0 0.0
  %3822 = vmatpush1.msra.mxu0 0.0
  %3823 = vmatprep.subr.mxu0 0.0
  %3824 = vmatpush1.msra.mxu0 0.0
  %3825 = vmatprep.subr.mxu0 0.0
  %3826 = vmatpush1.msra.mxu0 0.0
  %3827 = vmatprep.subr.mxu0 0.0
  %3828 = vmatpush1.msra.mxu0 0.0
  %3829 = vmatprep.subr.mxu0 0.0
  %3830 = vmatpush1.msra.mxu0 0.0
  %3831 = vmatprep.subr.mxu0 0.0
  %3832 = vmatpush1.msra.mxu0 0.0
  %3833 = vmatprep.subr.mxu0 0.0
  %3834 = vmatpush1.msra.mxu0 0.0
  %3835 = vmatprep.subr.mxu0 0.0
  %3836 = vmatpush1.msra.mxu0 0.0
  %3837 = vmatprep.subr.mxu0 0.0
  %3838 = vmatpush1.msra.mxu0 0.0
  %3839 = vmatprep.mubr.f32.mxu0 0.0
  %3840 = vmatmul.mubr.f32.gmra.mrb[0].mxu0 %v3773
  %v3841 = vpop.f32.mrb[0].mxu0
  %v3842 = vadd.f32 0.0, %v3841
  %v3843 = vpop.f32.mrb[0].mxu0
  %3844 = vdwg.mxu0
  %v3846 = vsel %vm66, %v3842, 0
  %3848 = vmatprep.subr.mxu0 0.0
  %3849 = vmatpush1.msra.mxu0 %v3609
  %3850 = vmatprep.subr.mxu0 0.0
  %3851 = vmatpush1.msra.mxu0 %v3610
  %3852 = vmatprep.subr.mxu0 0.0
  %3853 = vmatpush1.msra.mxu0 %v3611
  %3854 = vmatprep.subr.mxu0 0.0
  %3855 = vmatpush1.msra.mxu0 %v3612
  %3856 = vmatprep.subr.mxu0 0.0
  %3857 = vmatpush1.msra.mxu0 0.0
  %3858 = vmatprep.subr.mxu0 0.0
  %3859 = vmatpush1.msra.mxu0 0.0
  %3860 = vmatprep.subr.mxu0 0.0
  %3861 = vmatpush1.msra.mxu0 0.0
  %3862 = vmatprep.subr.mxu0 0.0
  %3863 = vmatpush1.msra.mxu0 0.0
  %3864 = vmatprep.subr.mxu0 0.0
  %3865 = vmatpush1.msra.mxu0 0.0
  %3866 = vmatprep.subr.mxu0 0.0
  %3867 = vmatpush1.msra.mxu0 0.0
  %3868 = vmatprep.subr.mxu0 0.0
  %3869 = vmatpush1.msra.mxu0 0.0
  %3870 = vmatprep.subr.mxu0 0.0
  %3871 = vmatpush1.msra.mxu0 0.0
  %3872 = vmatprep.subr.mxu0 0.0
  %3873 = vmatpush1.msra.mxu0 0.0
  %3874 = vmatprep.subr.mxu0 0.0
  %3875 = vmatpush1.msra.mxu0 0.0
  %3876 = vmatprep.subr.mxu0 0.0
  %3877 = vmatpush1.msra.mxu0 0.0
  %3878 = vmatprep.subr.mxu0 0.0
  %3879 = vmatpush1.msra.mxu0 0.0
  %3880 = vmatprep.subr.mxu0 0.0
  %3881 = vmatpush1.msra.mxu0 0.0
  %3882 = vmatprep.subr.mxu0 0.0
  %3883 = vmatpush1.msra.mxu0 0.0
  %3884 = vmatprep.subr.mxu0 0.0
  %3885 = vmatpush1.msra.mxu0 0.0
  %3886 = vmatprep.subr.mxu0 0.0
  %3887 = vmatpush1.msra.mxu0 0.0
  %3888 = vmatprep.subr.mxu0 0.0
  %3889 = vmatpush1.msra.mxu0 0.0
  %3890 = vmatprep.subr.mxu0 0.0
  %3891 = vmatpush1.msra.mxu0 0.0
  %3892 = vmatprep.subr.mxu0 0.0
  %3893 = vmatpush1.msra.mxu0 0.0
  %3894 = vmatprep.subr.mxu0 0.0
  %3895 = vmatpush1.msra.mxu0 0.0
  %3896 = vmatprep.subr.mxu0 0.0
  %3897 = vmatpush1.msra.mxu0 0.0
  %3898 = vmatprep.subr.mxu0 0.0
  %3899 = vmatpush1.msra.mxu0 0.0
  %3900 = vmatprep.subr.mxu0 0.0
  %3901 = vmatpush1.msra.mxu0 0.0
  %3902 = vmatprep.subr.mxu0 0.0
  %3903 = vmatpush1.msra.mxu0 0.0
  %3904 = vmatprep.subr.mxu0 0.0
  %3905 = vmatpush1.msra.mxu0 0.0
  %3906 = vmatprep.subr.mxu0 0.0
  %3907 = vmatpush1.msra.mxu0 0.0
  %3908 = vmatprep.subr.mxu0 0.0
  %3909 = vmatpush1.msra.mxu0 0.0
  %3910 = vmatprep.subr.mxu0 0.0
  %3911 = vmatpush1.msra.mxu0 0.0
  %3912 = vmatprep.mubr.f32.mxu0 0.0
  %3913 = vmatmul.mubr.f32.gmra.mrb[0].mxu0 %v3846
  %v3914 = vpop.f32.mrb[0].mxu0
  %v3915 = vadd.f32 0.0, %v3914
  %v3916 = vpop.f32.mrb[0].mxu0
  %3917 = vdwg.mxu0
  %3919 = vrot.lane.b32.xlu0 %v3915, 32
  %v3920 = vpop.permute.xlu0 %3919
  %v3922 = vadd.f32 %v3601, %v3920
  %3924 = vrot.lane.b32.xlu0 %v3521, 32
  %v3925 = vpop.permute.xlu0 %3924
  %3927 = vrot.lane.b32.xlu0 %v3922, 96
  %v3928 = vpop.permute.xlu0 %3927
  %v3929 = vsel %vm66, %v3925, 0
  %v3931 = vsel %vm66, %v3928, 0
  %3933 = vmatprep.subr.mxu0 0.0
  %3934 = vmatpush1.xpose.msra.mxu0 %v3931
  %3935 = vmatprep.subr.mxu0 0.0
  %3936 = vmatpush1.xpose.msra.mxu0 0.0
  %3937 = vmatprep.subr.mxu0 0.0
  %3938 = vmatpush1.xpose.msra.mxu0 0.0
  %3939 = vmatprep.subr.mxu0 0.0
  %3940 = vmatpush1.xpose.msra.mxu0 0.0
  %3941 = vmatprep.subr.mxu0 0.0
  %3942 = vmatpush1.xpose.msra.mxu0 0.0
  %3943 = vmatprep.subr.mxu0 0.0
  %3944 = vmatpush1.xpose.msra.mxu0 0.0
  %3945 = vmatprep.subr.mxu0 0.0
  %3946 = vmatpush1.xpose.msra.mxu0 0.0
  %3947 = vmatprep.subr.mxu0 0.0
  %3948 = vmatpush1.xpose.msra.mxu0 0.0
  %3949 = vmatprep.subr.mxu0 0.0
  %3950 = vmatpush1.xpose.msra.mxu0 0.0
  %3951 = vmatprep.subr.mxu0 0.0
  %3952 = vmatpush1.xpose.msra.mxu0 0.0
  %3953 = vmatprep.subr.mxu0 0.0
  %3954 = vmatpush1.xpose.msra.mxu0 0.0
  %3955 = vmatprep.subr.mxu0 0.0
  %3956 = vmatpush1.xpose.msra.mxu0 0.0
  %3957 = vmatprep.subr.mxu0 0.0
  %3958 = vmatpush1.xpose.msra.mxu0 0.0
  %3959 = vmatprep.subr.mxu0 0.0
  %3960 = vmatpush1.xpose.msra.mxu0 0.0
  %3961 = vmatprep.subr.mxu0 0.0
  %3962 = vmatpush1.xpose.msra.mxu0 0.0
  %3963 = vmatprep.subr.mxu0 0.0
  %3964 = vmatpush1.xpose.msra.mxu0 0.0
  %3965 = vmatprep.subr.mxu0 0.0
  %3966 = vmatpush1.xpose.msra.mxu0 0.0
  %3967 = vmatprep.subr.mxu0 0.0
  %3968 = vmatpush1.xpose.msra.mxu0 0.0
  %3969 = vmatprep.subr.mxu0 0.0
  %3970 = vmatpush1.xpose.msra.mxu0 0.0
  %3971 = vmatprep.subr.mxu0 0.0
  %3972 = vmatpush1.xpose.msra.mxu0 0.0
  %3973 = vmatprep.subr.mxu0 0.0
  %3974 = vmatpush1.xpose.msra.mxu0 0.0
  %3975 = vmatprep.subr.mxu0 0.0
  %3976 = vmatpush1.xpose.msra.mxu0 0.0
  %3977 = vmatprep.subr.mxu0 0.0
  %3978 = vmatpush1.xpose.msra.mxu0 0.0
  %3979 = vmatprep.subr.mxu0 0.0
  %3980 = vmatpush1.xpose.msra.mxu0 0.0
  %3981 = vmatprep.subr.mxu0 0.0
  %3982 = vmatpush1.xpose.msra.mxu0 0.0
  %3983 = vmatprep.subr.mxu0 0.0
  %3984 = vmatpush1.xpose.msra.mxu0 0.0
  %3985 = vmatprep.subr.mxu0 0.0
  %3986 = vmatpush1.xpose.msra.mxu0 0.0
  %3987 = vmatprep.subr.mxu0 0.0
  %3988 = vmatpush1.xpose.msra.mxu0 0.0
  %3989 = vmatprep.subr.mxu0 0.0
  %3990 = vmatpush1.xpose.msra.mxu0 0.0
  %3991 = vmatprep.subr.mxu0 0.0
  %3992 = vmatpush1.xpose.msra.mxu0 0.0
  %3993 = vmatprep.subr.mxu0 0.0
  %3994 = vmatpush1.xpose.msra.mxu0 0.0
  %3995 = vmatprep.subr.mxu0 0.0
  %3996 = vmatpush1.xpose.msra.mxu0 0.0
  %3997 = vmatprep.mubr.f32.mxu0 0.0
  %3998 = vmatmul.mubr.f32.gmra.mrb[0].mxu0 %v3929
  %v3999 = vpop.f32.mrb[0].mxu0
  %v4000 = vadd.f32 0.0, %v3999
  %v4001 = vpop.f32.mrb[0].mxu0
  %4002 = vdwg.mxu0
  %vm4003 = vcmask 59392
  %v4004 = vsel %vm4003, %v4000, -inf
  %v4005 = vrot.slane %v4004, 4
  %v4006 = vmax.f32 %v4004, %v4005
  %v4007 = vrot.slane %v4006, 2
  %v4008 = vmax.f32 %v4006, %v4007
  %v4009 = vrot.slane %v4008, 1
  %v4010 = vmax.f32 %v4008, %v4009
  %vm4011 = vcmask 64512
  %v4012 = vsel %vm4011, %v4010, -inf
  %4013 = vmax.xlane.f32.xlu0 %v4012
  %v4014 = vpop.xlane.xlu0 %4013
  %v4015 = vsub.f32 %v4010, %v4014
  %v4016 = vmul.f32 %v4015, 1.442695
  %v4017 = vpow.pop %v4016
  %v4018 = vsel %vm4011, %v4017, 0.0
  %4019 = vadd.xlane.f32.xlu0 %v4018
  %v4020 = vpop.xlane.xlu0 %4019
  %v4021 = vrcp.pop %v4020
  %v4022 = vmul.f32 %v4017, %v4021
  %4023 = vmax.xlane.f32.xlu0 %v4004
  %v4024 = vpop.xlane.xlu0 %4023
  %vm4025 = vcmask 1042432
  %v4026 = vsel %vm4025, %v4024, -inf
  %v4027 = vrot.slane %v4026, 4
  %v4028 = vmax.f32 %v4026, %v4027
  %v4029 = vrot.slane %v4028, 2
  %v4030 = vmax.f32 %v4028, %v4029
  %v4031 = vrot.slane %v4030, 1
  %v4032 = vmax.f32 %v4030, %v4031
  %v4033 = vsub.f32 %v4024, %v4032
  %v4034 = vmul.f32 %v4033, 1.442695
  %v4035 = vpow.pop %v4034
  %v4036 = vsel %vm4025, %v4035, 0.0
  %v4037 = vrot.slane %v4036, 4
  %v4038 = vadd.f32 %v4036, %v4037
  %v4039 = vrot.slane %v4038, 2
  %v4040 = vadd.f32 %v4038, %v4039
  %v4041 = vrot.slane %v4040, 1
  %v4042 = vadd.f32 %v4040, %v4041
  %v4043 = vrcp.pop %v4042
  %v4044 = vmul.f32 %v4035, %v4043
  %v4046 = vsel %vm4011, %v4022, 0
  %4048 = vmatprep.subr.mxu0 0.0
  %4049 = vmatpush1.msra.mxu0 %v3629
  %4050 = vmatprep.subr.mxu0 0.0
  %4051 = vmatpush1.msra.mxu0 0.0
  %4052 = vmatprep.subr.mxu0 0.0
  %4053 = vmatpush1.msra.mxu0 0.0
  %4054 = vmatprep.subr.mxu0 0.0
  %4055 = vmatpush1.msra.mxu0 0.0
  %4056 = vmatprep.subr.mxu0 0.0
  %4057 = vmatpush1.msra.mxu0 0.0
  %4058 = vmatprep.subr.mxu0 0.0
  %4059 = vmatpush1.msra.mxu0 0.0
  %4060 = vmatprep.subr.mxu0 0.0
  %4061 = vmatpush1.msra.mxu0 0.0
  %4062 = vmatprep.subr.mxu0 0.0
  %4063 = vmatpush1.msra.mxu0 0.0
  %4064 = vmatprep.subr.mxu0 0.0
  %4065 = vmatpush1.msra.mxu0 0.0
  %4066 = vmatprep.subr.mxu0 0.0
  %4067 = vmatpush1.msra.mxu0 0.0
  %4068 = vmatprep.subr.mxu0 0.0
  %4069 = vmatpush1.msra.mxu0 0.0
  %4070 = vmatprep.subr.mxu0 0.0
  %4071 = vmatpush1.msra.mxu0 0.0
  %4072 = vmatprep.subr.mxu0 0.0
  %4073 = vmatpush1.msra.mxu0 0.0
  %4074 = vmatprep.subr.mxu0 0.0
  %4075 = vmatpush1.msra.mxu0 0.0
  %4076 = vmatprep.subr.mxu0 0.0
  %4077 = vmatpush1.msra.mxu0 0.0
  %4078 = vmatprep.subr.mxu0 0.0
  %4079 = vmatpush1.msra.mxu0 0.0
  %4080 = vmatprep.subr.mxu0 0.0
  %4081 = vmatpush1.msra.mxu0 0.0
  %4082 = vmatprep.subr.mxu0 0.0
  %4083 = vmatpush1.msra.mxu0 0.0
  %4084 = vmatprep.subr.mxu0 0.0
  %4085 = vmatpush1.msra.mxu0 0.0
  %4086 = vmatprep.subr.mxu0 0.0
  %4087 = vmatpush1.msra.mxu0 0.0
  %4088 = vmatprep.subr.mxu0 0.0
  %4089 = vmatpush1.msra.mxu0 0.0
  %4090 = vmatprep.subr.mxu0 0.0
  %4091 = vmatpush1.msra.mxu0 0.0
  %4092 = vmatprep.subr.mxu0 0.0
  %4093 = vmatpush1.msra.mxu0 0.0
  %4094 = vmatprep.subr.mxu0 0.0
  %4095 = vmatpush1.msra.mxu0 0.0
  %4096 = vmatprep.subr.mxu0 0.0
  %4097 = vmatpush1.msra.mxu0 0.0
  %4098 = vmatprep.subr.mxu0 0.0
  %4099 = vmatpush1.msra.mxu0 0.0
  %4100 = vmatprep.subr.mxu0 0.0
  %4101 = vmatpush1.msra.mxu0 0.0
  %4102 = vmatprep.subr.mxu0 0.0
  %4103 = vmatpush1.msra.mxu0 0.0
  %4104 = vmatprep.subr.mxu0 0.0
  %4105 = vmatpush1.msra.mxu0 0.0
  %4106 = vmatprep.subr.mxu0 0.0
  %4107 = vmatpush1.msra.mxu0 0.0
  %4108 = vmatprep.subr.mxu0 0.0
  %4109 = vmatpush1.msra.mxu0 0.0
  %4110 = vmatprep.subr.mxu0 0.0
  %4111 = vmatpush1.msra.mxu0 0.0
  %4112 = vmatprep.mubr.f32.mxu0 0.0
  %4113 = vmatmul.mubr.f32.gmra.mrb[0].mxu0 %v4046
  %v4114 = vpop.f32.mrb[0].mxu0
  %v4115 = vadd.f32 0.0, %v4114
  %v4116 = vpop.f32.mrb[0].mxu0
  %4117 = vdwg.mxu0
  %4118 = vmatprep.subr.mxu0 0.0
  %4119 = vmatpush1.msra.mxu0 %v3842
  %4120 = vmatprep.subr.mxu0 0.0
  %4121 = vmatpush1.msra.mxu0 0.0
  %4122 = vmatprep.subr.mxu0 0.0
  %4123 = vmatpush1.msra.mxu0 0.0
  %4124 = vmatprep.subr.mxu0 0.0
  %4125 = vmatpush1.msra.mxu0 0.0
  %4126 = vmatprep.subr.mxu0 0.0
  %4127 = vmatpush1.msra.mxu0 0.0
  %4128 = vmatprep.subr.mxu0 0.0
  %4129 = vmatpush1.msra.mxu0 0.0
  %4130 = vmatprep.subr.mxu0 0.0
  %4131 = vmatpush1.msra.mxu0 0.0
  %4132 = vmatprep.subr.mxu0 0.0
  %4133 = vmatpush1.msra.mxu0 0.0
  %4134 = vmatprep.subr.mxu0 0.0
  %4135 = vmatpush1.msra.mxu0 0.0
  %4136 = vmatprep.subr.mxu0 0.0
  %4137 = vmatpush1.msra.mxu0 0.0
  %4138 = vmatprep.subr.mxu0 0.0
  %4139 = vmatpush1.msra.mxu0 0.0
  %4140 = vmatprep.subr.mxu0 0.0
  %4141 = vmatpush1.msra.mxu0 0.0
  %4142 = vmatprep.subr.mxu0 0.0
  %4143 = vmatpush1.msra.mxu0 0.0
  %4144 = vmatprep.subr.mxu0 0.0
  %4145 = vmatpush1.msra.mxu0 0.0
  %4146 = vmatprep.subr.mxu0 0.0
  %4147 = vmatpush1.msra.mxu0 0.0
  %4148 = vmatprep.subr.mxu0 0.0
  %4149 = vmatpush1.msra.mxu0 0.0
  %4150 = vmatprep.subr.mxu0 0.0
  %4151 = vmatpush1.msra.mxu0 0.0
  %4152 = vmatprep.subr.mxu0 0.0
  %4153 = vmatpush1.msra.mxu0 0.0
  %4154 = vmatprep.subr.mxu0 0.0
  %4155 = vmatpush1.msra.mxu0 0.0
  %4156 = vmatprep.subr.mxu0 0.0
  %4157 = vmatpush1.msra.mxu0 0.0
  %4158 = vmatprep.subr.mxu0 0.0
  %4159 = vmatpush1.msra.mxu0 0.0
  %4160 = vmatprep.subr.mxu0 0.0
  %4161 = vmatpush1.msra.mxu0 0.0
  %4162 = vmatprep.subr.mxu0 0.0
  %4163 = vmatpush1.msra.mxu0 0.0
  %4164 = vmatprep.subr.mxu0 0.0
  %4165 = vmatpush1.msra.mxu0 0.0
  %4166 = vmatprep.subr.mxu0 0.0
  %4167 = vmatpush1.msra.mxu0 0.0
  %4168 = vmatprep.subr.mxu0 0.0
  %4169 = vmatpush1.msra.mxu0 0.0
  %4170 = vmatprep.subr.mxu0 0.0
  %4171 = vmatpush1.msra.mxu0 0.0
  %4172 = vmatprep.subr.mxu0 0.0
  %4173 = vmatpush1.msra.mxu0 0.0
  %4174 = vmatprep.subr.mxu0 0.0
  %4175 = vmatpush1.msra.mxu0 0.0
  %4176 = vmatprep.subr.mxu0 0.0
  %4177 = vmatpush1.msra.mxu0 0.0
  %4178 = vmatprep.subr.mxu0 0.0
  %4179 = vmatpush1.msra.mxu0 0.0
  %4180 = vmatprep.subr.mxu0 0.0
  %4181 = vmatpush1.msra.mxu0 0.0
  %4182 = vmatprep.mubr.f32.mxu0 0.0
  %4183 = vmatmul.mubr.f32.gmra.mrb[0].mxu0 %v4046
  %v4184 = vpop.f32.mrb[0].mxu0
  %v4185 = vadd.f32 0.0, %v4184
  %v4186 = vpop.f32.mrb[0].mxu0
  %4187 = vdwg.mxu0
  %v4188 = vmul.f32 %v4044, %v3521
  %vm4189 = vcmask 1043200
  %v4190 = vsel %vm4189, %v4188, 0.0
  %v4191 = vrot.slane %v4190, 4
  %v4192 = vadd.f32 %v4190, %v4191
  %v4193 = vrot.slane %v4192, 2
  %v4194 = vadd.f32 %v4192, %v4193
  %v4195 = vrot.slane %v4194, 1
  %v4196 = vadd.f32 %v4194, %v4195
  %4198 = vrot.lane.b32.xlu0 %v2684, 32
  %v4199 = vpop.permute.xlu0 %4198
  %4202 = vrot.lane.b32.xlu0 %v4115, 32
  %v4203 = vpop.permute.xlu0 %4202
  %4206 = vrot.lane.b32.xlu0 %v4185, 64
  %v4207 = vpop.permute.xlu0 %4206
  %v4209 = vsel %vm66, %v4199, %v4203
  %vm4210 = vcmask 523264
  %v4211 = vsel %vm4210, %v4209, %v4207
  %vm4212 = vcmask 785408
  %v4213 = vsel %vm4212, %v4211, %v4196
  %s4214 = scalar_lea.vmem %s2, 8
  %v4215 = vld [vmem:[%s4214] sm:$0xff]
  %v4216 = vrot.slane %v3613, 1
  %v4217 = vsel %vm3647, %v3614, %v4216
  %v4218 = vrot.slane %v3615, 7
  %v4219 = vsel %vm3650, %v4218, %v4217
  %v4220 = vrot.slane %v3616, 6
  %v4221 = vsel %vm3653, %v4220, %v4219
  %v4222 = vrot.slane %v3617, 5
  %v4223 = vsel %vm3656, %v4222, %v4221
  %v4224 = vrot.slane %v3618, 4
  %v4225 = vsel %vm3659, %v4224, %v4223
  %v4226 = vrot.slane %v3619, 3
  %v4227 = vsel %vm3662, %v4226, %v4225
  %v4228 = vrot.slane %v3620, 2
  %v4229 = vsel %vm3665, %v4228, %v4227
  %v4230 = vrot.slane %v3621, 1
  %v4231 = vsel %vm3647, %v3622, %v4230
  %v4232 = vrot.slane %v3623, 7
  %v4233 = vsel %vm3650, %v4232, %v4231
  %v4234 = vrot.slane %v3624, 6
  %v4235 = vsel %vm3653, %v4234, %v4233
  %v4236 = vrot.slane %v3625, 5
  %v4237 = vsel %vm3656, %v4236, %v4235
  %v4238 = vrot.slane %v3626, 4
  %v4239 = vsel %vm3659, %v4238, %v4237
  %v4240 = vrot.slane %v3627, 3
  %v4241 = vsel %vm3662, %v4240, %v4239
  %v4242 = vrot.slane %v3628, 2
  %v4243 = vsel %vm3665, %v4242, %v4241
  %v4245 = vsel %vm66, %v3606, 0
  %v4247 = vsel %vm66, %v4229, 0
  %v4249 = vsel %vm66, %v4243, 0
  %4251 = vmatprep.subr.mxu0 0.0
  %4252 = vmatpush1.xpose.msra.mxu0 %v4247
  %4253 = vmatprep.subr.mxu0 0.0
  %4254 = vmatpush1.xpose.msra.mxu0 %v4249
  %4255 = vmatprep.subr.mxu0 0.0
  %4256 = vmatpush1.xpose.msra.mxu0 0.0
  %4257 = vmatprep.subr.mxu0 0.0
  %4258 = vmatpush1.xpose.msra.mxu0 0.0
  %4259 = vmatprep.subr.mxu0 0.0
  %4260 = vmatpush1.xpose.msra.mxu0 0.0
  %4261 = vmatprep.subr.mxu0 0.0
  %4262 = vmatpush1.xpose.msra.mxu0 0.0
  %4263 = vmatprep.subr.mxu0 0.0
  %4264 = vmatpush1.xpose.msra.mxu0 0.0
  %4265 = vmatprep.subr.mxu0 0.0
  %4266 = vmatpush1.xpose.msra.mxu0 0.0
  %4267 = vmatprep.subr.mxu0 0.0
  %4268 = vmatpush1.xpose.msra.mxu0 0.0
  %4269 = vmatprep.subr.mxu0 0.0
  %4270 = vmatpush1.xpose.msra.mxu0 0.0
  %4271 = vmatprep.subr.mxu0 0.0
  %4272 = vmatpush1.xpose.msra.mxu0 0.0
  %4273 = vmatprep.subr.mxu0 0.0
  %4274 = vmatpush1.xpose.msra.mxu0 0.0
  %4275 = vmatprep.subr.mxu0 0.0
  %4276 = vmatpush1.xpose.msra.mxu0 0.0
  %4277 = vmatprep.subr.mxu0 0.0
  %4278 = vmatpush1.xpose.msra.mxu0 0.0
  %4279 = vmatprep.subr.mxu0 0.0
  %4280 = vmatpush1.xpose.msra.mxu0 0.0
  %4281 = vmatprep.subr.mxu0 0.0
  %4282 = vmatpush1.xpose.msra.mxu0 0.0
  %4283 = vmatprep.subr.mxu0 0.0
  %4284 = vmatpush1.xpose.msra.mxu0 0.0
  %4285 = vmatprep.subr.mxu0 0.0
  %4286 = vmatpush1.xpose.msra.mxu0 0.0
  %4287 = vmatprep.subr.mxu0 0.0
  %4288 = vmatpush1.xpose.msra.mxu0 0.0
  %4289 = vmatprep.subr.mxu0 0.0
  %4290 = vmatpush1.xpose.msra.mxu0 0.0
  %4291 = vmatprep.subr.mxu0 0.0
  %4292 = vmatpush1.xpose.msra.mxu0 0.0
  %4293 = vmatprep.subr.mxu0 0.0
  %4294 = vmatpush1.xpose.msra.mxu0 0.0
  %4295 = vmatprep.subr.mxu0 0.0
  %4296 = vmatpush1.xpose.msra.mxu0 0.0
  %4297 = vmatprep.subr.mxu0 0.0
  %4298 = vmatpush1.xpose.msra.mxu0 0.0
  %4299 = vmatprep.subr.mxu0 0.0
  %4300 = vmatpush1.xpose.msra.mxu0 0.0
  %4301 = vmatprep.subr.mxu0 0.0
  %4302 = vmatpush1.xpose.msra.mxu0 0.0
  %4303 = vmatprep.subr.mxu0 0.0
  %4304 = vmatpush1.xpose.msra.mxu0 0.0
  %4305 = vmatprep.subr.mxu0 0.0
  %4306 = vmatpush1.xpose.msra.mxu0 0.0
  %4307 = vmatprep.subr.mxu0 0.0
  %4308 = vmatpush1.xpose.msra.mxu0 0.0
  %4309 = vmatprep.subr.mxu0 0.0
  %4310 = vmatpush1.xpose.msra.mxu0 0.0
  %4311 = vmatprep.subr.mxu0 0.0
  %4312 = vmatpush1.xpose.msra.mxu0 0.0
  %4313 = vmatprep.subr.mxu0 0.0
  %4314 = vmatpush1.xpose.msra.mxu0 0.0
  %4315 = vmatprep.mubr.f32.mxu0 0.0
  %4316 = vmatmul.mubr.f32.gmra.mrb[0].mxu0 %v4245
  %v4317 = vpop.f32.mrb[0].mxu0
  %v4318 = vadd.f32 0.0, %v4317
  %v4319 = vpop.f32.mrb[0].mxu0
  %4320 = vdwg.mxu0
  %v4321 = vsel %vm3758, %v4318, -inf
  %4322 = vmax.xlane.f32.xlu0 %v4321
  %v4323 = vpop.xlane.xlu0 %4322
  %v4324 = vsub.f32 %v4318, %v4323
  %v4325 = vmul.f32 %v4324, 1.442695
  %v4326 = vpow.pop %v4325
  %v4327 = vsel %vm3758, %v4326, 0.0
  %4328 = vadd.xlane.f32.xlu0 %v4327
  %v4329 = vpop.xlane.xlu0 %4328
  %v4330 = vrcp.pop %v4329
  %v4331 = vmul.f32 %v4326, %v4330
  %v4335 = vsel %vm3758, %v4331, 0
  %4337 = vmatprep.subr.mxu0 0.0
  %4338 = vmatpush1.msra.mxu0 %v4229
  %4339 = vmatprep.subr.mxu0 0.0
  %4340 = vmatpush1.msra.mxu0 %v4243
  %4341 = vmatprep.subr.mxu0 0.0
  %4342 = vmatpush1.msra.mxu0 0.0
  %4343 = vmatprep.subr.mxu0 0.0
  %4344 = vmatpush1.msra.mxu0 0.0
  %4345 = vmatprep.subr.mxu0 0.0
  %4346 = vmatpush1.msra.mxu0 0.0
  %4347 = vmatprep.subr.mxu0 0.0
  %4348 = vmatpush1.msra.mxu0 0.0
  %4349 = vmatprep.subr.mxu0 0.0
  %4350 = vmatpush1.msra.mxu0 0.0
  %4351 = vmatprep.subr.mxu0 0.0
  %4352 = vmatpush1.msra.mxu0 0.0
  %4353 = vmatprep.subr.mxu0 0.0
  %4354 = vmatpush1.msra.mxu0 0.0
  %4355 = vmatprep.subr.mxu0 0.0
  %4356 = vmatpush1.msra.mxu0 0.0
  %4357 = vmatprep.subr.mxu0 0.0
  %4358 = vmatpush1.msra.mxu0 0.0
  %4359 = vmatprep.subr.mxu0 0.0
  %4360 = vmatpush1.msra.mxu0 0.0
  %4361 = vmatprep.subr.mxu0 0.0
  %4362 = vmatpush1.msra.mxu0 0.0
  %4363 = vmatprep.subr.mxu0 0.0
  %4364 = vmatpush1.msra.mxu0 0.0
  %4365 = vmatprep.subr.mxu0 0.0
  %4366 = vmatpush1.msra.mxu0 0.0
  %4367 = vmatprep.subr.mxu0 0.0
  %4368 = vmatpush1.msra.mxu0 0.0
  %4369 = vmatprep.subr.mxu0 0.0
  %4370 = vmatpush1.msra.mxu0 0.0
  %4371 = vmatprep.subr.mxu0 0.0
  %4372 = vmatpush1.msra.mxu0 0.0
  %4373 = vmatprep.subr.mxu0 0.0
  %4374 = vmatpush1.msra.mxu0 0.0
  %4375 = vmatprep.subr.mxu0 0.0
  %4376 = vmatpush1.msra.mxu0 0.0
  %4377 = vmatprep.subr.mxu0 0.0
  %4378 = vmatpush1.msra.mxu0 0.0
  %4379 = vmatprep.subr.mxu0 0.0
  %4380 = vmatpush1.msra.mxu0 0.0
  %4381 = vmatprep.subr.mxu0 0.0
  %4382 = vmatpush1.msra.mxu0 0.0
  %4383 = vmatprep.subr.mxu0 0.0
  %4384 = vmatpush1.msra.mxu0 0.0
  %4385 = vmatprep.subr.mxu0 0.0
  %4386 = vmatpush1.msra.mxu0 0.0
  %4387 = vmatprep.subr.mxu0 0.0
  %4388 = vmatpush1.msra.mxu0 0.0
  %4389 = vmatprep.subr.mxu0 0.0
  %4390 = vmatpush1.msra.mxu0 0.0
  %4391 = vmatprep.subr.mxu0 0.0
  %4392 = vmatpush1.msra.mxu0 0.0
  %4393 = vmatprep.subr.mxu0 0.0
  %4394 = vmatpush1.msra.mxu0 0.0
  %4395 = vmatprep.subr.mxu0 0.0
  %4396 = vmatpush1.msra.mxu0 0.0
  %4397 = vmatprep.subr.mxu0 0.0
  %4398 = vmatpush1.msra.mxu0 0.0
  %4399 = vmatprep.subr.mxu0 0.0
  %4400 = vmatpush1.msra.mxu0 0.0
  %4401 = vmatprep.mubr.f32.mxu0 0.0
  %4402 = vmatmul.mubr.f32.gmra.mrb[0].mxu0 %v4335
  %v4403 = vpop.f32.mrb[0].mxu0
  %v4404 = vadd.f32 0.0, %v4403
  %v4405 = vpop.f32.mrb[0].mxu0
  %4406 = vdwg.mxu0
  %v4408 = vsel %vm66, %v4404, 0
  %4410 = vmatprep.subr.mxu0 0.0
  %4411 = vmatpush1.msra.mxu0 %v3609
  %4412 = vmatprep.subr.mxu0 0.0
  %4413 = vmatpush1.msra.mxu0 %v3610
  %4414 = vmatprep.subr.mxu0 0.0
  %4415 = vmatpush1.msra.mxu0 %v3611
  %4416 = vmatprep.subr.mxu0 0.0
  %4417 = vmatpush1.msra.mxu0 %v3612
  %4418 = vmatprep.subr.mxu0 0.0
  %4419 = vmatpush1.msra.mxu0 0.0
  %4420 = vmatprep.subr.mxu0 0.0
  %4421 = vmatpush1.msra.mxu0 0.0
  %4422 = vmatprep.subr.mxu0 0.0
  %4423 = vmatpush1.msra.mxu0 0.0
  %4424 = vmatprep.subr.mxu0 0.0
  %4425 = vmatpush1.msra.mxu0 0.0
  %4426 = vmatprep.subr.mxu0 0.0
  %4427 = vmatpush1.msra.mxu0 0.0
  %4428 = vmatprep.subr.mxu0 0.0
  %4429 = vmatpush1.msra.mxu0 0.0
  %4430 = vmatprep.subr.mxu0 0.0
  %4431 = vmatpush1.msra.mxu0 0.0
  %4432 = vmatprep.subr.mxu0 0.0
  %4433 = vmatpush1.msra.mxu0 0.0
  %4434 = vmatprep.subr.mxu0 0.0
  %4435 = vmatpush1.msra.mxu0 0.0
  %4436 = vmatprep.subr.mxu0 0.0
  %4437 = vmatpush1.msra.mxu0 0.0
  %4438 = vmatprep.subr.mxu0 0.0
  %4439 = vmatpush1.msra.mxu0 0.0
  %4440 = vmatprep.subr.mxu0 0.0
  %4441 = vmatpush1.msra.mxu0 0.0
  %4442 = vmatprep.subr.mxu0 0.0
  %4443 = vmatpush1.msra.mxu0 0.0
  %4444 = vmatprep.subr.mxu0 0.0
  %4445 = vmatpush1.msra.mxu0 0.0
  %4446 = vmatprep.subr.mxu0 0.0
  %4447 = vmatpush1.msra.mxu0 0.0
  %4448 = vmatprep.subr.mxu0 0.0
  %4449 = vmatpush1.msra.mxu0 0.0
  %4450 = vmatprep.subr.mxu0 0.0
  %4451 = vmatpush1.msra.mxu0 0.0
  %4452 = vmatprep.subr.mxu0 0.0
  %4453 = vmatpush1.msra.mxu0 0.0
  %4454 = vmatprep.subr.mxu0 0.0
  %4455 = vmatpush1.msra.mxu0 0.0
  %4456 = vmatprep.subr.mxu0 0.0
  %4457 = vmatpush1.msra.mxu0 0.0
  %4458 = vmatprep.subr.mxu0 0.0
  %4459 = vmatpush1.msra.mxu0 0.0
  %4460 = vmatprep.subr.mxu0 0.0
  %4461 = vmatpush1.msra.mxu0 0.0
  %4462 = vmatprep.subr.mxu0 0.0
  %4463 = vmatpush1.msra.mxu0 0.0
  %4464 = vmatprep.subr.mxu0 0.0
  %4465 = vmatpush1.msra.mxu0 0.0
  %4466 = vmatprep.subr.mxu0 0.0
  %4467 = vmatpush1.msra.mxu0 0.0
  %4468 = vmatprep.subr.mxu0 0.0
  %4469 = vmatpush1.msra.mxu0 0.0
  %4470 = vmatprep.subr.mxu0 0.0
  %4471 = vmatpush1.msra.mxu0 0.0
  %4472 = vmatprep.subr.mxu0 0.0
  %4473 = vmatpush1.msra.mxu0 0.0
  %4474 = vmatprep.mubr.f32.mxu0 0.0
  %4475 = vmatmul.mubr.f32.gmra.mrb[0].mxu0 %v4408
  %v4476 = vpop.f32.mrb[0].mxu0
  %v4477 = vadd.f32 0.0, %v4476
  %v4478 = vpop.f32.mrb[0].mxu0
  %4479 = vdwg.mxu0
  %4481 = vrot.lane.b32.xlu0 %v4477, 32
  %v4482 = vpop.permute.xlu0 %4481
  %v4484 = vadd.f32 %v3606, %v4482
  %v4485 = vrot.slane %v3521, 3
  %4486 = vrot.lane.b32.xlu0 %v4485, 32
  %v4487 = vpop.permute.xlu0 %4486
  %4489 = vrot.lane.b32.xlu0 %v4484, 96
  %v4490 = vpop.permute.xlu0 %4489
  %v4491 = vsel %vm66, %v4487, 0
  %v4493 = vsel %vm66, %v4490, 0
  %4495 = vmatprep.subr.mxu0 0.0
  %4496 = vmatpush1.xpose.msra.mxu0 %v4493
  %4497 = vmatprep.subr.mxu0 0.0
  %4498 = vmatpush1.xpose.msra.mxu0 0.0
  %4499 = vmatprep.subr.mxu0 0.0
  %4500 = vmatpush1.xpose.msra.mxu0 0.0
  %4501 = vmatprep.subr.mxu0 0.0
  %4502 = vmatpush1.xpose.msra.mxu0 0.0
  %4503 = vmatprep.subr.mxu0 0.0
  %4504 = vmatpush1.xpose.msra.mxu0 0.0
  %4505 = vmatprep.subr.mxu0 0.0
  %4506 = vmatpush1.xpose.msra.mxu0 0.0
  %4507 = vmatprep.subr.mxu0 0.0
  %4508 = vmatpush1.xpose.msra.mxu0 0.0
  %4509 = vmatprep.subr.mxu0 0.0
  %4510 = vmatpush1.xpose.msra.mxu0 0.0
  %4511 = vmatprep.subr.mxu0 0.0
  %4512 = vmatpush1.xpose.msra.mxu0 0.0
  %4513 = vmatprep.subr.mxu0 0.0
  %4514 = vmatpush1.xpose.msra.mxu0 0.0
  %4515 = vmatprep.subr.mxu0 0.0
  %4516 = vmatpush1.xpose.msra.mxu0 0.0
  %4517 = vmatprep.subr.mxu0 0.0
  %4518 = vmatpush1.xpose.msra.mxu0 0.0
  %4519 = vmatprep.subr.mxu0 0.0
  %4520 = vmatpush1.xpose.msra.mxu0 0.0
  %4521 = vmatprep.subr.mxu0 0.0
  %4522 = vmatpush1.xpose.msra.mxu0 0.0
  %4523 = vmatprep.subr.mxu0 0.0
  %4524 = vmatpush1.xpose.msra.mxu0 0.0
  %4525 = vmatprep.subr.mxu0 0.0
  %4526 = vmatpush1.xpose.msra.mxu0 0.0
  %4527 = vmatprep.subr.mxu0 0.0
  %4528 = vmatpush1.xpose.msra.mxu0 0.0
  %4529 = vmatprep.subr.mxu0 0.0
  %4530 = vmatpush1.xpose.msra.mxu0 0.0
  %4531 = vmatprep.subr.mxu0 0.0
  %4532 = vmatpush1.xpose.msra.mxu0 0.0
  %4533 = vmatprep.subr.mxu0 0.0
  %4534 = vmatpush1.xpose.msra.mxu0 0.0
  %4535 = vmatprep.subr.mxu0 0.0
  %4536 = vmatpush1.xpose.msra.mxu0 0.0
  %4537 = vmatprep.subr.mxu0 0.0
  %4538 = vmatpush1.xpose.msra.mxu0 0.0
  %4539 = vmatprep.subr.mxu0 0.0
  %4540 = vmatpush1.xpose.msra.mxu0 0.0
  %4541 = vmatprep.subr.mxu0 0.0
  %4542 = vmatpush1.xpose.msra.mxu0 0.0
  %4543 = vmatprep.subr.mxu0 0.0
  %4544 = vmatpush1.xpose.msra.mxu0 0.0
  %4545 = vmatprep.subr.mxu0 0.0
  %4546 = vmatpush1.xpose.msra.mxu0 0.0
  %4547 = vmatprep.subr.mxu0 0.0
  %4548 = vmatpush1.xpose.msra.mxu0 0.0
  %4549 = vmatprep.subr.mxu0 0.0
  %4550 = vmatpush1.xpose.msra.mxu0 0.0
  %4551 = vmatprep.subr.mxu0 0.0
  %4552 = vmatpush1.xpose.msra.mxu0 0.0
  %4553 = vmatprep.subr.mxu0 0.0
  %4554 = vmatpush1.xpose.msra.mxu0 0.0
  %4555 = vmatprep.subr.mxu0 0.0
  %4556 = vmatpush1.xpose.msra.mxu0 0.0
  %4557 = vmatprep.subr.mxu0 0.0
  %4558 = vmatpush1.xpose.msra.mxu0 0.0
  %4559 = vmatprep.mubr.f32.mxu0 0.0
  %4560 = vmatmul.mubr.f32.gmra.mrb[0].mxu0 %v4491
  %v4561 = vpop.f32.mrb[0].mxu0
  %v4562 = vadd.f32 0.0, %v4561
  %v4563 = vpop.f32.mrb[0].mxu0
  %4564 = vdwg.mxu0
  %v4565 = vsel %vm4003, %v4562, -inf
  %v4566 = vrot.slane %v4565, 4
  %v4567 = vmax.f32 %v4565, %v4566
  %v4568 = vrot.slane %v4567, 2
  %v4569 = vmax.f32 %v4567, %v4568
  %v4570 = vrot.slane %v4569, 1
  %v4571 = vmax.f32 %v4569, %v4570
  %v4572 = vsel %vm4011, %v4571, -inf
  %4573 = vmax.xlane.f32.xlu0 %v4572
  %v4574 = vpop.xlane.xlu0 %4573
  %v4575 = vsub.f32 %v4571, %v4574
  %v4576 = vmul.f32 %v4575, 1.442695
  %v4577 = vpow.pop %v4576
  %v4578 = vsel %vm4011, %v4577, 0.0
  %4579 = vadd.xlane.f32.xlu0 %v4578
  %v4580 = vpop.xlane.xlu0 %4579
  %v4581 = vrcp.pop %v4580
  %v4582 = vmul.f32 %v4577, %v4581
  %4583 = vmax.xlane.f32.xlu0 %v4565
  %v4584 = vpop.xlane.xlu0 %4583
  %v4585 = vsel %vm4025, %v4584, -inf
  %v4586 = vrot.slane %v4585, 4
  %v4587 = vmax.f32 %v4585, %v4586
  %v4588 = vrot.slane %v4587, 2
  %v4589 = vmax.f32 %v4587, %v4588
  %v4590 = vrot.slane %v4589, 1
  %v4591 = vmax.f32 %v4589, %v4590
  %v4592 = vsub.f32 %v4584, %v4591
  %v4593 = vmul.f32 %v4592, 1.442695
  %v4594 = vpow.pop %v4593
  %v4595 = vsel %vm4025, %v4594, 0.0
  %v4596 = vrot.slane %v4595, 4
  %v4597 = vadd.f32 %v4595, %v4596
  %v4598 = vrot.slane %v4597, 2
  %v4599 = vadd.f32 %v4597, %v4598
  %v4600 = vrot.slane %v4599, 1
  %v4601 = vadd.f32 %v4599, %v4600
  %v4602 = vrcp.pop %v4601
  %v4603 = vmul.f32 %v4594, %v4602
  %v4605 = vsel %vm4011, %v4582, 0
  %4607 = vmatprep.subr.mxu0 0.0
  %4608 = vmatpush1.msra.mxu0 %v4215
  %4609 = vmatprep.subr.mxu0 0.0
  %4610 = vmatpush1.msra.mxu0 0.0
  %4611 = vmatprep.subr.mxu0 0.0
  %4612 = vmatpush1.msra.mxu0 0.0
  %4613 = vmatprep.subr.mxu0 0.0
  %4614 = vmatpush1.msra.mxu0 0.0
  %4615 = vmatprep.subr.mxu0 0.0
  %4616 = vmatpush1.msra.mxu0 0.0
  %4617 = vmatprep.subr.mxu0 0.0
  %4618 = vmatpush1.msra.mxu0 0.0
  %4619 = vmatprep.subr.mxu0 0.0
  %4620 = vmatpush1.msra.mxu0 0.0
  %4621 = vmatprep.subr.mxu0 0.0
  %4622 = vmatpush1.msra.mxu0 0.0
  %4623 = vmatprep.subr.mxu0 0.0
  %4624 = vmatpush1.msra.mxu0 0.0
  %4625 = vmatprep.subr.mxu0 0.0
  %4626 = vmatpush1.msra.mxu0 0.0
  %4627 = vmatprep.subr.mxu0 0.0
  %4628 = vmatpush1.msra.mxu0 0.0
  %4629 = vmatprep.subr.mxu0 0.0
  %4630 = vmatpush1.msra.mxu0 0.0
  %4631 = vmatprep.subr.mxu0 0.0
  %4632 = vmatpush1.msra.mxu0 0.0
  %4633 = vmatprep.subr.mxu0 0.0
  %4634 = vmatpush1.msra.mxu0 0.0
  %4635 = vmatprep.subr.mxu0 0.0
  %4636 = vmatpush1.msra.mxu0 0.0
  %4637 = vmatprep.subr.mxu0 0.0
  %4638 = vmatpush1.msra.mxu0 0.0
  %4639 = vmatprep.subr.mxu0 0.0
  %4640 = vmatpush1.msra.mxu0 0.0
  %4641 = vmatprep.subr.mxu0 0.0
  %4642 = vmatpush1.msra.mxu0 0.0
  %4643 = vmatprep.subr.mxu0 0.0
  %4644 = vmatpush1.msra.mxu0 0.0
  %4645 = vmatprep.subr.mxu0 0.0
  %4646 = vmatpush1.msra.mxu0 0.0
  %4647 = vmatprep.subr.mxu0 0.0
  %4648 = vmatpush1.msra.mxu0 0.0
  %4649 = vmatprep.subr.mxu0 0.0
  %4650 = vmatpush1.msra.mxu0 0.0
  %4651 = vmatprep.subr.mxu0 0.0
  %4652 = vmatpush1.msra.mxu0 0.0
  %4653 = vmatprep.subr.mxu0 0.0
  %4654 = vmatpush1.msra.mxu0 0.0
  %4655 = vmatprep.subr.mxu0 0.0
  %4656 = vmatpush1.msra.mxu0 0.0
  %4657 = vmatprep.subr.mxu0 0.0
  %4658 = vmatpush1.msra.mxu0 0.0
  %4659 = vmatprep.subr.mxu0 0.0
  %4660 = vmatpush1.msra.mxu0 0.0
  %4661 = vmatprep.subr.mxu0 0.0
  %4662 = vmatpush1.msra.mxu0 0.0
  %4663 = vmatprep.subr.mxu0 0.0
  %4664 = vmatpush1.msra.mxu0 0.0
  %4665 = vmatprep.subr.mxu0 0.0
  %4666 = vmatpush1.msra.mxu0 0.0
  %4667 = vmatprep.subr.mxu0 0.0
  %4668 = vmatpush1.msra.mxu0 0.0
  %4669 = vmatprep.subr.mxu0 0.0
  %4670 = vmatpush1.msra.mxu0 0.0
  %4671 = vmatprep.mubr.f32.mxu0 0.0
  %4672 = vmatmul.mubr.f32.gmra.mrb[0].mxu0 %v4605
  %v4673 = vpop.f32.mrb[0].mxu0
  %v4674 = vadd.f32 0.0, %v4673
  %v4675 = vpop.f32.mrb[0].mxu0
  %4676 = vdwg.mxu0
  %4677 = vmatprep.subr.mxu0 0.0
  %4678 = vmatpush1.msra.mxu0 %v4404
  %4679 = vmatprep.subr.mxu0 0.0
  %4680 = vmatpush1.msra.mxu0 0.0
  %4681 = vmatprep.subr.mxu0 0.0
  %4682 = vmatpush1.msra.mxu0 0.0
  %4683 = vmatprep.subr.mxu0 0.0
  %4684 = vmatpush1.msra.mxu0 0.0
  %4685 = vmatprep.subr.mxu0 0.0
  %4686 = vmatpush1.msra.mxu0 0.0
  %4687 = vmatprep.subr.mxu0 0.0
  %4688 = vmatpush1.msra.mxu0 0.0
  %4689 = vmatprep.subr.mxu0 0.0
  %4690 = vmatpush1.msra.mxu0 0.0
  %4691 = vmatprep.subr.mxu0 0.0
  %4692 = vmatpush1.msra.mxu0 0.0
  %4693 = vmatprep.subr.mxu0 0.0
  %4694 = vmatpush1.msra.mxu0 0.0
  %4695 = vmatprep.subr.mxu0 0.0
  %4696 = vmatpush1.msra.mxu0 0.0
  %4697 = vmatprep.subr.mxu0 0.0
  %4698 = vmatpush1.msra.mxu0 0.0
  %4699 = vmatprep.subr.mxu0 0.0
  %4700 = vmatpush1.msra.mxu0 0.0
  %4701 = vmatprep.subr.mxu0 0.0
  %4702 = vmatpush1.msra.mxu0 0.0
  %4703 = vmatprep.subr.mxu0 0.0
  %4704 = vmatpush1.msra.mxu0 0.0
  %4705 = vmatprep.subr.mxu0 0.0
  %4706 = vmatpush1.msra.mxu0 0.0
  %4707 = vmatprep.subr.mxu0 0.0
  %4708 = vmatpush1.msra.mxu0 0.0
  %4709 = vmatprep.subr.mxu0 0.0
  %4710 = vmatpush1.msra.mxu0 0.0
  %4711 = vmatprep.subr.mxu0 0.0
  %4712 = vmatpush1.msra.mxu0 0.0
  %4713 = vmatprep.subr.mxu0 0.0
  %4714 = vmatpush1.msra.mxu0 0.0
  %4715 = vmatprep.subr.mxu0 0.0
  %4716 = vmatpush1.msra.mxu0 0.0
  %4717 = vmatprep.subr.mxu0 0.0
  %4718 = vmatpush1.msra.mxu0 0.0
  %4719 = vmatprep.subr.mxu0 0.0
  %4720 = vmatpush1.msra.mxu0 0.0
  %4721 = vmatprep.subr.mxu0 0.0
  %4722 = vmatpush1.msra.mxu0 0.0
  %4723 = vmatprep.subr.mxu0 0.0
  %4724 = vmatpush1.msra.mxu0 0.0
  %4725 = vmatprep.subr.mxu0 0.0
  %4726 = vmatpush1.msra.mxu0 0.0
  %4727 = vmatprep.subr.mxu0 0.0
  %4728 = vmatpush1.msra.mxu0 0.0
  %4729 = vmatprep.subr.mxu0 0.0
  %4730 = vmatpush1.msra.mxu0 0.0
  %4731 = vmatprep.subr.mxu0 0.0
  %4732 = vmatpush1.msra.mxu0 0.0
  %4733 = vmatprep.subr.mxu0 0.0
  %4734 = vmatpush1.msra.mxu0 0.0
  %4735 = vmatprep.subr.mxu0 0.0
  %4736 = vmatpush1.msra.mxu0 0.0
  %4737 = vmatprep.subr.mxu0 0.0
  %4738 = vmatpush1.msra.mxu0 0.0
  %4739 = vmatprep.subr.mxu0 0.0
  %4740 = vmatpush1.msra.mxu0 0.0
  %4741 = vmatprep.mubr.f32.mxu0 0.0
  %4742 = vmatmul.mubr.f32.gmra.mrb[0].mxu0 %v4605
  %v4743 = vpop.f32.mrb[0].mxu0
  %v4744 = vadd.f32 0.0, %v4743
  %v4745 = vpop.f32.mrb[0].mxu0
  %4746 = vdwg.mxu0
  %v4748 = vmul.f32 %v4603, %v4487
  %vm4749 = vcmask 256000
  %v4750 = vsel %vm4749, %v4748, 0.0
  %v4751 = vrot.slane %v4750, 4
  %v4752 = vadd.f32 %v4750, %v4751
  %v4753 = vrot.slane %v4752, 2
  %v4754 = vadd.f32 %v4752, %v4753
  %v4755 = vrot.slane %v4754, 1
  %v4756 = vadd.f32 %v4754, %v4755
  %v4758 = vrot.slane %v4674, 7
  %4759 = vrot.lane.b32.xlu0 %v4758, 32
  %v4760 = vpop.permute.xlu0 %4759
  %v4763 = vrot.slane %v4744, 7
  %4764 = vrot.lane.b32.xlu0 %v4763, 64
  %v4765 = vpop.permute.xlu0 %4764
  %4768 = vrot.lane.b32.xlu0 %v4756, 96
  %v4769 = vpop.permute.xlu0 %4768
  %v4771 = vsel %vm66, %v4199, %v4760
  %v4772 = vsel %vm4210, %v4771, %v4765
  %v4773 = vsel %vm4212, %v4772, %v4769
  %vm4774 = vcmask 1040384
  %v4775 = vsel %vm4774, %v4213, %v4773
  %v4776 = vld [vmem:[%s11] sm:$0xff]
  %v4777 = vld [vmem:[%s11 + $0x8] sm:$0xff]
  %v4778 = vld [vmem:[%s11 + $0x10] sm:$0xff]
  %v4779 = vld [vmem:[%s11 + $0x18] sm:$0xff]
  %v4780 = vld [vmem:[%s11 + $0x20] sm:$0xff]
  %v4781 = vld [vmem:[%s11 + $0x28] sm:$0xff]
  %v4782 = vld [vmem:[%s11 + $0x30] sm:$0xff]
  %v4783 = vld [vmem:[%s11 + $0x38] sm:$0xff]
  %v4784 = vld [vmem:[%s11 + $0x40] sm:$0xff]
  %v4785 = vld [vmem:[%s11 + $0x48] sm:$0xff]
  %v4786 = vld [vmem:[%s11 + $0x50] sm:$0xff]
  %v4787 = vld [vmem:[%s11 + $0x58] sm:$0xff]
  %v4788 = vld [vmem:[%s11 + $0x60] sm:$0xff]
  %v4789 = vld [vmem:[%s11 + $0x68] sm:$0xff]
  %v4790 = vld [vmem:[%s11 + $0x70] sm:$0xff]
  %v4791 = vld [vmem:[%s11 + $0x78] sm:$0xff]
  %v4792 = vld [vmem:[%s12] sm:$0x1]
  %v4794 = vlaneseq
  %v4795 = vshrl.u32 %v4794, 7
  %v4796 = vsub.s32 0, %v4795
  %v4797 = vrot.slane %v4792, %v4796
  %4799 = vmatprep.subr.mxu0 0.0
  %4800 = vmatpush1.msra.mxu0 %v4776
  %4801 = vmatprep.subr.mxu0 0.0
  %4802 = vmatpush1.msra.mxu0 %v4777
  %4803 = vmatprep.subr.mxu0 0.0
  %4804 = vmatpush1.msra.mxu0 %v4778
  %4805 = vmatprep.subr.mxu0 0.0
  %4806 = vmatpush1.msra.mxu0 %v4779
  %4807 = vmatprep.subr.mxu0 0.0
  %4808 = vmatpush1.msra.mxu0 %v4780
  %4809 = vmatprep.subr.mxu0 0.0
  %4810 = vmatpush1.msra.mxu0 %v4781
  %4811 = vmatprep.subr.mxu0 0.0
  %4812 = vmatpush1.msra.mxu0 %v4782
  %4813 = vmatprep.subr.mxu0 0.0
  %4814 = vmatpush1.msra.mxu0 %v4783
  %4815 = vmatprep.subr.mxu0 0.0
  %4816 = vmatpush1.msra.mxu0 %v4784
  %4817 = vmatprep.subr.mxu0 0.0
  %4818 = vmatpush1.msra.mxu0 %v4785
  %4819 = vmatprep.subr.mxu0 0.0
  %4820 = vmatpush1.msra.mxu0 %v4786
  %4821 = vmatprep.subr.mxu0 0.0
  %4822 = vmatpush1.msra.mxu0 %v4787
  %4823 = vmatprep.subr.mxu0 0.0
  %4824 = vmatpush1.msra.mxu0 %v4788
  %4825 = vmatprep.subr.mxu0 0.0
  %4826 = vmatpush1.msra.mxu0 %v4789
  %4827 = vmatprep.subr.mxu0 0.0
  %4828 = vmatpush1.msra.mxu0 %v4790
  %4829 = vmatprep.subr.mxu0 0.0
  %4830 = vmatpush1.msra.mxu0 %v4791
  %4831 = vmatprep.subr.mxu0 0.0
  %4832 = vmatpush1.msra.mxu0 0.0
  %4833 = vmatprep.subr.mxu0 0.0
  %4834 = vmatpush1.msra.mxu0 0.0
  %4835 = vmatprep.subr.mxu0 0.0
  %4836 = vmatpush1.msra.mxu0 0.0
  %4837 = vmatprep.subr.mxu0 0.0
  %4838 = vmatpush1.msra.mxu0 0.0
  %4839 = vmatprep.subr.mxu0 0.0
  %4840 = vmatpush1.msra.mxu0 0.0
  %4841 = vmatprep.subr.mxu0 0.0
  %4842 = vmatpush1.msra.mxu0 0.0
  %4843 = vmatprep.subr.mxu0 0.0
  %4844 = vmatpush1.msra.mxu0 0.0
  %4845 = vmatprep.subr.mxu0 0.0
  %4846 = vmatpush1.msra.mxu0 0.0
  %4847 = vmatprep.subr.mxu0 0.0
  %4848 = vmatpush1.msra.mxu0 0.0
  %4849 = vmatprep.subr.mxu0 0.0
  %4850 = vmatpush1.msra.mxu0 0.0
  %4851 = vmatprep.subr.mxu0 0.0
  %4852 = vmatpush1.msra.mxu0 0.0
  %4853 = vmatprep.subr.mxu0 0.0
  %4854 = vmatpush1.msra.mxu0 0.0
  %4855 = vmatprep.subr.mxu0 0.0
  %4856 = vmatpush1.msra.mxu0 0.0
  %4857 = vmatprep.subr.mxu0 0.0
  %4858 = vmatpush1.msra.mxu0 0.0
  %4859 = vmatprep.subr.mxu0 0.0
  %4860 = vmatpush1.msra.mxu0 0.0
  %4861 = vmatprep.subr.mxu0 0.0
  %4862 = vmatpush1.msra.mxu0 0.0
  %4863 = vmatprep.mubr.f32.mxu0 0.0
  %4864 = vmatmul.mubr.f32.gmra.mrb[0].mxu0 %v4775
  %v4865 = vpop.f32.mrb[0].mxu0
  %v4866 = vadd.f32 %v4797, %v4865
  %v4867 = vpop.f32.mrb[0].mxu0
  %4868 = vdwg.mxu0
  %vm4869 = vcmask 25600
  %4870 = vst.msk [vmem:[%s13] sm:$0x3] %vm4869, %v4866
  // Predicated region
  $region54: #{cv_pay_forward.1} parent=0 // pred_check
    _
  $region55: #{cv_pay_forward.1} parent=0 // pred_check_branch
    %4872 = sbr.rel (0) target = $region57
  $region56: #{cv_pay_forward.1} parent=0 // pred_region
    _
  $region57: #{cv_pay_forward.1} parent=0 // pred_fallthru
    _
  // Predicated region
  $region58: #{cv_pay_forward.1} parent=0 // pred_check
    _
  $region59: #{cv_pay_forward.1} parent=0 // pred_check_branch
    %4874 = sbr.rel (0) target = $region61
  $region60: #{cv_pay_forward.1} parent=0 // pred_region
    _
  $region61: #{cv_pay_forward.1} parent=0 // pred_fallthru
    _

</llo_original>
